<compile_context>
chip_gen: v7x
topology: tpu7x:2x2x1
jax: 0.10.0
libtpu: 0.0.40
codegen_flags: <defaults>
</compile_context>

<pallas_src>
import functools

import jax
import jax.numpy as jnp
from jax.experimental import pallas as pl
from jax.experimental.pallas import tpu as pltpu

LANE = 128      # lane width: every matmul K / N is padded to a multiple of this
MAX_TM = 512    # row-tile cap; one grid step covers all rows for the sizes used here


def _round_up(x, m):
    return (x + m - 1) // m * m


def _pick_tile(total, cap):
    t = min(total, cap)
    while total % t != 0:
        t -= LANE           # total is a multiple of LANE, so this terminates at LANE
    return t


# ----------------------------- Pallas kernels -------------------------------

def _matmul_kernel(x_ref, w_ref, b_ref, o_ref, acc_ref, *, relu):
    """Tiled matmul with f32 VMEM accumulator and fused bias + optional ReLU."""
    @pl.when(pl.program_id(2) == 0)
    def _():
        acc_ref[...] = jnp.zeros_like(acc_ref)

    acc_ref[...] += jnp.dot(x_ref[...], w_ref[...],
                            preferred_element_type=jnp.float32)

    @pl.when(pl.program_id(2) == pl.num_programs(2) - 1)
    def _():
        y = acc_ref[...] + b_ref[...]
        if relu:
            y = jnp.maximum(y, 0.0)
        o_ref[...] = y.astype(o_ref.dtype)


def _gumbel_codebook_kernel(l_ref, g_ref, cb_ref, o_ref, *, inv_tau, num_tokens):
    """softmax((logits + gumbel) / tau) over the (lane-padded) token dim, fused with the
    codebook contraction: out = soft_one_hot @ codebook.  Soft one-hot stays in VMEM."""
    z = (l_ref[...] + g_ref[...]) * inv_tau
    lane = jax.lax.broadcasted_iota(jnp.int32, z.shape, 1)
    z = jnp.where(lane < num_tokens, z, -1e30)          # mask padded token lanes
    z = z - jnp.max(z, axis=-1, keepdims=True)
    e = jnp.exp(z)
    p = e * pl.reciprocal(jnp.sum(e, axis=-1, keepdims=True), approx=True)
    o_ref[...] = jnp.dot(p.astype(cb_ref.dtype), cb_ref[...],
                         preferred_element_type=jnp.float32).astype(o_ref.dtype)


# ----------------------------- Pallas wrappers ------------------------------

def pallas_matmul(x, w2, b2, *, relu, out_dtype):
    """x: (M, K) float; w2: (Kp, Np) bf16; b2: (1, Np) f32 (Kp/Np multiples of 128).
    Returns the lane-dense (Mp, Np) product with fused bias (+ReLU)."""
    M, K = x.shape
    Kp, Np = w2.shape
    x = x.astype(jnp.bfloat16)
    if K < Kp:
        x = jnp.pad(x, ((0, 0), (0, Kp - K)))
    tm = M if M <= MAX_TM else MAX_TM
    Mp = _round_up(M, tm)
    if Mp > M:
        x = jnp.pad(x, ((0, Mp - M), (0, 0)))
    tn = _pick_tile(Np, MAX_TM)
    tk = _pick_tile(Kp, MAX_TM)
    return pl.pallas_call(
        functools.partial(_matmul_kernel, relu=relu),
        out_shape=jax.ShapeDtypeStruct((Mp, Np), out_dtype),
        grid=(Mp // tm, Np // tn, Kp // tk),
        in_specs=[
            pl.BlockSpec((tm, tk), lambda i, j, k: (i, k)),
            pl.BlockSpec((tk, tn), lambda i, j, k: (k, j)),
            pl.BlockSpec((1, tn), lambda i, j, k: (0, j)),
        ],
        out_specs=pl.BlockSpec((tm, tn), lambda i, j, k: (i, j)),
        scratch_shapes=[pltpu.VMEM((tm, tn), jnp.float32)],
        compiler_params=pltpu.CompilerParams(
            dimension_semantics=("parallel", "parallel", "arbitrary")),
    )(x, w2, b2)


def pallas_gumbel_codebook(logits, gumbel, codebook, *, tau, num_tokens):
    """logits/gumbel: (M, NTpad) f32; codebook: (NTpad, Dpad) bf16 -> (Mp, Dpad) f32."""
    M, Nt = logits.shape
    _, Dp = codebook.shape
    tm = M if M <= MAX_TM else MAX_TM
    Mp = _round_up(M, tm)
    if Mp > M:
        logits = jnp.pad(logits, ((0, Mp - M), (0, 0)))
        gumbel = jnp.pad(gumbel, ((0, Mp - M), (0, 0)))
    return pl.pallas_call(
        functools.partial(_gumbel_codebook_kernel,
                          inv_tau=float(1.0 / tau), num_tokens=num_tokens),
        out_shape=jax.ShapeDtypeStruct((Mp, Dp), jnp.float32),
        grid=(Mp // tm,),
        in_specs=[
            pl.BlockSpec((tm, Nt), lambda i: (i, 0)),
            pl.BlockSpec((tm, Nt), lambda i: (i, 0)),
            pl.BlockSpec((Nt, Dp), lambda i: (0, 0)),
        ],
        out_specs=pl.BlockSpec((tm, Dp), lambda i: (i, 0)),
        compiler_params=pltpu.CompilerParams(dimension_semantics=("parallel",)),
    )(logits, gumbel, codebook)


# ----------------------- conv lowering (im2col glue) ------------------------
# TODO(synk): im2col patch construction stays in XLA glue; a VMEM-resident kh/kw
# reduction grid axis would remove the HBM patch round-trip at large image sizes.

def _im2col(x, K, stride, pad):
    B, H, W, C = x.shape
    OH = (H + 2 * pad - K) // stride + 1
    OW = (W + 2 * pad - K) // stride + 1
    xp = jnp.pad(x, ((0, 0), (pad, pad), (pad, pad), (0, 0))) if pad else x
    cols = []
    for kh in range(K):
        for kw in range(K):
            cols.append(xp[:, kh:kh + stride * (OH - 1) + 1:stride,
                           kw:kw + stride * (OW - 1) + 1:stride, :])
    patches = jnp.concatenate(cols, axis=-1).reshape(B * OH * OW, K * K * C)
    return patches, OH, OW


def conv2d(x, w2, b2, *, ksize, nout, stride, pad, relu, out_dtype):
    """PyTorch-semantics Conv2d on NHWC input, lowered to one lane-dense Pallas matmul."""
    B, H, W, C = x.shape
    patches, OH, OW = _im2col(x, ksize, stride, pad)
    y = pallas_matmul(patches, w2, b2, relu=relu, out_dtype=out_dtype)
    return y[:B * OH * OW, :nout].reshape(B, OH, OW, nout)


def conv_transpose2d_s2(x, w2, b2, *, cout, relu, out_dtype):
    """PyTorch ConvTranspose2d(k=4, stride=2, pad=1) via stride^2 sub-kernel
    decomposition: all 4 output phases come from ONE 3x3 stride-1 matmul on the
    un-dilated input; output channels of w2 are laid out as (ry, rx, cout)."""
    B, H, W, C = x.shape
    patches, _, _ = _im2col(x, 3, 1, 1)
    y = pallas_matmul(patches, w2, b2, relu=relu, out_dtype=out_dtype)
    y = y[:B * H * W, :4 * cout].reshape(B, H, W, 2, 2, cout)
    return y.transpose(0, 1, 3, 2, 4, 5).reshape(B, 2 * H, 2 * W, cout)


# --------------------------- DiscreteVAE forward -----------------------------

def discrete_vae_forward(img_nchw, params, gumbel_noise, *, temperature, channels,
                         hidden_dim, num_tokens, codebook_dim):
    x = jnp.transpose(img_nchw, (0, 2, 3, 1))       # NCHW -> NHWC
    x = x - params["norm_mean"]                     # mean shift (1/std folded into conv 0)

    # encoder: num_layers x [Conv2d(4, s=2, p=1) + ReLU]
    for (w2, b2) in params["enc_convs"]:
        x = conv2d(x, w2, b2, ksize=4, nout=hidden_dim, stride=2, pad=1,
                   relu=True, out_dtype=jnp.bfloat16)
    # TODO(synk): ResBlock path (num_resnet_blocks > 0) not exercised; default config uses 0.

    # encoder head: 1x1 conv -> logits, kept lane-dense (padded token lanes stay zero)
    Bh, Hh, Wh, Ch = x.shape
    M = Bh * Hh * Wh
    logits = pallas_matmul(x.reshape(M, Ch), *params["enc_out"],
                           relu=False, out_dtype=jnp.float32)[:M]

    # fused gumbel-softmax (hard=False, the default) + codebook einsum
    # TODO(synk): gumbel noise is passed in (deterministic/testable); could be generated
    # in-kernel with pltpu.prng_seed / pltpu.prng_random_bits to drop this HBM stream.
    g = gumbel_noise.reshape(M, num_tokens)
    g = jnp.pad(g, ((0, 0), (0, logits.shape[1] - num_tokens)))
    sampled = pallas_gumbel_codebook(logits, g, params["codebook"],
                                     tau=temperature, num_tokens=num_tokens)[:M]
    x = sampled[:, :codebook_dim].reshape(Bh, Hh, Wh, codebook_dim)

    # decoder: num_layers x [ConvTranspose2d(4, s=2, p=1) + ReLU]
    for (w2, b2) in params["dec_convts"]:
        x = conv_transpose2d_s2(x, w2, b2, cout=hidden_dim,
                                relu=True, out_dtype=jnp.bfloat16)

    # decoder head: 1x1 conv to image channels
    Bd, Hd, Wd, Cd = x.shape
    Md = Bd * Hd * Wd
    out = pallas_matmul(x.reshape(Md, Cd), *params["dec_out"],
                        relu=False, out_dtype=jnp.float32)
    out = out[:Md, :channels].reshape(Bd, Hd, Wd, channels)
    return jnp.transpose(out, (0, 3, 1, 2))          # back to NCHW


# ------------------------------- parameters ----------------------------------

def init_params(key, channels, hidden_dim, num_layers, num_tokens, codebook_dim):
    """PyTorch-layout parameters (Conv2d: (Cout,Cin,K,K); ConvTranspose2d: (Cin,Cout,K,K))."""
    keys = iter(jax.random.split(key, 64))

    def conv_w(cout, cin, k):
        fan_in = cin * k * k
        return jax.random.normal(next(keys), (cout, cin, k, k), jnp.float32) / jnp.sqrt(fan_in)

    def convt_w(cin, cout, k):
        fan_in = cout * k * k
        return jax.random.normal(next(keys), (cin, cout, k, k), jnp.float32) / jnp.sqrt(fan_in)

    def bias(c):
        return 0.01 * jax.random.normal(next(keys), (c,), jnp.float32)

    enc_chans = [channels] + [hidden_dim] * num_layers
    dec_chans = [codebook_dim] + [hidden_dim] * num_layers

    return {
        "norm_mean": jnp.array(((0.5,) * 3 + (0.0,))[:channels], jnp.float32),
        "norm_std": jnp.array(((0.5,) * 3 + (1.0,))[:channels], jnp.float32),
        "enc_convs": [(conv_w(enc_chans[i + 1], enc_chans[i], 4), bias(enc_chans[i + 1]))
                      for i in range(num_layers)],
        "enc_out_w": conv_w(num_tokens, enc_chans[-1], 1),
        "enc_out_b": bias(num_tokens),
        "codebook": jax.random.normal(next(keys), (num_tokens, codebook_dim), jnp.float32),
        "dec_convts": [(convt_w(dec_chans[i], dec_chans[i + 1], 4), bias(dec_chans[i + 1]))
                       for i in range(num_layers)],
        "dec_out_w": conv_w(channels, dec_chans[-1], 1),
        "dec_out_b": bias(channels),
    }


def prepare_params(raw, channels, hidden_dim, num_layers, num_tokens, codebook_dim):
    """Convert PyTorch-layout params into lane-padded, bf16, matmul-ready kernel params.
    Done once, outside jit (weights padded at init, not per call)."""
    std = raw["norm_std"]

    def pad_matmul(w2, b):
        K, N = w2.shape
        Kp, Np = _round_up(K, LANE), _round_up(N, LANE)
        w2p = jnp.zeros((Kp, Np), jnp.bfloat16).at[:K, :N].set(w2.astype(jnp.bfloat16))
        b2p = jnp.zeros((1, Np), jnp.float32).at[0, :N].set(b.astype(jnp.float32))
        return w2p, b2p

    def conv_to_matmul(w, b):
        cout, cin, k, _ = w.shape
        w2 = jnp.transpose(w, (2, 3, 1, 0)).reshape(k * k * cin, cout)
        return pad_matmul(w2, b)

    def convT_to_matmul(w_t, b):
        # stride^2 decomposition of ConvTranspose2d(4, s=2, p=1) into one 3x3 conv whose
        # output channels are the 4 interleaved phases (ry, rx).
        cin, cout, k, _ = w_t.shape
        assert k == 4
        w_comb = jnp.zeros((3, 3, cin, 2, 2, cout), jnp.float32)
        for ry in range(2):
            for rx in range(2):
                for dy in range(2):
                    for dx in range(2):
                        w_comb = w_comb.at[ry + dy, rx + dx, :, ry, rx, :].set(
                            w_t[:, :, 3 - 2 * dy - ry, 3 - 2 * dx - rx])
        return pad_matmul(w_comb.reshape(9 * cin, 4 * cout), jnp.tile(b, 4))

    enc_convs = []
    for i, (w, b) in enumerate(raw["enc_convs"]):
        if i == 0:
            w = w / std[None, :, None, None]   # fold the 1/std of the input norm into conv 0
        enc_convs.append(conv_to_matmul(w, b))

    nt_pad = _round_up(num_tokens, LANE)
    d_pad = _round_up(codebook_dim, LANE)
    codebook = jnp.zeros((nt_pad, d_pad), jnp.bfloat16).at[
        :num_tokens, :codebook_dim].set(raw["codebook"].astype(jnp.bfloat16))

    return {
        "norm_mean": raw["norm_mean"],
        "enc_convs": enc_convs,
        "enc_out": conv_to_matmul(raw["enc_out_w"], raw["enc_out_b"]),
        "codebook": codebook,
        "dec_convts": [convT_to_matmul(w_t, b) for (w_t, b) in raw["dec_convts"]],
        "dec_out": conv_to_matmul(raw["dec_out_w"], raw["dec_out_b"]),
    }


# ---------------------------------- main -------------------------------------

if __name__ == "__main__":
    # small DiscreteVAE: image_size=16, channels=3, num_layers=2, hidden_dim=8,
    # num_tokens=16, codebook_dim=16, num_resnet_blocks=0, temperature=0.9
    B, C, IMG = 2, 3, 16
    NUM_LAYERS, HIDDEN, NUM_TOKENS, CODE_DIM = 2, 8, 16, 16
    TEMP = 0.9

    key = jax.random.PRNGKey(0)
    k_img, k_par, k_gum = jax.random.split(key, 3)

    img = jax.random.uniform(k_img, (B, C, IMG, IMG), jnp.float32)
    raw_params = init_params(k_par, C, HIDDEN, NUM_LAYERS, NUM_TOKENS, CODE_DIM)
    params = prepare_params(raw_params, C, HIDDEN, NUM_LAYERS, NUM_TOKENS, CODE_DIM)

    HH = IMG // (2 ** NUM_LAYERS)
    gumbel_noise = jax.random.gumbel(k_gum, (B, HH, HH, NUM_TOKENS), jnp.float32)

    fwd = jax.jit(functools.partial(
        discrete_vae_forward, temperature=TEMP, channels=C, hidden_dim=HIDDEN,
        num_tokens=NUM_TOKENS, codebook_dim=CODE_DIM))
    out = fwd(img, params, gumbel_noise)
    out = jax.block_until_ready(out)

    assert out.shape == (B, C, IMG, IMG), out.shape
    assert bool(jnp.all(jnp.isfinite(out)))
    print("KERNEL_OK")
</pallas_src>

<mosaic_0001>
module attributes {stable_mosaic.version = 11 : i64} {
  func.func @_matmul_kernel(%arg0: i32, %arg1: i32, %arg2: i32, %arg3: memref<128x128xbf16, #tpu.memory_space<vmem>>, %arg4: memref<128x128xbf16, #tpu.memory_space<vmem>>, %arg5: memref<1x128xf32, #tpu.memory_space<vmem>>, %arg6: memref<128x128xbf16, #tpu.memory_space<vmem>>, %arg7: memref<128x128xf32, #tpu.memory_space<vmem>>) attributes {dimension_semantics = [#tpu.dimension_semantics<parallel>, #tpu.dimension_semantics<parallel>, #tpu.dimension_semantics<arbitrary>], iteration_bounds = array<i64: 1, 1, 1>, scalar_prefetch = 0 : i64, scratch_operands = 1 : i64, tpu.core_type = #tpu.core_type<tc>, window_params = [{transform_indices = @transform_0, window_bounds = array<i64: 128, 128>}, {transform_indices = @transform_1, window_bounds = array<i64: 128, 128>}, {transform_indices = @transform_2, window_bounds = array<i64: 1, 128>}, {transform_indices = @transform_3, window_bounds = array<i64: 128, 128>}]} {
    %c0_i32 = arith.constant 0 : i32
    %0 = arith.cmpi eq, %arg2, %c0_i32 : i32
    %1 = arith.extui %0 : i1 to i32
    %c0_i32_0 = arith.constant 0 : i32
    %2 = arith.cmpi ne, %1, %c0_i32_0 : i32
    scf.if %2 {
      %cst_10 = arith.constant 0.000000e+00 : f32
      %12 = vector.broadcast %cst_10 : f32 to vector<128x128xf32>
      %c0_11 = arith.constant 0 : index
      %c0_12 = arith.constant 0 : index
      %13 = vector.load %arg7[%c0_11, %c0_12] : memref<128x128xf32, #tpu.memory_space<vmem>>, vector<128x128xf32>
      tpu.vector_store %arg7[%c0_11, %c0_12], %12 {strides = array<i32>} : memref<128x128xf32, #tpu.memory_space<vmem>>, vector<128x128xf32>,
    } else {
    }
    %c0 = arith.constant 0 : index
    %c0_1 = arith.constant 0 : index
    %3 = vector.load %arg7[%c0, %c0_1] : memref<128x128xf32, #tpu.memory_space<vmem>>, vector<128x128xf32>
    %c0_2 = arith.constant 0 : index
    %c0_3 = arith.constant 0 : index
    %4 = vector.load %arg3[%c0_2, %c0_3] : memref<128x128xbf16, #tpu.memory_space<vmem>>, vector<128x128xbf16>
    %c0_4 = arith.constant 0 : index
    %c0_5 = arith.constant 0 : index
    %5 = vector.load %arg4[%c0_4, %c0_5] : memref<128x128xbf16, #tpu.memory_space<vmem>>, vector<128x128xbf16>
    %cst = arith.constant dense<0.000000e+00> : vector<128x128xf32>
    %6 = tpu.matmul %4, %5, %cst {dimension_numbers = #tpu.dot_dimension_numbers<[1], [0], [0], [1], [0, 0, 1, 1], [], []>} : vector<128x128xbf16>, vector<128x128xbf16>, vector<128x128xf32> -> vector<128x128xf32>
    %7 = arith.addf %3, %6 : vector<128x128xf32>
    %c0_6 = arith.constant 0 : index
    %c0_7 = arith.constant 0 : index
    %8 = vector.load %arg7[%c0_6, %c0_7] : memref<128x128xf32, #tpu.memory_space<vmem>>, vector<128x128xf32>
    tpu.vector_store %arg7[%c0_6, %c0_7], %7 {strides = array<i32>} : memref<128x128xf32, #tpu.memory_space<vmem>>, vector<128x128xf32>,
    %c0_i32_8 = arith.constant 0 : i32
    %9 = arith.cmpi eq, %arg2, %c0_i32_8 : i32
    %10 = arith.extui %9 : i1 to i32
    %c0_i32_9 = arith.constant 0 : i32
    %11 = arith.cmpi ne, %10, %c0_i32_9 : i32
    scf.if %11 {
      %c0_10 = arith.constant 0 : index
      %c0_11 = arith.constant 0 : index
      %12 = vector.load %arg7[%c0_10, %c0_11] : memref<128x128xf32, #tpu.memory_space<vmem>>, vector<128x128xf32>
      %c0_12 = arith.constant 0 : index
      %c0_13 = arith.constant 0 : index
      %13 = vector.load %arg5[%c0_12, %c0_13] : memref<1x128xf32, #tpu.memory_space<vmem>>, vector<1x128xf32>
      %14 = vector.broadcast %13 : vector<1x128xf32> to vector<128x128xf32>
      %15 = arith.addf %12, %14 : vector<128x128xf32>
      %cst_14 = arith.constant 0.000000e+00 : f32
      %16 = vector.broadcast %cst_14 : f32 to vector<128x128xf32>
      %17 = arith.maximumf %15, %16 : vector<128x128xf32>
      %18 = arith.truncf %17 : vector<128x128xf32> to vector<128x128xbf16>
      %c0_15 = arith.constant 0 : index
      %c0_16 = arith.constant 0 : index
      %19 = vector.load %arg6[%c0_15, %c0_16] : memref<128x128xbf16, #tpu.memory_space<vmem>>, vector<128x128xbf16>
      tpu.vector_store %arg6[%c0_15, %c0_16], %18 {strides = array<i32>} : memref<128x128xbf16, #tpu.memory_space<vmem>>, vector<128x128xbf16>,
    } else {
    }
    return
  }
  func.func @transform_0(%arg0: i32, %arg1: i32, %arg2: i32) -> (i32, i32) {
    %c0_i32 = arith.constant 0 : i32
    return %arg0, %arg2 : i32, i32
  }
  func.func @transform_1(%arg0: i32, %arg1: i32, %arg2: i32) -> (i32, i32) {
    %c0_i32 = arith.constant 0 : i32
    return %arg2, %arg1 : i32, i32
  }
  func.func @transform_2(%arg0: i32, %arg1: i32, %arg2: i32) -> (i32, i32) {
    %c0_i32 = arith.constant 0 : i32
    %c0_i32_0 = arith.constant 0 : i32
    return %c0_i32, %arg1 : i32, i32
  }
  func.func @transform_3(%arg0: i32, %arg1: i32, %arg2: i32) -> (i32, i32) {
    %c0_i32 = arith.constant 0 : i32
    return %arg0, %arg1 : i32, i32
  }
}

module attributes {stable_mosaic.version = 11 : i64} {
  func.func @_matmul_kernel(%arg0: i32, %arg1: i32, %arg2: i32, %arg3: memref<32x128xbf16, #tpu.memory_space<vmem>>, %arg4: memref<128x128xbf16, #tpu.memory_space<vmem>>, %arg5: memref<1x128xf32, #tpu.memory_space<vmem>>, %arg6: memref<32x128xbf16, #tpu.memory_space<vmem>>, %arg7: memref<32x128xf32, #tpu.memory_space<vmem>>) attributes {dimension_semantics = [#tpu.dimension_semantics<parallel>, #tpu.dimension_semantics<parallel>, #tpu.dimension_semantics<arbitrary>], iteration_bounds = array<i64: 1, 1, 1>, scalar_prefetch = 0 : i64, scratch_operands = 1 : i64, tpu.core_type = #tpu.core_type<tc>, window_params = [{transform_indices = @transform_0, window_bounds = array<i64: 32, 128>}, {transform_indices = @transform_1, window_bounds = array<i64: 128, 128>}, {transform_indices = @transform_2, window_bounds = array<i64: 1, 128>}, {transform_indices = @transform_3, window_bounds = array<i64: 32, 128>}]} {
    %c0_i32 = arith.constant 0 : i32
    %0 = arith.cmpi eq, %arg2, %c0_i32 : i32
    %1 = arith.extui %0 : i1 to i32
    %c0_i32_0 = arith.constant 0 : i32
    %2 = arith.cmpi ne, %1, %c0_i32_0 : i32
    scf.if %2 {
      %cst_10 = arith.constant 0.000000e+00 : f32
      %12 = vector.broadcast %cst_10 : f32 to vector<32x128xf32>
      %c0_11 = arith.constant 0 : index
      %c0_12 = arith.constant 0 : index
      %13 = vector.load %arg7[%c0_11, %c0_12] : memref<32x128xf32, #tpu.memory_space<vmem>>, vector<32x128xf32>
      tpu.vector_store %arg7[%c0_11, %c0_12], %12 {strides = array<i32>} : memref<32x128xf32, #tpu.memory_space<vmem>>, vector<32x128xf32>,
    } else {
    }
    %c0 = arith.constant 0 : index
    %c0_1 = arith.constant 0 : index
    %3 = vector.load %arg7[%c0, %c0_1] : memref<32x128xf32, #tpu.memory_space<vmem>>, vector<32x128xf32>
    %c0_2 = arith.constant 0 : index
    %c0_3 = arith.constant 0 : index
    %4 = vector.load %arg3[%c0_2, %c0_3] : memref<32x128xbf16, #tpu.memory_space<vmem>>, vector<32x128xbf16>
    %c0_4 = arith.constant 0 : index
    %c0_5 = arith.constant 0 : index
    %5 = vector.load %arg4[%c0_4, %c0_5] : memref<128x128xbf16, #tpu.memory_space<vmem>>, vector<128x128xbf16>
    %cst = arith.constant dense<0.000000e+00> : vector<32x128xf32>
    %6 = tpu.matmul %4, %5, %cst {dimension_numbers = #tpu.dot_dimension_numbers<[1], [0], [0], [1], [0, 0, 1, 1], [], []>} : vector<32x128xbf16>, vector<128x128xbf16>, vector<32x128xf32> -> vector<32x128xf32>
    %7 = arith.addf %3, %6 : vector<32x128xf32>
    %c0_6 = arith.constant 0 : index
    %c0_7 = arith.constant 0 : index
    %8 = vector.load %arg7[%c0_6, %c0_7] : memref<32x128xf32, #tpu.memory_space<vmem>>, vector<32x128xf32>
    tpu.vector_store %arg7[%c0_6, %c0_7], %7 {strides = array<i32>} : memref<32x128xf32, #tpu.memory_space<vmem>>, vector<32x128xf32>,
    %c0_i32_8 = arith.constant 0 : i32
    %9 = arith.cmpi eq, %arg2, %c0_i32_8 : i32
    %10 = arith.extui %9 : i1 to i32
    %c0_i32_9 = arith.constant 0 : i32
    %11 = arith.cmpi ne, %10, %c0_i32_9 : i32
    scf.if %11 {
      %c0_10 = arith.constant 0 : index
      %c0_11 = arith.constant 0 : index
      %12 = vector.load %arg7[%c0_10, %c0_11] : memref<32x128xf32, #tpu.memory_space<vmem>>, vector<32x128xf32>
      %c0_12 = arith.constant 0 : index
      %c0_13 = arith.constant 0 : index
      %13 = vector.load %arg5[%c0_12, %c0_13] : memref<1x128xf32, #tpu.memory_space<vmem>>, vector<1x128xf32>
      %14 = vector.broadcast %13 : vector<1x128xf32> to vector<32x128xf32>
      %15 = arith.addf %12, %14 : vector<32x128xf32>
      %cst_14 = arith.constant 0.000000e+00 : f32
      %16 = vector.broadcast %cst_14 : f32 to vector<32x128xf32>
      %17 = arith.maximumf %15, %16 : vector<32x128xf32>
      %18 = arith.truncf %17 : vector<32x128xf32> to vector<32x128xbf16>
      %c0_15 = arith.constant 0 : index
      %c0_16 = arith.constant 0 : index
      %19 = vector.load %arg6[%c0_15, %c0_16] : memref<32x128xbf16, #tpu.memory_space<vmem>>, vector<32x128xbf16>
      tpu.vector_store %arg6[%c0_15, %c0_16], %18 {strides = array<i32>} : memref<32x128xbf16, #tpu.memory_space<vmem>>, vector<32x128xbf16>,
    } else {
    }
    return
  }
  func.func @transform_0(%arg0: i32, %arg1: i32, %arg2: i32) -> (i32, i32) {
    %c0_i32 = arith.constant 0 : i32
    return %arg0, %arg2 : i32, i32
  }
  func.func @transform_1(%arg0: i32, %arg1: i32, %arg2: i32) -> (i32, i32) {
    %c0_i32 = arith.constant 0 : i32
    return %arg2, %arg1 : i32, i32
  }
  func.func @transform_2(%arg0: i32, %arg1: i32, %arg2: i32) -> (i32, i32) {
    %c0_i32 = arith.constant 0 : i32
    %c0_i32_0 = arith.constant 0 : i32
    return %c0_i32, %arg1 : i32, i32
  }
  func.func @transform_3(%arg0: i32, %arg1: i32, %arg2: i32) -> (i32, i32) {
    %c0_i32 = arith.constant 0 : i32
    return %arg0, %arg1 : i32, i32
  }
}

module attributes {stable_mosaic.version = 11 : i64} {
  func.func @_matmul_kernel(%arg0: i32, %arg1: i32, %arg2: i32, %arg3: memref<32x128xbf16, #tpu.memory_space<vmem>>, %arg4: memref<128x128xbf16, #tpu.memory_space<vmem>>, %arg5: memref<1x128xf32, #tpu.memory_space<vmem>>, %arg6: memref<32x128xf32, #tpu.memory_space<vmem>>, %arg7: memref<32x128xf32, #tpu.memory_space<vmem>>) attributes {dimension_semantics = [#tpu.dimension_semantics<parallel>, #tpu.dimension_semantics<parallel>, #tpu.dimension_semantics<arbitrary>], iteration_bounds = array<i64: 1, 1, 1>, scalar_prefetch = 0 : i64, scratch_operands = 1 : i64, tpu.core_type = #tpu.core_type<tc>, window_params = [{transform_indices = @transform_0, window_bounds = array<i64: 32, 128>}, {transform_indices = @transform_1, window_bounds = array<i64: 128, 128>}, {transform_indices = @transform_2, window_bounds = array<i64: 1, 128>}, {transform_indices = @transform_3, window_bounds = array<i64: 32, 128>}]} {
    %c0_i32 = arith.constant 0 : i32
    %0 = arith.cmpi eq, %arg2, %c0_i32 : i32
    %1 = arith.extui %0 : i1 to i32
    %c0_i32_0 = arith.constant 0 : i32
    %2 = arith.cmpi ne, %1, %c0_i32_0 : i32
    scf.if %2 {
      %cst_10 = arith.constant 0.000000e+00 : f32
      %12 = vector.broadcast %cst_10 : f32 to vector<32x128xf32>
      %c0_11 = arith.constant 0 : index
      %c0_12 = arith.constant 0 : index
      %13 = vector.load %arg7[%c0_11, %c0_12] : memref<32x128xf32, #tpu.memory_space<vmem>>, vector<32x128xf32>
      tpu.vector_store %arg7[%c0_11, %c0_12], %12 {strides = array<i32>} : memref<32x128xf32, #tpu.memory_space<vmem>>, vector<32x128xf32>,
    } else {
    }
    %c0 = arith.constant 0 : index
    %c0_1 = arith.constant 0 : index
    %3 = vector.load %arg7[%c0, %c0_1] : memref<32x128xf32, #tpu.memory_space<vmem>>, vector<32x128xf32>
    %c0_2 = arith.constant 0 : index
    %c0_3 = arith.constant 0 : index
    %4 = vector.load %arg3[%c0_2, %c0_3] : memref<32x128xbf16, #tpu.memory_space<vmem>>, vector<32x128xbf16>
    %c0_4 = arith.constant 0 : index
    %c0_5 = arith.constant 0 : index
    %5 = vector.load %arg4[%c0_4, %c0_5] : memref<128x128xbf16, #tpu.memory_space<vmem>>, vector<128x128xbf16>
    %cst = arith.constant dense<0.000000e+00> : vector<32x128xf32>
    %6 = tpu.matmul %4, %5, %cst {dimension_numbers = #tpu.dot_dimension_numbers<[1], [0], [0], [1], [0, 0, 1, 1], [], []>} : vector<32x128xbf16>, vector<128x128xbf16>, vector<32x128xf32> -> vector<32x128xf32>
    %7 = arith.addf %3, %6 : vector<32x128xf32>
    %c0_6 = arith.constant 0 : index
    %c0_7 = arith.constant 0 : index
    %8 = vector.load %arg7[%c0_6, %c0_7] : memref<32x128xf32, #tpu.memory_space<vmem>>, vector<32x128xf32>
    tpu.vector_store %arg7[%c0_6, %c0_7], %7 {strides = array<i32>} : memref<32x128xf32, #tpu.memory_space<vmem>>, vector<32x128xf32>,
    %c0_i32_8 = arith.constant 0 : i32
    %9 = arith.cmpi eq, %arg2, %c0_i32_8 : i32
    %10 = arith.extui %9 : i1 to i32
    %c0_i32_9 = arith.constant 0 : i32
    %11 = arith.cmpi ne, %10, %c0_i32_9 : i32
    scf.if %11 {
      %c0_10 = arith.constant 0 : index
      %c0_11 = arith.constant 0 : index
      %12 = vector.load %arg7[%c0_10, %c0_11] : memref<32x128xf32, #tpu.memory_space<vmem>>, vector<32x128xf32>
      %c0_12 = arith.constant 0 : index
      %c0_13 = arith.constant 0 : index
      %13 = vector.load %arg5[%c0_12, %c0_13] : memref<1x128xf32, #tpu.memory_space<vmem>>, vector<1x128xf32>
      %14 = vector.broadcast %13 : vector<1x128xf32> to vector<32x128xf32>
      %15 = arith.addf %12, %14 : vector<32x128xf32>
      %c0_14 = arith.constant 0 : index
      %c0_15 = arith.constant 0 : index
      %16 = vector.load %arg6[%c0_14, %c0_15] : memref<32x128xf32, #tpu.memory_space<vmem>>, vector<32x128xf32>
      tpu.vector_store %arg6[%c0_14, %c0_15], %15 {strides = array<i32>} : memref<32x128xf32, #tpu.memory_space<vmem>>, vector<32x128xf32>,
    } else {
    }
    return
  }
  func.func @transform_0(%arg0: i32, %arg1: i32, %arg2: i32) -> (i32, i32) {
    %c0_i32 = arith.constant 0 : i32
    return %arg0, %arg2 : i32, i32
  }
  func.func @transform_1(%arg0: i32, %arg1: i32, %arg2: i32) -> (i32, i32) {
    %c0_i32 = arith.constant 0 : i32
    return %arg2, %arg1 : i32, i32
  }
  func.func @transform_2(%arg0: i32, %arg1: i32, %arg2: i32) -> (i32, i32) {
    %c0_i32 = arith.constant 0 : i32
    %c0_i32_0 = arith.constant 0 : i32
    return %c0_i32, %arg1 : i32, i32
  }
  func.func @transform_3(%arg0: i32, %arg1: i32, %arg2: i32) -> (i32, i32) {
    %c0_i32 = arith.constant 0 : i32
    return %arg0, %arg1 : i32, i32
  }
}

module attributes {stable_mosaic.version = 11 : i64} {
  func.func @_gumbel_codebook_kernel(%arg0: i32, %arg1: memref<32x128xf32, #tpu.memory_space<vmem>>, %arg2: memref<32x128xf32, #tpu.memory_space<vmem>>, %arg3: memref<128x128xbf16, #tpu.memory_space<vmem>>, %arg4: memref<32x128xf32, #tpu.memory_space<vmem>>) attributes {dimension_semantics = [#tpu.dimension_semantics<parallel>], iteration_bounds = array<i64: 1>, scalar_prefetch = 0 : i64, scratch_operands = 0 : i64, tpu.core_type = #tpu.core_type<tc>, window_params = [{transform_indices = @transform_0, window_bounds = array<i64: 32, 128>}, {transform_indices = @transform_1, window_bounds = array<i64: 32, 128>}, {pipeline_mode = #tpu.pipeline_mode<synchronous>, transform_indices = @transform_2, window_bounds = array<i64: 128, 128>}, {transform_indices = @transform_3, window_bounds = array<i64: 32, 128>}]} {
    %c0 = arith.constant 0 : index
    %c0_0 = arith.constant 0 : index
    %0 = vector.load %arg1[%c0, %c0_0] : memref<32x128xf32, #tpu.memory_space<vmem>>, vector<32x128xf32>
    %c0_1 = arith.constant 0 : index
    %c0_2 = arith.constant 0 : index
    %1 = vector.load %arg2[%c0_1, %c0_2] : memref<32x128xf32, #tpu.memory_space<vmem>>, vector<32x128xf32>
    %2 = arith.addf %0, %1 : vector<32x128xf32>
    %cst = arith.constant 1.11111116 : f32
    %3 = vector.broadcast %cst : f32 to vector<32x128xf32>
    %4 = arith.mulf %2, %3 : vector<32x128xf32>
    %5 = tpu.iota {dimensions = array<i32: 1>} : vector<32x128xi32>
    %c16_i32 = arith.constant 16 : i32
    %6 = vector.broadcast %c16_i32 : i32 to vector<32x128xi32>
    %7 = arith.cmpi slt, %5, %6 : vector<32x128xi32>
    %cst_3 = arith.constant -1.000000e+30 : f32
    %8 = vector.broadcast %cst_3 : f32 to vector<32x128xf32>
    %9 = arith.select %7, %4, %8 : vector<32x128xi1>, vector<32x128xf32>
    %cst_4 = arith.constant dense<0xFF800000> : vector<32xf32>
    %10 = vector.multi_reduction <maximumf>, %9, %cst_4 [1] : vector<32x128xf32> to vector<32xf32>
    %11 = vector.shape_cast %10 : vector<32xf32> to vector<32x1xf32>
    %12 = vector.broadcast %11 : vector<32x1xf32> to vector<32x128xf32>
    %13 = arith.subf %9, %12 : vector<32x128xf32>
    %14 = math.exp %13 : vector<32x128xf32>
    %cst_5 = arith.constant dense<0.000000e+00> : vector<32xf32>
    %15 = vector.multi_reduction <add>, %14, %cst_5 [1] : vector<32x128xf32> to vector<32xf32>
    %16 = vector.shape_cast %15 : vector<32xf32> to vector<32x1xf32>
    %17 = tpu.reciprocal %16 {approx = true} : vector<32x1xf32> -> vector<32x1xf32>
    %18 = vector.broadcast %17 : vector<32x1xf32> to vector<32x128xf32>
    %19 = arith.mulf %14, %18 : vector<32x128xf32>
    %20 = arith.truncf %19 : vector<32x128xf32> to vector<32x128xbf16>
    %c0_6 = arith.constant 0 : index
    %c0_7 = arith.constant 0 : index
    %21 = vector.load %arg3[%c0_6, %c0_7] : memref<128x128xbf16, #tpu.memory_space<vmem>>, vector<128x128xbf16>
    %cst_8 = arith.constant dense<0.000000e+00> : vector<32x128xf32>
    %22 = tpu.matmul %20, %21, %cst_8 {dimension_numbers = #tpu.dot_dimension_numbers<[1], [0], [0], [1], [0, 0, 1, 1], [], []>} : vector<32x128xbf16>, vector<128x128xbf16>, vector<32x128xf32> -> vector<32x128xf32>
    %c0_9 = arith.constant 0 : index
    %c0_10 = arith.constant 0 : index
    %23 = vector.load %arg4[%c0_9, %c0_10] : memref<32x128xf32, #tpu.memory_space<vmem>>, vector<32x128xf32>
    tpu.vector_store %arg4[%c0_9, %c0_10], %22 {strides = array<i32>} : memref<32x128xf32, #tpu.memory_space<vmem>>, vector<32x128xf32>,
    return
  }
  func.func @transform_0(%arg0: i32) -> (i32, i32) {
    %c0_i32 = arith.constant 0 : i32
    %c0_i32_0 = arith.constant 0 : i32
    return %arg0, %c0_i32 : i32, i32
  }
  func.func @transform_1(%arg0: i32) -> (i32, i32) {
    %c0_i32 = arith.constant 0 : i32
    %c0_i32_0 = arith.constant 0 : i32
    return %arg0, %c0_i32 : i32, i32
  }
  func.func @transform_2(%arg0: i32) -> (i32, i32) {
    %c0_i32 = arith.constant 0 : i32
    %c0_i32_0 = arith.constant 0 : i32
    %c0_i32_1 = arith.constant 0 : i32
    return %c0_i32, %c0_i32_0 : i32, i32
  }
  func.func @transform_3(%arg0: i32) -> (i32, i32) {
    %c0_i32 = arith.constant 0 : i32
    %c0_i32_0 = arith.constant 0 : i32
    return %arg0, %c0_i32 : i32, i32
  }
}

module attributes {stable_mosaic.version = 11 : i64} {
  func.func @_matmul_kernel(%arg0: i32, %arg1: i32, %arg2: i32, %arg3: memref<32x256xbf16, #tpu.memory_space<vmem>>, %arg4: memref<256x128xbf16, #tpu.memory_space<vmem>>, %arg5: memref<1x128xf32, #tpu.memory_space<vmem>>, %arg6: memref<32x128xbf16, #tpu.memory_space<vmem>>, %arg7: memref<32x128xf32, #tpu.memory_space<vmem>>) attributes {dimension_semantics = [#tpu.dimension_semantics<parallel>, #tpu.dimension_semantics<parallel>, #tpu.dimension_semantics<arbitrary>], iteration_bounds = array<i64: 1, 1, 1>, scalar_prefetch = 0 : i64, scratch_operands = 1 : i64, tpu.core_type = #tpu.core_type<tc>, window_params = [{transform_indices = @transform_0, window_bounds = array<i64: 32, 256>}, {transform_indices = @transform_1, window_bounds = array<i64: 256, 128>}, {transform_indices = @transform_2, window_bounds = array<i64: 1, 128>}, {transform_indices = @transform_3, window_bounds = array<i64: 32, 128>}]} {
    %c0_i32 = arith.constant 0 : i32
    %0 = arith.cmpi eq, %arg2, %c0_i32 : i32
    %1 = arith.extui %0 : i1 to i32
    %c0_i32_0 = arith.constant 0 : i32
    %2 = arith.cmpi ne, %1, %c0_i32_0 : i32
    scf.if %2 {
      %cst_10 = arith.constant 0.000000e+00 : f32
      %12 = vector.broadcast %cst_10 : f32 to vector<32x128xf32>
      %c0_11 = arith.constant 0 : index
      %c0_12 = arith.constant 0 : index
      %13 = vector.load %arg7[%c0_11, %c0_12] : memref<32x128xf32, #tpu.memory_space<vmem>>, vector<32x128xf32>
      tpu.vector_store %arg7[%c0_11, %c0_12], %12 {strides = array<i32>} : memref<32x128xf32, #tpu.memory_space<vmem>>, vector<32x128xf32>,
    } else {
    }
    %c0 = arith.constant 0 : index
    %c0_1 = arith.constant 0 : index
    %3 = vector.load %arg7[%c0, %c0_1] : memref<32x128xf32, #tpu.memory_space<vmem>>, vector<32x128xf32>
    %c0_2 = arith.constant 0 : index
    %c0_3 = arith.constant 0 : index
    %4 = vector.load %arg3[%c0_2, %c0_3] : memref<32x256xbf16, #tpu.memory_space<vmem>>, vector<32x256xbf16>
    %c0_4 = arith.constant 0 : index
    %c0_5 = arith.constant 0 : index
    %5 = vector.load %arg4[%c0_4, %c0_5] : memref<256x128xbf16, #tpu.memory_space<vmem>>, vector<256x128xbf16>
    %cst = arith.constant dense<0.000000e+00> : vector<32x128xf32>
    %6 = tpu.matmul %4, %5, %cst {dimension_numbers = #tpu.dot_dimension_numbers<[1], [0], [0], [1], [0, 0, 1, 1], [], []>} : vector<32x256xbf16>, vector<256x128xbf16>, vector<32x128xf32> -> vector<32x128xf32>
    %7 = arith.addf %3, %6 : vector<32x128xf32>
    %c0_6 = arith.constant 0 : index
    %c0_7 = arith.constant 0 : index
    %8 = vector.load %arg7[%c0_6, %c0_7] : memref<32x128xf32, #tpu.memory_space<vmem>>, vector<32x128xf32>
    tpu.vector_store %arg7[%c0_6, %c0_7], %7 {strides = array<i32>} : memref<32x128xf32, #tpu.memory_space<vmem>>, vector<32x128xf32>,
    %c0_i32_8 = arith.constant 0 : i32
    %9 = arith.cmpi eq, %arg2, %c0_i32_8 : i32
    %10 = arith.extui %9 : i1 to i32
    %c0_i32_9 = arith.constant 0 : i32
    %11 = arith.cmpi ne, %10, %c0_i32_9 : i32
    scf.if %11 {
      %c0_10 = arith.constant 0 : index
      %c0_11 = arith.constant 0 : index
      %12 = vector.load %arg7[%c0_10, %c0_11] : memref<32x128xf32, #tpu.memory_space<vmem>>, vector<32x128xf32>
      %c0_12 = arith.constant 0 : index
      %c0_13 = arith.constant 0 : index
      %13 = vector.load %arg5[%c0_12, %c0_13] : memref<1x128xf32, #tpu.memory_space<vmem>>, vector<1x128xf32>
      %14 = vector.broadcast %13 : vector<1x128xf32> to vector<32x128xf32>
      %15 = arith.addf %12, %14 : vector<32x128xf32>
      %cst_14 = arith.constant 0.000000e+00 : f32
      %16 = vector.broadcast %cst_14 : f32 to vector<32x128xf32>
      %17 = arith.maximumf %15, %16 : vector<32x128xf32>
      %18 = arith.truncf %17 : vector<32x128xf32> to vector<32x128xbf16>
      %c0_15 = arith.constant 0 : index
      %c0_16 = arith.constant 0 : index
      %19 = vector.load %arg6[%c0_15, %c0_16] : memref<32x128xbf16, #tpu.memory_space<vmem>>, vector<32x128xbf16>
      tpu.vector_store %arg6[%c0_15, %c0_16], %18 {strides = array<i32>} : memref<32x128xbf16, #tpu.memory_space<vmem>>, vector<32x128xbf16>,
    } else {
    }
    return
  }
  func.func @transform_0(%arg0: i32, %arg1: i32, %arg2: i32) -> (i32, i32) {
    %c0_i32 = arith.constant 0 : i32
    return %arg0, %arg2 : i32, i32
  }
  func.func @transform_1(%arg0: i32, %arg1: i32, %arg2: i32) -> (i32, i32) {
    %c0_i32 = arith.constant 0 : i32
    return %arg2, %arg1 : i32, i32
  }
  func.func @transform_2(%arg0: i32, %arg1: i32, %arg2: i32) -> (i32, i32) {
    %c0_i32 = arith.constant 0 : i32
    %c0_i32_0 = arith.constant 0 : i32
    return %c0_i32, %arg1 : i32, i32
  }
  func.func @transform_3(%arg0: i32, %arg1: i32, %arg2: i32) -> (i32, i32) {
    %c0_i32 = arith.constant 0 : i32
    return %arg0, %arg1 : i32, i32
  }
}

module attributes {stable_mosaic.version = 11 : i64} {
  func.func @_matmul_kernel(%arg0: i32, %arg1: i32, %arg2: i32, %arg3: memref<512x128xbf16, #tpu.memory_space<vmem>>, %arg4: memref<128x128xbf16, #tpu.memory_space<vmem>>, %arg5: memref<1x128xf32, #tpu.memory_space<vmem>>, %arg6: memref<512x128xf32, #tpu.memory_space<vmem>>, %arg7: memref<512x128xf32, #tpu.memory_space<vmem>>) attributes {dimension_semantics = [#tpu.dimension_semantics<parallel>, #tpu.dimension_semantics<parallel>, #tpu.dimension_semantics<arbitrary>], iteration_bounds = array<i64: 1, 1, 1>, scalar_prefetch = 0 : i64, scratch_operands = 1 : i64, tpu.core_type = #tpu.core_type<tc>, window_params = [{transform_indices = @transform_0, window_bounds = array<i64: 512, 128>}, {transform_indices = @transform_1, window_bounds = array<i64: 128, 128>}, {transform_indices = @transform_2, window_bounds = array<i64: 1, 128>}, {transform_indices = @transform_3, window_bounds = array<i64: 512, 128>}]} {
    %c0_i32 = arith.constant 0 : i32
    %0 = arith.cmpi eq, %arg2, %c0_i32 : i32
    %1 = arith.extui %0 : i1 to i32
    %c0_i32_0 = arith.constant 0 : i32
    %2 = arith.cmpi ne, %1, %c0_i32_0 : i32
    scf.if %2 {
      %cst_10 = arith.constant 0.000000e+00 : f32
      %12 = vector.broadcast %cst_10 : f32 to vector<512x128xf32>
      %c0_11 = arith.constant 0 : index
      %c0_12 = arith.constant 0 : index
      %13 = vector.load %arg7[%c0_11, %c0_12] : memref<512x128xf32, #tpu.memory_space<vmem>>, vector<512x128xf32>
      tpu.vector_store %arg7[%c0_11, %c0_12], %12 {strides = array<i32>} : memref<512x128xf32, #tpu.memory_space<vmem>>, vector<512x128xf32>,
    } else {
    }
    %c0 = arith.constant 0 : index
    %c0_1 = arith.constant 0 : index
    %3 = vector.load %arg7[%c0, %c0_1] : memref<512x128xf32, #tpu.memory_space<vmem>>, vector<512x128xf32>
    %c0_2 = arith.constant 0 : index
    %c0_3 = arith.constant 0 : index
    %4 = vector.load %arg3[%c0_2, %c0_3] : memref<512x128xbf16, #tpu.memory_space<vmem>>, vector<512x128xbf16>
    %c0_4 = arith.constant 0 : index
    %c0_5 = arith.constant 0 : index
    %5 = vector.load %arg4[%c0_4, %c0_5] : memref<128x128xbf16, #tpu.memory_space<vmem>>, vector<128x128xbf16>
    %cst = arith.constant dense<0.000000e+00> : vector<512x128xf32>
    %6 = tpu.matmul %4, %5, %cst {dimension_numbers = #tpu.dot_dimension_numbers<[1], [0], [0], [1], [0, 0, 1, 1], [], []>} : vector<512x128xbf16>, vector<128x128xbf16>, vector<512x128xf32> -> vector<512x128xf32>
    %7 = arith.addf %3, %6 : vector<512x128xf32>
    %c0_6 = arith.constant 0 : index
    %c0_7 = arith.constant 0 : index
    %8 = vector.load %arg7[%c0_6, %c0_7] : memref<512x128xf32, #tpu.memory_space<vmem>>, vector<512x128xf32>
    tpu.vector_store %arg7[%c0_6, %c0_7], %7 {strides = array<i32>} : memref<512x128xf32, #tpu.memory_space<vmem>>, vector<512x128xf32>,
    %c0_i32_8 = arith.constant 0 : i32
    %9 = arith.cmpi eq, %arg2, %c0_i32_8 : i32
    %10 = arith.extui %9 : i1 to i32
    %c0_i32_9 = arith.constant 0 : i32
    %11 = arith.cmpi ne, %10, %c0_i32_9 : i32
    scf.if %11 {
      %c0_10 = arith.constant 0 : index
      %c0_11 = arith.constant 0 : index
      %12 = vector.load %arg7[%c0_10, %c0_11] : memref<512x128xf32, #tpu.memory_space<vmem>>, vector<512x128xf32>
      %c0_12 = arith.constant 0 : index
      %c0_13 = arith.constant 0 : index
      %13 = vector.load %arg5[%c0_12, %c0_13] : memref<1x128xf32, #tpu.memory_space<vmem>>, vector<1x128xf32>
      %14 = vector.broadcast %13 : vector<1x128xf32> to vector<512x128xf32>
      %15 = arith.addf %12, %14 : vector<512x128xf32>
      %c0_14 = arith.constant 0 : index
      %c0_15 = arith.constant 0 : index
      %16 = vector.load %arg6[%c0_14, %c0_15] : memref<512x128xf32, #tpu.memory_space<vmem>>, vector<512x128xf32>
      tpu.vector_store %arg6[%c0_14, %c0_15], %15 {strides = array<i32>} : memref<512x128xf32, #tpu.memory_space<vmem>>, vector<512x128xf32>,
    } else {
    }
    return
  }
  func.func @transform_0(%arg0: i32, %arg1: i32, %arg2: i32) -> (i32, i32) {
    %c0_i32 = arith.constant 0 : i32
    return %arg0, %arg2 : i32, i32
  }
  func.func @transform_1(%arg0: i32, %arg1: i32, %arg2: i32) -> (i32, i32) {
    %c0_i32 = arith.constant 0 : i32
    return %arg2, %arg1 : i32, i32
  }
  func.func @transform_2(%arg0: i32, %arg1: i32, %arg2: i32) -> (i32, i32) {
    %c0_i32 = arith.constant 0 : i32
    %c0_i32_0 = arith.constant 0 : i32
    return %c0_i32, %arg1 : i32, i32
  }
  func.func @transform_3(%arg0: i32, %arg1: i32, %arg2: i32) -> (i32, i32) {
    %c0_i32 = arith.constant 0 : i32
    return %arg0, %arg1 : i32, i32
  }
}

</mosaic_0001>

<llo_original>
// kernel: discrete_vae_forward.7
$region0: #{discrete_vae_forward.7}
  #allocation0 [shape = 'u32[]', space=smem, size = 0x4, offset = 0x4, fixed_abs, tag = 'smem constant byte address 0x4 - core index']
  #allocation1 [shape = 'u32[144,128]{1,0:T(1,128)}', space=vmem, size = 0x12000, scoped, tag = 'internal scratch']
  #allocation2 [shape = 'f32[128,128]{1,0:T(8,128)}', space=vmem, size = 0x10000, scoped, tag = 'scratch operand']
  %s0 = inlined_call_operand.vmem [shape: bf16[128,128], index: 0, kind: input, shape index: {}]
  %s1 = inlined_call_operand.vmem [shape: bf16[128,128], index: 1, kind: input, shape index: {}]
  %s2 = inlined_call_operand.vmem [shape: f32[1,128], index: 2, kind: input, shape index: {}]
  %s3 = inlined_call_operand.vmem [shape: bf16[128,128], index: 3, kind: output, shape index: {}]
  %s4 = sld [smem:[#allocation0]]
  $region30: #{discrete_vae_forward.7} parent=0
    _
  %s6 = ssub.s32 1, %s4
  %s7 = scalar_select 0, %s6, %s4
  // Predicated region
  $region2: #{discrete_vae_forward.7} parent=0 // pred_check
    _
  $region3: #{discrete_vae_forward.7} parent=0 // pred_check_branch
    %9 = sbr.rel (0) target = $region5
  $region4: #{discrete_vae_forward.7} parent=0 // pred_region
    _
  $region5: #{discrete_vae_forward.7} parent=0 // pred_fallthru
    _
  // Predicated region
  $region6: #{discrete_vae_forward.7} parent=0 // pred_check
    _
  $region7: #{discrete_vae_forward.7} parent=0 // pred_check_branch
    %11 = sbr.rel (0) target = $region9
  $region8: #{discrete_vae_forward.7} parent=0 // pred_region
    _
  $region9: #{discrete_vae_forward.7} parent=0 // pred_fallthru
    _
  // Predicated region
  $region10: #{discrete_vae_forward.7} parent=0 // pred_check
    _
  $region11: #{discrete_vae_forward.7} parent=0 // pred_check_branch
    %13 = sbr.rel (0) target = $region13
  $region12: #{discrete_vae_forward.7} parent=0 // pred_region
    _
  $region13: #{discrete_vae_forward.7} parent=0 // pred_fallthru
    _
  %p15 = scmp.eq.s32.totalorder 0, 0
  // Predicated region
  $region14: #{discrete_vae_forward.7} parent=0 // pred_check
    %p16 = pneg %p15
  $region15: #{discrete_vae_forward.7} parent=0 // pred_check_branch
    %18 = sbr.rel (%p16) target = $region17
  $region16: #{discrete_vae_forward.7} parent=0 // pred_region
    %19 = vst [vmem:[#allocation2] sm:$0xff] 0.0
    %20 = vst [vmem:[#allocation2 + $0x8] sm:$0xff] 0.0
    %21 = vst [vmem:[#allocation2 + $0x10] sm:$0xff] 0.0
    %22 = vst [vmem:[#allocation2 + $0x18] sm:$0xff] 0.0
    %23 = vst [vmem:[#allocation2 + $0x20] sm:$0xff] 0.0
    %24 = vst [vmem:[#allocation2 + $0x28] sm:$0xff] 0.0
    %25 = vst [vmem:[#allocation2 + $0x30] sm:$0xff] 0.0
    %26 = vst [vmem:[#allocation2 + $0x38] sm:$0xff] 0.0
    %27 = vst [vmem:[#allocation2 + $0x40] sm:$0xff] 0.0
    %28 = vst [vmem:[#allocation2 + $0x48] sm:$0xff] 0.0
    %29 = vst [vmem:[#allocation2 + $0x50] sm:$0xff] 0.0
    %30 = vst [vmem:[#allocation2 + $0x58] sm:$0xff] 0.0
    %31 = vst [vmem:[#allocation2 + $0x60] sm:$0xff] 0.0
    %32 = vst [vmem:[#allocation2 + $0x68] sm:$0xff] 0.0
    %33 = vst [vmem:[#allocation2 + $0x70] sm:$0xff] 0.0
    %34 = vst [vmem:[#allocation2 + $0x78] sm:$0xff] 0.0
  $region17: #{discrete_vae_forward.7} parent=0 // pred_fallthru
    _
  %v35 = vld [vmem:[#allocation2] sm:$0xff]
  %v36 = vld [vmem:[#allocation2 + $0x8] sm:$0xff]
  %v37 = vld [vmem:[#allocation2 + $0x10] sm:$0xff]
  %v38 = vld [vmem:[#allocation2 + $0x18] sm:$0xff]
  %v39 = vld [vmem:[#allocation2 + $0x20] sm:$0xff]
  %v40 = vld [vmem:[#allocation2 + $0x28] sm:$0xff]
  %v41 = vld [vmem:[#allocation2 + $0x30] sm:$0xff]
  %v42 = vld [vmem:[#allocation2 + $0x38] sm:$0xff]
  %v43 = vld [vmem:[#allocation2 + $0x40] sm:$0xff]
  %v44 = vld [vmem:[#allocation2 + $0x48] sm:$0xff]
  %v45 = vld [vmem:[#allocation2 + $0x50] sm:$0xff]
  %v46 = vld [vmem:[#allocation2 + $0x58] sm:$0xff]
  %v47 = vld [vmem:[#allocation2 + $0x60] sm:$0xff]
  %v48 = vld [vmem:[#allocation2 + $0x68] sm:$0xff]
  %v49 = vld [vmem:[#allocation2 + $0x70] sm:$0xff]
  %v50 = vld [vmem:[#allocation2 + $0x78] sm:$0xff]
  %v51 = vld [vmem:[%s0] sm:$0xf]
  %v52 = vld [vmem:[%s0 + $0x4] sm:$0xf]
  %v53 = vld [vmem:[%s0 + $0x8] sm:$0xf]
  %v54 = vld [vmem:[%s0 + $0xc] sm:$0xf]
  %v55 = vld [vmem:[%s0 + $0x10] sm:$0xf]
  %v56 = vld [vmem:[%s0 + $0x14] sm:$0xf]
  %v57 = vld [vmem:[%s0 + $0x18] sm:$0xf]
  %v58 = vld [vmem:[%s0 + $0x1c] sm:$0xf]
  %v59 = vld [vmem:[%s0 + $0x20] sm:$0xf]
  %v60 = vld [vmem:[%s0 + $0x24] sm:$0xf]
  %v61 = vld [vmem:[%s0 + $0x28] sm:$0xf]
  %v62 = vld [vmem:[%s0 + $0x2c] sm:$0xf]
  %v63 = vld [vmem:[%s0 + $0x30] sm:$0xf]
  %v64 = vld [vmem:[%s0 + $0x34] sm:$0xf]
  %v65 = vld [vmem:[%s0 + $0x38] sm:$0xf]
  %v66 = vld [vmem:[%s0 + $0x3c] sm:$0xf]
  %v67 = vld [vmem:[%s1] sm:$0xf]
  %v68 = vld [vmem:[%s1 + $0x4] sm:$0xf]
  %v69 = vld [vmem:[%s1 + $0x8] sm:$0xf]
  %v70 = vld [vmem:[%s1 + $0xc] sm:$0xf]
  %v71 = vld [vmem:[%s1 + $0x10] sm:$0xf]
  %v72 = vld [vmem:[%s1 + $0x14] sm:$0xf]
  %v73 = vld [vmem:[%s1 + $0x18] sm:$0xf]
  %v74 = vld [vmem:[%s1 + $0x1c] sm:$0xf]
  %v75 = vld [vmem:[%s1 + $0x20] sm:$0xf]
  %v76 = vld [vmem:[%s1 + $0x24] sm:$0xf]
  %v77 = vld [vmem:[%s1 + $0x28] sm:$0xf]
  %v78 = vld [vmem:[%s1 + $0x2c] sm:$0xf]
  %v79 = vld [vmem:[%s1 + $0x30] sm:$0xf]
  %v80 = vld [vmem:[%s1 + $0x34] sm:$0xf]
  %v81 = vld [vmem:[%s1 + $0x38] sm:$0xf]
  %v82 = vld [vmem:[%s1 + $0x3c] sm:$0xf]
  %v99 = vunpack.c.l.b16 %v51
  %v100 = vunpack.c.l.b16 %v52
  %v101 = vunpack.c.l.b16 %v53
  %v102 = vunpack.c.l.b16 %v54
  %v103 = vunpack.c.l.b16 %v55
  %v104 = vunpack.c.l.b16 %v56
  %v105 = vunpack.c.l.b16 %v57
  %v106 = vunpack.c.l.b16 %v58
  %v107 = vunpack.c.l.b16 %v59
  %v108 = vunpack.c.l.b16 %v60
  %v109 = vunpack.c.l.b16 %v61
  %v110 = vunpack.c.l.b16 %v62
  %v111 = vunpack.c.l.b16 %v63
  %v112 = vunpack.c.l.b16 %v64
  %v113 = vunpack.c.l.b16 %v65
  %v114 = vunpack.c.l.b16 %v66
  %v115 = vpack.c.b16 %v100, %v99
  %v116 = vpack.c.b16 %v102, %v101
  %v117 = vpack.c.b16 %v104, %v103
  %v118 = vpack.c.b16 %v106, %v105
  %v119 = vpack.c.b16 %v108, %v107
  %v120 = vpack.c.b16 %v110, %v109
  %v121 = vpack.c.b16 %v112, %v111
  %v122 = vpack.c.b16 %v114, %v113
  %v147 = vunpack.c.l.b16 %v67
  %v148 = vunpack.c.l.b16 %v68
  %v149 = vunpack.c.l.b16 %v69
  %v150 = vunpack.c.l.b16 %v70
  %v151 = vunpack.c.l.b16 %v71
  %v152 = vunpack.c.l.b16 %v72
  %v153 = vunpack.c.l.b16 %v73
  %v154 = vunpack.c.l.b16 %v74
  %v155 = vunpack.c.l.b16 %v75
  %v156 = vunpack.c.l.b16 %v76
  %v157 = vunpack.c.l.b16 %v77
  %v158 = vunpack.c.l.b16 %v78
  %v159 = vunpack.c.l.b16 %v79
  %v160 = vunpack.c.l.b16 %v80
  %v161 = vunpack.c.l.b16 %v81
  %v162 = vunpack.c.l.b16 %v82
  %v163 = vpack.c.b16 %v148, %v147
  %v164 = vpack.c.b16 %v150, %v149
  %v165 = vpack.c.b16 %v152, %v151
  %v166 = vpack.c.b16 %v154, %v153
  %v167 = vpack.c.b16 %v156, %v155
  %v168 = vpack.c.b16 %v158, %v157
  %v169 = vpack.c.b16 %v160, %v159
  %v170 = vpack.c.b16 %v162, %v161
  %179 = vmatprep.subr.bf16.mxu0 0
  %180 = vmatpush1.bf16.msra.mxu0 %v163
  %181 = vmatprep.subr.bf16.mxu0 0
  %182 = vmatpush1.bf16.msra.mxu0 %v164
  %183 = vmatprep.subr.bf16.mxu0 0
  %184 = vmatpush1.bf16.msra.mxu0 %v165
  %185 = vmatprep.subr.bf16.mxu0 0
  %186 = vmatpush1.bf16.msra.mxu0 %v166
  %187 = vmatprep.subr.bf16.mxu0 0
  %188 = vmatpush1.bf16.msra.mxu0 %v167
  %189 = vmatprep.subr.bf16.mxu0 0
  %190 = vmatpush1.bf16.msra.mxu0 %v168
  %191 = vmatprep.subr.bf16.mxu0 0
  %192 = vmatpush1.bf16.msra.mxu0 %v169
  %193 = vmatprep.subr.bf16.mxu0 0
  %194 = vmatpush1.bf16.msra.mxu0 %v170
  %195 = vmatprep.subr.bf16.mxu0 0
  %196 = vmatpush1.bf16.msra.mxu0 0
  %197 = vmatprep.subr.bf16.mxu0 0
  %198 = vmatpush1.bf16.msra.mxu0 0
  %199 = vmatprep.subr.bf16.mxu0 0
  %200 = vmatpush1.bf16.msra.mxu0 0
  %201 = vmatprep.subr.bf16.mxu0 0
  %202 = vmatpush1.bf16.msra.mxu0 0
  %203 = vmatprep.subr.bf16.mxu0 0
  %204 = vmatpush1.bf16.msra.mxu0 0
  %205 = vmatprep.subr.bf16.mxu0 0
  %206 = vmatpush1.bf16.msra.mxu0 0
  %207 = vmatprep.subr.bf16.mxu0 0
  %208 = vmatpush1.bf16.msra.mxu0 0
  %209 = vmatprep.subr.bf16.mxu0 0
  %210 = vmatpush1.bf16.msra.mxu0 0
  %211 = vmatprep.mubr.bf16.mxu0 0
  %212 = vmatmul.mubr.bf16.gmra.mrb[0].mxu0 %v115
  %v213 = vpop.f32.mrb[0].mxu0
  %v214 = vadd.f32 0.0, %v213
  %v215 = vpop.f32.mrb[0].mxu0
  %v216 = vpop.f32.mrb[0].mxu0
  %v217 = vadd.f32 0.0, %v216
  %v218 = vpop.f32.mrb[0].mxu0
  %219 = vmatprep.mubr.bf16.mxu0 0
  %220 = vmatmul.mubr.bf16.gmra.mrb[0].mxu0 %v116
  %v221 = vpop.f32.mrb[0].mxu0
  %v222 = vadd.f32 0.0, %v221
  %v223 = vpop.f32.mrb[0].mxu0
  %v224 = vpop.f32.mrb[0].mxu0
  %v225 = vadd.f32 0.0, %v224
  %v226 = vpop.f32.mrb[0].mxu0
  %227 = vmatprep.mubr.bf16.mxu0 0
  %228 = vmatmul.mubr.bf16.gmra.mrb[0].mxu0 %v117
  %v229 = vpop.f32.mrb[0].mxu0
  %v230 = vadd.f32 0.0, %v229
  %v231 = vpop.f32.mrb[0].mxu0
  %v232 = vpop.f32.mrb[0].mxu0
  %v233 = vadd.f32 0.0, %v232
  %v234 = vpop.f32.mrb[0].mxu0
  %235 = vmatprep.mubr.bf16.mxu0 0
  %236 = vmatmul.mubr.bf16.gmra.mrb[0].mxu0 %v118
  %v237 = vpop.f32.mrb[0].mxu0
  %v238 = vadd.f32 0.0, %v237
  %v239 = vpop.f32.mrb[0].mxu0
  %v240 = vpop.f32.mrb[0].mxu0
  %v241 = vadd.f32 0.0, %v240
  %v242 = vpop.f32.mrb[0].mxu0
  %243 = vmatprep.mubr.bf16.mxu0 0
  %244 = vmatmul.mubr.bf16.gmra.mrb[0].mxu0 %v119
  %v245 = vpop.f32.mrb[0].mxu0
  %v246 = vadd.f32 0.0, %v245
  %v247 = vpop.f32.mrb[0].mxu0
  %v248 = vpop.f32.mrb[0].mxu0
  %v249 = vadd.f32 0.0, %v248
  %v250 = vpop.f32.mrb[0].mxu0
  %251 = vmatprep.mubr.bf16.mxu0 0
  %252 = vmatmul.mubr.bf16.gmra.mrb[0].mxu0 %v120
  %v253 = vpop.f32.mrb[0].mxu0
  %v254 = vadd.f32 0.0, %v253
  %v255 = vpop.f32.mrb[0].mxu0
  %v256 = vpop.f32.mrb[0].mxu0
  %v257 = vadd.f32 0.0, %v256
  %v258 = vpop.f32.mrb[0].mxu0
  %259 = vmatprep.mubr.bf16.mxu0 0
  %260 = vmatmul.mubr.bf16.gmra.mrb[0].mxu0 %v121
  %v261 = vpop.f32.mrb[0].mxu0
  %v262 = vadd.f32 0.0, %v261
  %v263 = vpop.f32.mrb[0].mxu0
  %v264 = vpop.f32.mrb[0].mxu0
  %v265 = vadd.f32 0.0, %v264
  %v266 = vpop.f32.mrb[0].mxu0
  %267 = vmatprep.mubr.bf16.mxu0 0
  %268 = vmatmul.mubr.bf16.gmra.mrb[0].mxu0 %v122
  %v269 = vpop.f32.mrb[0].mxu0
  %v270 = vadd.f32 0.0, %v269
  %v271 = vpop.f32.mrb[0].mxu0
  %v272 = vpop.f32.mrb[0].mxu0
  %v273 = vadd.f32 0.0, %v272
  %v274 = vpop.f32.mrb[0].mxu0
  %275 = vdwg.mxu0
  %v276 = vadd.f32 %v35, %v214
  %v277 = vadd.f32 %v36, %v217
  %v278 = vadd.f32 %v37, %v222
  %v279 = vadd.f32 %v38, %v225
  %v280 = vadd.f32 %v39, %v230
  %v281 = vadd.f32 %v40, %v233
  %v282 = vadd.f32 %v41, %v238
  %v283 = vadd.f32 %v42, %v241
  %v284 = vadd.f32 %v43, %v246
  %v285 = vadd.f32 %v44, %v249
  %v286 = vadd.f32 %v45, %v254
  %v287 = vadd.f32 %v46, %v257
  %v288 = vadd.f32 %v47, %v262
  %v289 = vadd.f32 %v48, %v265
  %v290 = vadd.f32 %v49, %v270
  %v291 = vadd.f32 %v50, %v273
  %292 = vst [vmem:[#allocation2] sm:$0xff] %v276
  %293 = vst [vmem:[#allocation2 + $0x8] sm:$0xff] %v277
  %294 = vst [vmem:[#allocation2 + $0x10] sm:$0xff] %v278
  %295 = vst [vmem:[#allocation2 + $0x18] sm:$0xff] %v279
  %296 = vst [vmem:[#allocation2 + $0x20] sm:$0xff] %v280
  %297 = vst [vmem:[#allocation2 + $0x28] sm:$0xff] %v281
  %298 = vst [vmem:[#allocation2 + $0x30] sm:$0xff] %v282
  %299 = vst [vmem:[#allocation2 + $0x38] sm:$0xff] %v283
  %300 = vst [vmem:[#allocation2 + $0x40] sm:$0xff] %v284
  %301 = vst [vmem:[#allocation2 + $0x48] sm:$0xff] %v285
  %302 = vst [vmem:[#allocation2 + $0x50] sm:$0xff] %v286
  %303 = vst [vmem:[#allocation2 + $0x58] sm:$0xff] %v287
  %304 = vst [vmem:[#allocation2 + $0x60] sm:$0xff] %v288
  %305 = vst [vmem:[#allocation2 + $0x68] sm:$0xff] %v289
  %306 = vst [vmem:[#allocation2 + $0x70] sm:$0xff] %v290
  %307 = vst [vmem:[#allocation2 + $0x78] sm:$0xff] %v291
  // Predicated region
  $region18: #{discrete_vae_forward.7} parent=0 // pred_check
    %p308 = pneg %p15
  $region19: #{discrete_vae_forward.7} parent=0 // pred_check_branch
    %310 = sbr.rel (%p308) target = $region21
  $region20: #{discrete_vae_forward.7} parent=0 // pred_region
    %v311 = vld [vmem:[#allocation2] sm:$0xff]
    %v312 = vld [vmem:[#allocation2 + $0x8] sm:$0xff]
    %v313 = vld [vmem:[#allocation2 + $0x10] sm:$0xff]
    %v314 = vld [vmem:[#allocation2 + $0x18] sm:$0xff]
    %v315 = vld [vmem:[#allocation2 + $0x20] sm:$0xff]
    %v316 = vld [vmem:[#allocation2 + $0x28] sm:$0xff]
    %v317 = vld [vmem:[#allocation2 + $0x30] sm:$0xff]
    %v318 = vld [vmem:[#allocation2 + $0x38] sm:$0xff]
    %v319 = vld [vmem:[#allocation2 + $0x40] sm:$0xff]
    %v320 = vld [vmem:[#allocation2 + $0x48] sm:$0xff]
    %v321 = vld [vmem:[#allocation2 + $0x50] sm:$0xff]
    %v322 = vld [vmem:[#allocation2 + $0x58] sm:$0xff]
    %v323 = vld [vmem:[#allocation2 + $0x60] sm:$0xff]
    %v324 = vld [vmem:[#allocation2 + $0x68] sm:$0xff]
    %v325 = vld [vmem:[#allocation2 + $0x70] sm:$0xff]
    %v326 = vld [vmem:[#allocation2 + $0x78] sm:$0xff]
    %v327 = vld [vmem:[%s2] sm:$0x1]
    %v329 = vlaneseq
    %v330 = vshrl.u32 %v329, 7
    %v331 = vsub.s32 0, %v330
    %v332 = vrot.slane %v327, %v331
    %v334 = vadd.f32 %v311, %v332
    %v335 = vadd.f32 %v312, %v332
    %v336 = vadd.f32 %v313, %v332
    %v337 = vadd.f32 %v314, %v332
    %v338 = vadd.f32 %v315, %v332
    %v339 = vadd.f32 %v316, %v332
    %v340 = vadd.f32 %v317, %v332
    %v341 = vadd.f32 %v318, %v332
    %v342 = vadd.f32 %v319, %v332
    %v343 = vadd.f32 %v320, %v332
    %v344 = vadd.f32 %v321, %v332
    %v345 = vadd.f32 %v322, %v332
    %v346 = vadd.f32 %v323, %v332
    %v347 = vadd.f32 %v324, %v332
    %v348 = vadd.f32 %v325, %v332
    %v349 = vadd.f32 %v326, %v332
    %v350 = vmax.f32 %v334, 0.0
    %v351 = vmax.f32 %v335, 0.0
    %v352 = vmax.f32 %v336, 0.0
    %v353 = vmax.f32 %v337, 0.0
    %v354 = vmax.f32 %v338, 0.0
    %v355 = vmax.f32 %v339, 0.0
    %v356 = vmax.f32 %v340, 0.0
    %v357 = vmax.f32 %v341, 0.0
    %v358 = vmax.f32 %v342, 0.0
    %v359 = vmax.f32 %v343, 0.0
    %v360 = vmax.f32 %v344, 0.0
    %v361 = vmax.f32 %v345, 0.0
    %v362 = vmax.f32 %v346, 0.0
    %v363 = vmax.f32 %v347, 0.0
    %v364 = vmax.f32 %v348, 0.0
    %v365 = vmax.f32 %v349, 0.0
    %v366 = vpack.c.bf16 %v351, %v350
    %v367 = vpack.c.bf16 %v353, %v352
    %v368 = vpack.c.bf16 %v355, %v354
    %v369 = vpack.c.bf16 %v357, %v356
    %v370 = vpack.c.bf16 %v359, %v358
    %v371 = vpack.c.bf16 %v361, %v360
    %v372 = vpack.c.bf16 %v363, %v362
    %v373 = vpack.c.bf16 %v365, %v364
    %v382 = vunpack.c.l.b16 %v366
    %v383 = vunpack.c.h.b16 %v366
    %v384 = vunpack.c.l.b16 %v367
    %v385 = vunpack.c.h.b16 %v367
    %v386 = vunpack.c.l.b16 %v368
    %v387 = vunpack.c.h.b16 %v368
    %v388 = vunpack.c.l.b16 %v369
    %v389 = vunpack.c.h.b16 %v369
    %v390 = vunpack.c.l.b16 %v370
    %v391 = vunpack.c.h.b16 %v370
    %v392 = vunpack.c.l.b16 %v371
    %v393 = vunpack.c.h.b16 %v371
    %v394 = vunpack.c.l.b16 %v372
    %v395 = vunpack.c.h.b16 %v372
    %v396 = vunpack.c.l.b16 %v373
    %v397 = vunpack.c.h.b16 %v373
    %v398 = vpack.c.b16 %v382, %v382
    %v399 = vpack.c.b16 %v383, %v383
    %v400 = vpack.c.b16 %v384, %v384
    %v401 = vpack.c.b16 %v385, %v385
    %v402 = vpack.c.b16 %v386, %v386
    %v403 = vpack.c.b16 %v387, %v387
    %v404 = vpack.c.b16 %v388, %v388
    %v405 = vpack.c.b16 %v389, %v389
    %v406 = vpack.c.b16 %v390, %v390
    %v407 = vpack.c.b16 %v391, %v391
    %v408 = vpack.c.b16 %v392, %v392
    %v409 = vpack.c.b16 %v393, %v393
    %v410 = vpack.c.b16 %v394, %v394
    %v411 = vpack.c.b16 %v395, %v395
    %v412 = vpack.c.b16 %v396, %v396
    %v413 = vpack.c.b16 %v397, %v397
    %430 = vst [vmem:[%s3] sm:$0xf] %v398
    %431 = vst [vmem:[%s3 + $0x4] sm:$0xf] %v399
    %432 = vst [vmem:[%s3 + $0x8] sm:$0xf] %v400
    %433 = vst [vmem:[%s3 + $0xc] sm:$0xf] %v401
    %434 = vst [vmem:[%s3 + $0x10] sm:$0xf] %v402
    %435 = vst [vmem:[%s3 + $0x14] sm:$0xf] %v403
    %436 = vst [vmem:[%s3 + $0x18] sm:$0xf] %v404
    %437 = vst [vmem:[%s3 + $0x1c] sm:$0xf] %v405
    %438 = vst [vmem:[%s3 + $0x20] sm:$0xf] %v406
    %439 = vst [vmem:[%s3 + $0x24] sm:$0xf] %v407
    %440 = vst [vmem:[%s3 + $0x28] sm:$0xf] %v408
    %441 = vst [vmem:[%s3 + $0x2c] sm:$0xf] %v409
    %442 = vst [vmem:[%s3 + $0x30] sm:$0xf] %v410
    %443 = vst [vmem:[%s3 + $0x34] sm:$0xf] %v411
    %444 = vst [vmem:[%s3 + $0x38] sm:$0xf] %v412
    %445 = vst [vmem:[%s3 + $0x3c] sm:$0xf] %v413
  $region21: #{discrete_vae_forward.7} parent=0 // pred_fallthru
    _
  // Predicated region
  $region22: #{discrete_vae_forward.7} parent=0 // pred_check
    _
  $region23: #{discrete_vae_forward.7} parent=0 // pred_check_branch
    %447 = sbr.rel (0) target = $region25
  $region24: #{discrete_vae_forward.7} parent=0 // pred_region
    _
  $region25: #{discrete_vae_forward.7} parent=0 // pred_fallthru
    _
  // Predicated region
  $region26: #{discrete_vae_forward.7} parent=0 // pred_check
    _
  $region27: #{discrete_vae_forward.7} parent=0 // pred_check_branch
    %449 = sbr.rel (0) target = $region29
  $region28: #{discrete_vae_forward.7} parent=0 // pred_region
    _
  $region29: #{discrete_vae_forward.7} parent=0 // pred_fallthru
    _

// kernel: discrete_vae_forward.8
$region0: #{discrete_vae_forward.8}
  #allocation0 [shape = 'u32[]', space=smem, size = 0x4, offset = 0x4, fixed_abs, tag = 'smem constant byte address 0x4 - core index']
  #allocation1 [shape = 'u32[144,128]{1,0:T(1,128)}', space=vmem, size = 0x12000, scoped, tag = 'internal scratch']
  #allocation2 [shape = 'f32[32,128]{1,0:T(8,128)}', space=vmem, size = 0x4000, scoped, tag = 'scratch operand']
  %s0 = inlined_call_operand.vmem [shape: bf16[32,128], index: 0, kind: input, shape index: {}]
  %s1 = inlined_call_operand.vmem [shape: bf16[128,128], index: 1, kind: input, shape index: {}]
  %s2 = inlined_call_operand.vmem [shape: f32[1,128], index: 2, kind: input, shape index: {}]
  %s3 = inlined_call_operand.vmem [shape: bf16[32,128], index: 3, kind: output, shape index: {}]
  %s4 = sld [smem:[#allocation0]]
  $region30: #{discrete_vae_forward.8} parent=0
    _
  %s6 = ssub.s32 1, %s4
  %s7 = scalar_select 0, %s6, %s4
  // Predicated region
  $region2: #{discrete_vae_forward.8} parent=0 // pred_check
    _
  $region3: #{discrete_vae_forward.8} parent=0 // pred_check_branch
    %9 = sbr.rel (0) target = $region5
  $region4: #{discrete_vae_forward.8} parent=0 // pred_region
    _
  $region5: #{discrete_vae_forward.8} parent=0 // pred_fallthru
    _
  // Predicated region
  $region6: #{discrete_vae_forward.8} parent=0 // pred_check
    _
  $region7: #{discrete_vae_forward.8} parent=0 // pred_check_branch
    %11 = sbr.rel (0) target = $region9
  $region8: #{discrete_vae_forward.8} parent=0 // pred_region
    _
  $region9: #{discrete_vae_forward.8} parent=0 // pred_fallthru
    _
  // Predicated region
  $region10: #{discrete_vae_forward.8} parent=0 // pred_check
    _
  $region11: #{discrete_vae_forward.8} parent=0 // pred_check_branch
    %13 = sbr.rel (0) target = $region13
  $region12: #{discrete_vae_forward.8} parent=0 // pred_region
    _
  $region13: #{discrete_vae_forward.8} parent=0 // pred_fallthru
    _
  %p15 = scmp.eq.s32.totalorder 0, 0
  // Predicated region
  $region14: #{discrete_vae_forward.8} parent=0 // pred_check
    %p16 = pneg %p15
  $region15: #{discrete_vae_forward.8} parent=0 // pred_check_branch
    %18 = sbr.rel (%p16) target = $region17
  $region16: #{discrete_vae_forward.8} parent=0 // pred_region
    %19 = vst [vmem:[#allocation2] sm:$0xff] 0.0
    %20 = vst [vmem:[#allocation2 + $0x8] sm:$0xff] 0.0
    %21 = vst [vmem:[#allocation2 + $0x10] sm:$0xff] 0.0
    %22 = vst [vmem:[#allocation2 + $0x18] sm:$0xff] 0.0
  $region17: #{discrete_vae_forward.8} parent=0 // pred_fallthru
    _
  %v23 = vld [vmem:[#allocation2] sm:$0xff]
  %v24 = vld [vmem:[#allocation2 + $0x8] sm:$0xff]
  %v25 = vld [vmem:[#allocation2 + $0x10] sm:$0xff]
  %v26 = vld [vmem:[#allocation2 + $0x18] sm:$0xff]
  %v27 = vld [vmem:[%s0] sm:$0xf]
  %v28 = vld [vmem:[%s0 + $0x4] sm:$0xf]
  %v29 = vld [vmem:[%s0 + $0x8] sm:$0xf]
  %v30 = vld [vmem:[%s0 + $0xc] sm:$0xf]
  %v31 = vld [vmem:[%s1] sm:$0xf]
  %v32 = vld [vmem:[%s1 + $0x4] sm:$0xf]
  %v33 = vld [vmem:[%s1 + $0x8] sm:$0xf]
  %v34 = vld [vmem:[%s1 + $0xc] sm:$0xf]
  %v35 = vld [vmem:[%s1 + $0x10] sm:$0xf]
  %v36 = vld [vmem:[%s1 + $0x14] sm:$0xf]
  %v37 = vld [vmem:[%s1 + $0x18] sm:$0xf]
  %v38 = vld [vmem:[%s1 + $0x1c] sm:$0xf]
  %v39 = vld [vmem:[%s1 + $0x20] sm:$0xf]
  %v40 = vld [vmem:[%s1 + $0x24] sm:$0xf]
  %v41 = vld [vmem:[%s1 + $0x28] sm:$0xf]
  %v42 = vld [vmem:[%s1 + $0x2c] sm:$0xf]
  %v43 = vld [vmem:[%s1 + $0x30] sm:$0xf]
  %v44 = vld [vmem:[%s1 + $0x34] sm:$0xf]
  %v45 = vld [vmem:[%s1 + $0x38] sm:$0xf]
  %v46 = vld [vmem:[%s1 + $0x3c] sm:$0xf]
  %v51 = vunpack.c.l.b16 %v27
  %v52 = vunpack.c.l.b16 %v28
  %v53 = vunpack.c.l.b16 %v29
  %v54 = vunpack.c.l.b16 %v30
  %v55 = vpack.c.b16 %v52, %v51
  %v56 = vpack.c.b16 %v54, %v53
  %v75 = vunpack.c.l.b16 %v31
  %v76 = vunpack.c.l.b16 %v32
  %v77 = vunpack.c.l.b16 %v33
  %v78 = vunpack.c.l.b16 %v34
  %v79 = vunpack.c.l.b16 %v35
  %v80 = vunpack.c.l.b16 %v36
  %v81 = vunpack.c.l.b16 %v37
  %v82 = vunpack.c.l.b16 %v38
  %v83 = vunpack.c.l.b16 %v39
  %v84 = vunpack.c.l.b16 %v40
  %v85 = vunpack.c.l.b16 %v41
  %v86 = vunpack.c.l.b16 %v42
  %v87 = vunpack.c.l.b16 %v43
  %v88 = vunpack.c.l.b16 %v44
  %v89 = vunpack.c.l.b16 %v45
  %v90 = vunpack.c.l.b16 %v46
  %v91 = vpack.c.b16 %v76, %v75
  %v92 = vpack.c.b16 %v78, %v77
  %v93 = vpack.c.b16 %v80, %v79
  %v94 = vpack.c.b16 %v82, %v81
  %v95 = vpack.c.b16 %v84, %v83
  %v96 = vpack.c.b16 %v86, %v85
  %v97 = vpack.c.b16 %v88, %v87
  %v98 = vpack.c.b16 %v90, %v89
  %107 = vmatprep.subr.bf16.mxu0 0
  %108 = vmatpush1.bf16.msra.mxu0 %v91
  %109 = vmatprep.subr.bf16.mxu0 0
  %110 = vmatpush1.bf16.msra.mxu0 %v92
  %111 = vmatprep.subr.bf16.mxu0 0
  %112 = vmatpush1.bf16.msra.mxu0 %v93
  %113 = vmatprep.subr.bf16.mxu0 0
  %114 = vmatpush1.bf16.msra.mxu0 %v94
  %115 = vmatprep.subr.bf16.mxu0 0
  %116 = vmatpush1.bf16.msra.mxu0 %v95
  %117 = vmatprep.subr.bf16.mxu0 0
  %118 = vmatpush1.bf16.msra.mxu0 %v96
  %119 = vmatprep.subr.bf16.mxu0 0
  %120 = vmatpush1.bf16.msra.mxu0 %v97
  %121 = vmatprep.subr.bf16.mxu0 0
  %122 = vmatpush1.bf16.msra.mxu0 %v98
  %123 = vmatprep.subr.bf16.mxu0 0
  %124 = vmatpush1.bf16.msra.mxu0 0
  %125 = vmatprep.subr.bf16.mxu0 0
  %126 = vmatpush1.bf16.msra.mxu0 0
  %127 = vmatprep.subr.bf16.mxu0 0
  %128 = vmatpush1.bf16.msra.mxu0 0
  %129 = vmatprep.subr.bf16.mxu0 0
  %130 = vmatpush1.bf16.msra.mxu0 0
  %131 = vmatprep.subr.bf16.mxu0 0
  %132 = vmatpush1.bf16.msra.mxu0 0
  %133 = vmatprep.subr.bf16.mxu0 0
  %134 = vmatpush1.bf16.msra.mxu0 0
  %135 = vmatprep.subr.bf16.mxu0 0
  %136 = vmatpush1.bf16.msra.mxu0 0
  %137 = vmatprep.subr.bf16.mxu0 0
  %138 = vmatpush1.bf16.msra.mxu0 0
  %139 = vmatprep.mubr.bf16.mxu0 0
  %140 = vmatmul.mubr.bf16.gmra.mrb[0].mxu0 %v55
  %v141 = vpop.f32.mrb[0].mxu0
  %v142 = vadd.f32 0.0, %v141
  %v143 = vpop.f32.mrb[0].mxu0
  %v144 = vpop.f32.mrb[0].mxu0
  %v145 = vadd.f32 0.0, %v144
  %v146 = vpop.f32.mrb[0].mxu0
  %147 = vmatprep.mubr.bf16.mxu0 0
  %148 = vmatmul.mubr.bf16.gmra.mrb[0].mxu0 %v56
  %v149 = vpop.f32.mrb[0].mxu0
  %v150 = vadd.f32 0.0, %v149
  %v151 = vpop.f32.mrb[0].mxu0
  %v152 = vpop.f32.mrb[0].mxu0
  %v153 = vadd.f32 0.0, %v152
  %v154 = vpop.f32.mrb[0].mxu0
  %155 = vdwg.mxu0
  %v156 = vadd.f32 %v23, %v142
  %v157 = vadd.f32 %v24, %v145
  %v158 = vadd.f32 %v25, %v150
  %v159 = vadd.f32 %v26, %v153
  %160 = vst [vmem:[#allocation2] sm:$0xff] %v156
  %161 = vst [vmem:[#allocation2 + $0x8] sm:$0xff] %v157
  %162 = vst [vmem:[#allocation2 + $0x10] sm:$0xff] %v158
  %163 = vst [vmem:[#allocation2 + $0x18] sm:$0xff] %v159
  // Predicated region
  $region18: #{discrete_vae_forward.8} parent=0 // pred_check
    %p164 = pneg %p15
  $region19: #{discrete_vae_forward.8} parent=0 // pred_check_branch
    %166 = sbr.rel (%p164) target = $region21
  $region20: #{discrete_vae_forward.8} parent=0 // pred_region
    %v167 = vld [vmem:[#allocation2] sm:$0xff]
    %v168 = vld [vmem:[#allocation2 + $0x8] sm:$0xff]
    %v169 = vld [vmem:[#allocation2 + $0x10] sm:$0xff]
    %v170 = vld [vmem:[#allocation2 + $0x18] sm:$0xff]
    %v171 = vld [vmem:[%s2] sm:$0x1]
    %v173 = vlaneseq
    %v174 = vshrl.u32 %v173, 7
    %v175 = vsub.s32 0, %v174
    %v176 = vrot.slane %v171, %v175
    %v178 = vadd.f32 %v167, %v176
    %v179 = vadd.f32 %v168, %v176
    %v180 = vadd.f32 %v169, %v176
    %v181 = vadd.f32 %v170, %v176
    %v182 = vmax.f32 %v178, 0.0
    %v183 = vmax.f32 %v179, 0.0
    %v184 = vmax.f32 %v180, 0.0
    %v185 = vmax.f32 %v181, 0.0
    %v186 = vpack.c.bf16 %v183, %v182
    %v187 = vpack.c.bf16 %v185, %v184
    %v190 = vunpack.c.l.b16 %v186
    %v191 = vunpack.c.h.b16 %v186
    %v192 = vunpack.c.l.b16 %v187
    %v193 = vunpack.c.h.b16 %v187
    %v194 = vpack.c.b16 %v190, %v190
    %v195 = vpack.c.b16 %v191, %v191
    %v196 = vpack.c.b16 %v192, %v192
    %v197 = vpack.c.b16 %v193, %v193
    %202 = vst [vmem:[%s3] sm:$0xf] %v194
    %203 = vst [vmem:[%s3 + $0x4] sm:$0xf] %v195
    %204 = vst [vmem:[%s3 + $0x8] sm:$0xf] %v196
    %205 = vst [vmem:[%s3 + $0xc] sm:$0xf] %v197
  $region21: #{discrete_vae_forward.8} parent=0 // pred_fallthru
    _
  // Predicated region
  $region22: #{discrete_vae_forward.8} parent=0 // pred_check
    _
  $region23: #{discrete_vae_forward.8} parent=0 // pred_check_branch
    %207 = sbr.rel (0) target = $region25
  $region24: #{discrete_vae_forward.8} parent=0 // pred_region
    _
  $region25: #{discrete_vae_forward.8} parent=0 // pred_fallthru
    _
  // Predicated region
  $region26: #{discrete_vae_forward.8} parent=0 // pred_check
    _
  $region27: #{discrete_vae_forward.8} parent=0 // pred_check_branch
    %209 = sbr.rel (0) target = $region29
  $region28: #{discrete_vae_forward.8} parent=0 // pred_region
    _
  $region29: #{discrete_vae_forward.8} parent=0 // pred_fallthru
    _

// kernel: discrete_vae_forward.9
$region0: #{discrete_vae_forward.9}
  #allocation0 [shape = 'u32[]', space=smem, size = 0x4, offset = 0x4, fixed_abs, tag = 'smem constant byte address 0x4 - core index']
  #allocation1 [shape = 'u32[144,128]{1,0:T(1,128)}', space=vmem, size = 0x12000, scoped, tag = 'internal scratch']
  #allocation2 [shape = 'f32[32,128]{1,0:T(8,128)}', space=vmem, size = 0x4000, scoped, tag = 'scratch operand']
  %s0 = inlined_call_operand.vmem [shape: bf16[32,128], index: 0, kind: input, shape index: {}]
  %s1 = inlined_call_operand.vmem [shape: bf16[128,128], index: 1, kind: input, shape index: {}]
  %s2 = inlined_call_operand.vmem [shape: f32[1,128], index: 2, kind: input, shape index: {}]
  %s3 = inlined_call_operand.vmem [shape: f32[32,128], index: 3, kind: output, shape index: {}]
  %s4 = sld [smem:[#allocation0]]
  $region30: #{discrete_vae_forward.9} parent=0
    _
  %s6 = ssub.s32 1, %s4
  %s7 = scalar_select 0, %s6, %s4
  // Predicated region
  $region2: #{discrete_vae_forward.9} parent=0 // pred_check
    _
  $region3: #{discrete_vae_forward.9} parent=0 // pred_check_branch
    %9 = sbr.rel (0) target = $region5
  $region4: #{discrete_vae_forward.9} parent=0 // pred_region
    _
  $region5: #{discrete_vae_forward.9} parent=0 // pred_fallthru
    _
  // Predicated region
  $region6: #{discrete_vae_forward.9} parent=0 // pred_check
    _
  $region7: #{discrete_vae_forward.9} parent=0 // pred_check_branch
    %11 = sbr.rel (0) target = $region9
  $region8: #{discrete_vae_forward.9} parent=0 // pred_region
    _
  $region9: #{discrete_vae_forward.9} parent=0 // pred_fallthru
    _
  // Predicated region
  $region10: #{discrete_vae_forward.9} parent=0 // pred_check
    _
  $region11: #{discrete_vae_forward.9} parent=0 // pred_check_branch
    %13 = sbr.rel (0) target = $region13
  $region12: #{discrete_vae_forward.9} parent=0 // pred_region
    _
  $region13: #{discrete_vae_forward.9} parent=0 // pred_fallthru
    _
  %p15 = scmp.eq.s32.totalorder 0, 0
  // Predicated region
  $region14: #{discrete_vae_forward.9} parent=0 // pred_check
    %p16 = pneg %p15
  $region15: #{discrete_vae_forward.9} parent=0 // pred_check_branch
    %18 = sbr.rel (%p16) target = $region17
  $region16: #{discrete_vae_forward.9} parent=0 // pred_region
    %19 = vst [vmem:[#allocation2] sm:$0xff] 0.0
    %20 = vst [vmem:[#allocation2 + $0x8] sm:$0xff] 0.0
    %21 = vst [vmem:[#allocation2 + $0x10] sm:$0xff] 0.0
    %22 = vst [vmem:[#allocation2 + $0x18] sm:$0xff] 0.0
  $region17: #{discrete_vae_forward.9} parent=0 // pred_fallthru
    _
  %v23 = vld [vmem:[#allocation2] sm:$0xff]
  %v24 = vld [vmem:[#allocation2 + $0x8] sm:$0xff]
  %v25 = vld [vmem:[#allocation2 + $0x10] sm:$0xff]
  %v26 = vld [vmem:[#allocation2 + $0x18] sm:$0xff]
  %v27 = vld [vmem:[%s0] sm:$0xf]
  %v28 = vld [vmem:[%s0 + $0x4] sm:$0xf]
  %v29 = vld [vmem:[%s0 + $0x8] sm:$0xf]
  %v30 = vld [vmem:[%s0 + $0xc] sm:$0xf]
  %v31 = vld [vmem:[%s1] sm:$0xf]
  %v32 = vld [vmem:[%s1 + $0x4] sm:$0xf]
  %v33 = vld [vmem:[%s1 + $0x8] sm:$0xf]
  %v34 = vld [vmem:[%s1 + $0xc] sm:$0xf]
  %v35 = vld [vmem:[%s1 + $0x10] sm:$0xf]
  %v36 = vld [vmem:[%s1 + $0x14] sm:$0xf]
  %v37 = vld [vmem:[%s1 + $0x18] sm:$0xf]
  %v38 = vld [vmem:[%s1 + $0x1c] sm:$0xf]
  %v39 = vld [vmem:[%s1 + $0x20] sm:$0xf]
  %v40 = vld [vmem:[%s1 + $0x24] sm:$0xf]
  %v41 = vld [vmem:[%s1 + $0x28] sm:$0xf]
  %v42 = vld [vmem:[%s1 + $0x2c] sm:$0xf]
  %v43 = vld [vmem:[%s1 + $0x30] sm:$0xf]
  %v44 = vld [vmem:[%s1 + $0x34] sm:$0xf]
  %v45 = vld [vmem:[%s1 + $0x38] sm:$0xf]
  %v46 = vld [vmem:[%s1 + $0x3c] sm:$0xf]
  %v51 = vunpack.c.l.b16 %v27
  %v52 = vunpack.c.l.b16 %v28
  %v53 = vunpack.c.l.b16 %v29
  %v54 = vunpack.c.l.b16 %v30
  %v55 = vpack.c.b16 %v52, %v51
  %v56 = vpack.c.b16 %v54, %v53
  %v75 = vunpack.c.l.b16 %v31
  %v76 = vunpack.c.l.b16 %v32
  %v77 = vunpack.c.l.b16 %v33
  %v78 = vunpack.c.l.b16 %v34
  %v79 = vunpack.c.l.b16 %v35
  %v80 = vunpack.c.l.b16 %v36
  %v81 = vunpack.c.l.b16 %v37
  %v82 = vunpack.c.l.b16 %v38
  %v83 = vunpack.c.l.b16 %v39
  %v84 = vunpack.c.l.b16 %v40
  %v85 = vunpack.c.l.b16 %v41
  %v86 = vunpack.c.l.b16 %v42
  %v87 = vunpack.c.l.b16 %v43
  %v88 = vunpack.c.l.b16 %v44
  %v89 = vunpack.c.l.b16 %v45
  %v90 = vunpack.c.l.b16 %v46
  %v91 = vpack.c.b16 %v76, %v75
  %v92 = vpack.c.b16 %v78, %v77
  %v93 = vpack.c.b16 %v80, %v79
  %v94 = vpack.c.b16 %v82, %v81
  %v95 = vpack.c.b16 %v84, %v83
  %v96 = vpack.c.b16 %v86, %v85
  %v97 = vpack.c.b16 %v88, %v87
  %v98 = vpack.c.b16 %v90, %v89
  %107 = vmatprep.subr.bf16.mxu0 0
  %108 = vmatpush1.bf16.msra.mxu0 %v91
  %109 = vmatprep.subr.bf16.mxu0 0
  %110 = vmatpush1.bf16.msra.mxu0 %v92
  %111 = vmatprep.subr.bf16.mxu0 0
  %112 = vmatpush1.bf16.msra.mxu0 %v93
  %113 = vmatprep.subr.bf16.mxu0 0
  %114 = vmatpush1.bf16.msra.mxu0 %v94
  %115 = vmatprep.subr.bf16.mxu0 0
  %116 = vmatpush1.bf16.msra.mxu0 %v95
  %117 = vmatprep.subr.bf16.mxu0 0
  %118 = vmatpush1.bf16.msra.mxu0 %v96
  %119 = vmatprep.subr.bf16.mxu0 0
  %120 = vmatpush1.bf16.msra.mxu0 %v97
  %121 = vmatprep.subr.bf16.mxu0 0
  %122 = vmatpush1.bf16.msra.mxu0 %v98
  %123 = vmatprep.subr.bf16.mxu0 0
  %124 = vmatpush1.bf16.msra.mxu0 0
  %125 = vmatprep.subr.bf16.mxu0 0
  %126 = vmatpush1.bf16.msra.mxu0 0
  %127 = vmatprep.subr.bf16.mxu0 0
  %128 = vmatpush1.bf16.msra.mxu0 0
  %129 = vmatprep.subr.bf16.mxu0 0
  %130 = vmatpush1.bf16.msra.mxu0 0
  %131 = vmatprep.subr.bf16.mxu0 0
  %132 = vmatpush1.bf16.msra.mxu0 0
  %133 = vmatprep.subr.bf16.mxu0 0
  %134 = vmatpush1.bf16.msra.mxu0 0
  %135 = vmatprep.subr.bf16.mxu0 0
  %136 = vmatpush1.bf16.msra.mxu0 0
  %137 = vmatprep.subr.bf16.mxu0 0
  %138 = vmatpush1.bf16.msra.mxu0 0
  %139 = vmatprep.mubr.bf16.mxu0 0
  %140 = vmatmul.mubr.bf16.gmra.mrb[0].mxu0 %v55
  %v141 = vpop.f32.mrb[0].mxu0
  %v142 = vadd.f32 0.0, %v141
  %v143 = vpop.f32.mrb[0].mxu0
  %v144 = vpop.f32.mrb[0].mxu0
  %v145 = vadd.f32 0.0, %v144
  %v146 = vpop.f32.mrb[0].mxu0
  %147 = vmatprep.mubr.bf16.mxu0 0
  %148 = vmatmul.mubr.bf16.gmra.mrb[0].mxu0 %v56
  %v149 = vpop.f32.mrb[0].mxu0
  %v150 = vadd.f32 0.0, %v149
  %v151 = vpop.f32.mrb[0].mxu0
  %v152 = vpop.f32.mrb[0].mxu0
  %v153 = vadd.f32 0.0, %v152
  %v154 = vpop.f32.mrb[0].mxu0
  %155 = vdwg.mxu0
  %v156 = vadd.f32 %v23, %v142
  %v157 = vadd.f32 %v24, %v145
  %v158 = vadd.f32 %v25, %v150
  %v159 = vadd.f32 %v26, %v153
  %160 = vst [vmem:[#allocation2] sm:$0xff] %v156
  %161 = vst [vmem:[#allocation2 + $0x8] sm:$0xff] %v157
  %162 = vst [vmem:[#allocation2 + $0x10] sm:$0xff] %v158
  %163 = vst [vmem:[#allocation2 + $0x18] sm:$0xff] %v159
  // Predicated region
  $region18: #{discrete_vae_forward.9} parent=0 // pred_check
    %p164 = pneg %p15
  $region19: #{discrete_vae_forward.9} parent=0 // pred_check_branch
    %166 = sbr.rel (%p164) target = $region21
  $region20: #{discrete_vae_forward.9} parent=0 // pred_region
    %v167 = vld [vmem:[#allocation2] sm:$0xff]
    %v168 = vld [vmem:[#allocation2 + $0x8] sm:$0xff]
    %v169 = vld [vmem:[#allocation2 + $0x10] sm:$0xff]
    %v170 = vld [vmem:[#allocation2 + $0x18] sm:$0xff]
    %v171 = vld [vmem:[%s2] sm:$0x1]
    %v173 = vlaneseq
    %v174 = vshrl.u32 %v173, 7
    %v175 = vsub.s32 0, %v174
    %v176 = vrot.slane %v171, %v175
    %v178 = vadd.f32 %v167, %v176
    %v179 = vadd.f32 %v168, %v176
    %v180 = vadd.f32 %v169, %v176
    %v181 = vadd.f32 %v170, %v176
    %182 = vst [vmem:[%s3] sm:$0xff] %v178
    %183 = vst [vmem:[%s3 + $0x8] sm:$0xff] %v179
    %184 = vst [vmem:[%s3 + $0x10] sm:$0xff] %v180
    %185 = vst [vmem:[%s3 + $0x18] sm:$0xff] %v181
  $region21: #{discrete_vae_forward.9} parent=0 // pred_fallthru
    _
  // Predicated region
  $region22: #{discrete_vae_forward.9} parent=0 // pred_check
    _
  $region23: #{discrete_vae_forward.9} parent=0 // pred_check_branch
    %187 = sbr.rel (0) target = $region25
  $region24: #{discrete_vae_forward.9} parent=0 // pred_region
    _
  $region25: #{discrete_vae_forward.9} parent=0 // pred_fallthru
    _
  // Predicated region
  $region26: #{discrete_vae_forward.9} parent=0 // pred_check
    _
  $region27: #{discrete_vae_forward.9} parent=0 // pred_check_branch
    %189 = sbr.rel (0) target = $region29
  $region28: #{discrete_vae_forward.9} parent=0 // pred_region
    _
  $region29: #{discrete_vae_forward.9} parent=0 // pred_fallthru
    _

// kernel: discrete_vae_forward.10
$region0: #{discrete_vae_forward.10}
  #allocation0 [shape = 'u32[]', space=smem, size = 0x4, offset = 0x4, fixed_abs, tag = 'smem constant byte address 0x4 - core index']
  #allocation1 [shape = 'u32[144,128]{1,0:T(1,128)}', space=vmem, size = 0x12000, scoped, tag = 'internal scratch']
  %s0 = inlined_call_operand.vmem [shape: f32[32,128], index: 0, kind: input, shape index: {}]
  %s1 = inlined_call_operand.vmem [shape: f32[32,128], index: 1, kind: input, shape index: {}]
  %s2 = inlined_call_operand.vmem [shape: bf16[128,128], index: 2, kind: input, shape index: {}]
  %s3 = inlined_call_operand.vmem [shape: f32[32,128], index: 3, kind: output, shape index: {}]
  %s4 = sld [smem:[#allocation0]]
  $region22: #{discrete_vae_forward.10} parent=0
    _
  %s6 = ssub.s32 1, %s4
  %s7 = scalar_select 0, %s6, %s4
  // Predicated region
  $region2: #{discrete_vae_forward.10} parent=0 // pred_check
    _
  $region3: #{discrete_vae_forward.10} parent=0 // pred_check_branch
    %9 = sbr.rel (0) target = $region5
  $region4: #{discrete_vae_forward.10} parent=0 // pred_region
    _
  $region5: #{discrete_vae_forward.10} parent=0 // pred_fallthru
    _
  // Predicated region
  $region6: #{discrete_vae_forward.10} parent=0 // pred_check
    _
  $region7: #{discrete_vae_forward.10} parent=0 // pred_check_branch
    %11 = sbr.rel (0) target = $region9
  $region8: #{discrete_vae_forward.10} parent=0 // pred_region
    _
  $region9: #{discrete_vae_forward.10} parent=0 // pred_fallthru
    _
  // Predicated region
  $region10: #{discrete_vae_forward.10} parent=0 // pred_check
    _
  $region11: #{discrete_vae_forward.10} parent=0 // pred_check_branch
    %13 = sbr.rel (0) target = $region13
  $region12: #{discrete_vae_forward.10} parent=0 // pred_region
    _
  $region13: #{discrete_vae_forward.10} parent=0 // pred_fallthru
    _
  %v15 = vld [vmem:[%s0] sm:$0xff]
  %v16 = vld [vmem:[%s0 + $0x8] sm:$0xff]
  %v17 = vld [vmem:[%s0 + $0x10] sm:$0xff]
  %v18 = vld [vmem:[%s0 + $0x18] sm:$0xff]
  %v19 = vld [vmem:[%s1] sm:$0xff]
  %v20 = vld [vmem:[%s1 + $0x8] sm:$0xff]
  %v21 = vld [vmem:[%s1 + $0x10] sm:$0xff]
  %v22 = vld [vmem:[%s1 + $0x18] sm:$0xff]
  %v23 = vadd.f32 %v15, %v19
  %v24 = vadd.f32 %v16, %v20
  %v25 = vadd.f32 %v17, %v21
  %v26 = vadd.f32 %v18, %v22
  %v27 = vmul.f32 %v23, 1.1111112
  %v28 = vmul.f32 %v24, 1.1111112
  %v29 = vmul.f32 %v25, 1.1111112
  %v30 = vmul.f32 %v26, 1.1111112
  %v31 = vlaneseq
  %v32 = vand.u32 %v31, 127
  %vm33 = vcmp.lt.s32.totalorder %v32, 16
  %v34 = vsel %vm33, %v27, -1e+30
  %v35 = vsel %vm33, %v28, -1e+30
  %v36 = vsel %vm33, %v29, -1e+30
  %v37 = vsel %vm33, %v30, -1e+30
  %38 = vmax.xlane.f32.xlu0 %v34
  %v39 = vpop.xlane.xlu0 %38
  %40 = vmax.xlane.f32.xlu0 %v35
  %v41 = vpop.xlane.xlu0 %40
  %42 = vmax.xlane.f32.xlu0 %v36
  %v43 = vpop.xlane.xlu0 %42
  %44 = vmax.xlane.f32.xlu0 %v37
  %v45 = vpop.xlane.xlu0 %44
  %v46 = vsub.f32 %v34, %v39
  %v47 = vsub.f32 %v35, %v41
  %v48 = vsub.f32 %v36, %v43
  %v49 = vsub.f32 %v37, %v45
  %v50 = vmul.f32 %v46, 1.442695
  %v51 = vpow.pop %v50
  %v52 = vmul.f32 %v47, 1.442695
  %v53 = vpow.pop %v52
  %v54 = vmul.f32 %v48, 1.442695
  %v55 = vpow.pop %v54
  %v56 = vmul.f32 %v49, 1.442695
  %v57 = vpow.pop %v56
  %58 = vadd.xlane.f32.xlu0 %v51
  %v59 = vpop.xlane.xlu0 %58
  %60 = vadd.xlane.f32.xlu0 %v53
  %v61 = vpop.xlane.xlu0 %60
  %62 = vadd.xlane.f32.xlu0 %v55
  %v63 = vpop.xlane.xlu0 %62
  %64 = vadd.xlane.f32.xlu0 %v57
  %v65 = vpop.xlane.xlu0 %64
  %v66 = vrcp.pop %v59
  %v67 = vrcp.pop %v61
  %v68 = vrcp.pop %v63
  %v69 = vrcp.pop %v65
  %v70 = vmul.f32 %v51, %v66
  %v71 = vmul.f32 %v53, %v67
  %v72 = vmul.f32 %v55, %v68
  %v73 = vmul.f32 %v57, %v69
  %v74 = vpack.c.bf16 %v71, %v70
  %v75 = vpack.c.bf16 %v73, %v72
  %v76 = vld [vmem:[%s2] sm:$0xf]
  %v77 = vld [vmem:[%s2 + $0x4] sm:$0xf]
  %v78 = vld [vmem:[%s2 + $0x8] sm:$0xf]
  %v79 = vld [vmem:[%s2 + $0xc] sm:$0xf]
  %v80 = vld [vmem:[%s2 + $0x10] sm:$0xf]
  %v81 = vld [vmem:[%s2 + $0x14] sm:$0xf]
  %v82 = vld [vmem:[%s2 + $0x18] sm:$0xf]
  %v83 = vld [vmem:[%s2 + $0x1c] sm:$0xf]
  %v84 = vld [vmem:[%s2 + $0x20] sm:$0xf]
  %v85 = vld [vmem:[%s2 + $0x24] sm:$0xf]
  %v86 = vld [vmem:[%s2 + $0x28] sm:$0xf]
  %v87 = vld [vmem:[%s2 + $0x2c] sm:$0xf]
  %v88 = vld [vmem:[%s2 + $0x30] sm:$0xf]
  %v89 = vld [vmem:[%s2 + $0x34] sm:$0xf]
  %v90 = vld [vmem:[%s2 + $0x38] sm:$0xf]
  %v91 = vld [vmem:[%s2 + $0x3c] sm:$0xf]
  %v108 = vunpack.c.l.b16 %v76
  %v109 = vunpack.c.l.b16 %v77
  %v110 = vunpack.c.l.b16 %v78
  %v111 = vunpack.c.l.b16 %v79
  %v112 = vunpack.c.l.b16 %v80
  %v113 = vunpack.c.l.b16 %v81
  %v114 = vunpack.c.l.b16 %v82
  %v115 = vunpack.c.l.b16 %v83
  %v116 = vunpack.c.l.b16 %v84
  %v117 = vunpack.c.l.b16 %v85
  %v118 = vunpack.c.l.b16 %v86
  %v119 = vunpack.c.l.b16 %v87
  %v120 = vunpack.c.l.b16 %v88
  %v121 = vunpack.c.l.b16 %v89
  %v122 = vunpack.c.l.b16 %v90
  %v123 = vunpack.c.l.b16 %v91
  %v124 = vpack.c.b16 %v109, %v108
  %v125 = vpack.c.b16 %v111, %v110
  %v126 = vpack.c.b16 %v113, %v112
  %v127 = vpack.c.b16 %v115, %v114
  %v128 = vpack.c.b16 %v117, %v116
  %v129 = vpack.c.b16 %v119, %v118
  %v130 = vpack.c.b16 %v121, %v120
  %v131 = vpack.c.b16 %v123, %v122
  %140 = vmatprep.subr.bf16.mxu0 0
  %141 = vmatpush1.bf16.msra.mxu0 %v124
  %142 = vmatprep.subr.bf16.mxu0 0
  %143 = vmatpush1.bf16.msra.mxu0 %v125
  %144 = vmatprep.subr.bf16.mxu0 0
  %145 = vmatpush1.bf16.msra.mxu0 %v126
  %146 = vmatprep.subr.bf16.mxu0 0
  %147 = vmatpush1.bf16.msra.mxu0 %v127
  %148 = vmatprep.subr.bf16.mxu0 0
  %149 = vmatpush1.bf16.msra.mxu0 %v128
  %150 = vmatprep.subr.bf16.mxu0 0
  %151 = vmatpush1.bf16.msra.mxu0 %v129
  %152 = vmatprep.subr.bf16.mxu0 0
  %153 = vmatpush1.bf16.msra.mxu0 %v130
  %154 = vmatprep.subr.bf16.mxu0 0
  %155 = vmatpush1.bf16.msra.mxu0 %v131
  %156 = vmatprep.subr.bf16.mxu0 0
  %157 = vmatpush1.bf16.msra.mxu0 0
  %158 = vmatprep.subr.bf16.mxu0 0
  %159 = vmatpush1.bf16.msra.mxu0 0
  %160 = vmatprep.subr.bf16.mxu0 0
  %161 = vmatpush1.bf16.msra.mxu0 0
  %162 = vmatprep.subr.bf16.mxu0 0
  %163 = vmatpush1.bf16.msra.mxu0 0
  %164 = vmatprep.subr.bf16.mxu0 0
  %165 = vmatpush1.bf16.msra.mxu0 0
  %166 = vmatprep.subr.bf16.mxu0 0
  %167 = vmatpush1.bf16.msra.mxu0 0
  %168 = vmatprep.subr.bf16.mxu0 0
  %169 = vmatpush1.bf16.msra.mxu0 0
  %170 = vmatprep.subr.bf16.mxu0 0
  %171 = vmatpush1.bf16.msra.mxu0 0
  %172 = vmatprep.mubr.bf16.mxu0 0
  %173 = vmatmul.mubr.bf16.gmra.mrb[0].mxu0 %v74
  %v174 = vpop.f32.mrb[0].mxu0
  %v175 = vadd.f32 0.0, %v174
  %v176 = vpop.f32.mrb[0].mxu0
  %v177 = vpop.f32.mrb[0].mxu0
  %v178 = vadd.f32 0.0, %v177
  %v179 = vpop.f32.mrb[0].mxu0
  %180 = vmatprep.mubr.bf16.mxu0 0
  %181 = vmatmul.mubr.bf16.gmra.mrb[0].mxu0 %v75
  %v182 = vpop.f32.mrb[0].mxu0
  %v183 = vadd.f32 0.0, %v182
  %v184 = vpop.f32.mrb[0].mxu0
  %v185 = vpop.f32.mrb[0].mxu0
  %v186 = vadd.f32 0.0, %v185
  %v187 = vpop.f32.mrb[0].mxu0
  %188 = vdwg.mxu0
  %189 = vst [vmem:[%s3] sm:$0xff] %v175
  %190 = vst [vmem:[%s3 + $0x8] sm:$0xff] %v178
  %191 = vst [vmem:[%s3 + $0x10] sm:$0xff] %v183
  %192 = vst [vmem:[%s3 + $0x18] sm:$0xff] %v186
  // Predicated region
  $region14: #{discrete_vae_forward.10} parent=0 // pred_check
    _
  $region15: #{discrete_vae_forward.10} parent=0 // pred_check_branch
    %194 = sbr.rel (0) target = $region17
  $region16: #{discrete_vae_forward.10} parent=0 // pred_region
    _
  $region17: #{discrete_vae_forward.10} parent=0 // pred_fallthru
    _
  // Predicated region
  $region18: #{discrete_vae_forward.10} parent=0 // pred_check
    _
  $region19: #{discrete_vae_forward.10} parent=0 // pred_check_branch
    %196 = sbr.rel (0) target = $region21
  $region20: #{discrete_vae_forward.10} parent=0 // pred_region
    _
  $region21: #{discrete_vae_forward.10} parent=0 // pred_fallthru
    _

// kernel: discrete_vae_forward.11
$region0: #{discrete_vae_forward.11}
  #allocation0 [shape = 'u32[]', space=smem, size = 0x4, offset = 0x4, fixed_abs, tag = 'smem constant byte address 0x4 - core index']
  #allocation1 [shape = 'u32[144,128]{1,0:T(1,128)}', space=vmem, size = 0x12000, scoped, tag = 'internal scratch']
  #allocation2 [shape = 'f32[32,128]{1,0:T(8,128)}', space=vmem, size = 0x4000, scoped, tag = 'scratch operand']
  %s0 = inlined_call_operand.vmem [shape: bf16[32,256], index: 0, kind: input, shape index: {}]
  %s1 = inlined_call_operand.vmem [shape: bf16[256,128], index: 1, kind: input, shape index: {}]
  %s2 = inlined_call_operand.vmem [shape: f32[1,128], index: 2, kind: input, shape index: {}]
  %s3 = inlined_call_operand.vmem [shape: bf16[32,128], index: 3, kind: output, shape index: {}]
  %s4 = sld [smem:[#allocation0]]
  $region30: #{discrete_vae_forward.11} parent=0
    _
  %s6 = ssub.s32 1, %s4
  %s7 = scalar_select 0, %s6, %s4
  // Predicated region
  $region2: #{discrete_vae_forward.11} parent=0 // pred_check
    _
  $region3: #{discrete_vae_forward.11} parent=0 // pred_check_branch
    %9 = sbr.rel (0) target = $region5
  $region4: #{discrete_vae_forward.11} parent=0 // pred_region
    _
  $region5: #{discrete_vae_forward.11} parent=0 // pred_fallthru
    _
  // Predicated region
  $region6: #{discrete_vae_forward.11} parent=0 // pred_check
    _
  $region7: #{discrete_vae_forward.11} parent=0 // pred_check_branch
    %11 = sbr.rel (0) target = $region9
  $region8: #{discrete_vae_forward.11} parent=0 // pred_region
    _
  $region9: #{discrete_vae_forward.11} parent=0 // pred_fallthru
    _
  // Predicated region
  $region10: #{discrete_vae_forward.11} parent=0 // pred_check
    _
  $region11: #{discrete_vae_forward.11} parent=0 // pred_check_branch
    %13 = sbr.rel (0) target = $region13
  $region12: #{discrete_vae_forward.11} parent=0 // pred_region
    _
  $region13: #{discrete_vae_forward.11} parent=0 // pred_fallthru
    _
  %p15 = scmp.eq.s32.totalorder 0, 0
  // Predicated region
  $region14: #{discrete_vae_forward.11} parent=0 // pred_check
    %p16 = pneg %p15
  $region15: #{discrete_vae_forward.11} parent=0 // pred_check_branch
    %18 = sbr.rel (%p16) target = $region17
  $region16: #{discrete_vae_forward.11} parent=0 // pred_region
    %19 = vst [vmem:[#allocation2] sm:$0xff] 0.0
    %20 = vst [vmem:[#allocation2 + $0x8] sm:$0xff] 0.0
    %21 = vst [vmem:[#allocation2 + $0x10] sm:$0xff] 0.0
    %22 = vst [vmem:[#allocation2 + $0x18] sm:$0xff] 0.0
  $region17: #{discrete_vae_forward.11} parent=0 // pred_fallthru
    _
  %v23 = vld [vmem:[#allocation2] sm:$0xff]
  %v24 = vld [vmem:[#allocation2 + $0x8] sm:$0xff]
  %v25 = vld [vmem:[#allocation2 + $0x10] sm:$0xff]
  %v26 = vld [vmem:[#allocation2 + $0x18] sm:$0xff]
  %v27 = vld [vmem:[%s0] sm:$0xff]
  %v28 = vld [vmem:[%s0 + $0x8] sm:$0xff]
  %v29 = vld [vmem:[%s0 + $0x10] sm:$0xff]
  %v30 = vld [vmem:[%s0 + $0x18] sm:$0xff]
  %v31 = vld [vmem:[%s1] sm:$0xf]
  %v32 = vld [vmem:[%s1 + $0x4] sm:$0xf]
  %v33 = vld [vmem:[%s1 + $0x8] sm:$0xf]
  %v34 = vld [vmem:[%s1 + $0xc] sm:$0xf]
  %v35 = vld [vmem:[%s1 + $0x10] sm:$0xf]
  %v36 = vld [vmem:[%s1 + $0x14] sm:$0xf]
  %v37 = vld [vmem:[%s1 + $0x18] sm:$0xf]
  %v38 = vld [vmem:[%s1 + $0x1c] sm:$0xf]
  %v39 = vld [vmem:[%s1 + $0x20] sm:$0xf]
  %v40 = vld [vmem:[%s1 + $0x24] sm:$0xf]
  %v41 = vld [vmem:[%s1 + $0x28] sm:$0xf]
  %v42 = vld [vmem:[%s1 + $0x2c] sm:$0xf]
  %v43 = vld [vmem:[%s1 + $0x30] sm:$0xf]
  %v44 = vld [vmem:[%s1 + $0x34] sm:$0xf]
  %v45 = vld [vmem:[%s1 + $0x38] sm:$0xf]
  %v46 = vld [vmem:[%s1 + $0x3c] sm:$0xf]
  %v47 = vld [vmem:[%s1 + $0x40] sm:$0xf]
  %v48 = vld [vmem:[%s1 + $0x44] sm:$0xf]
  %v49 = vld [vmem:[%s1 + $0x48] sm:$0xf]
  %v50 = vld [vmem:[%s1 + $0x4c] sm:$0xf]
  %v51 = vld [vmem:[%s1 + $0x50] sm:$0xf]
  %v52 = vld [vmem:[%s1 + $0x54] sm:$0xf]
  %v53 = vld [vmem:[%s1 + $0x58] sm:$0xf]
  %v54 = vld [vmem:[%s1 + $0x5c] sm:$0xf]
  %v55 = vld [vmem:[%s1 + $0x60] sm:$0xf]
  %v56 = vld [vmem:[%s1 + $0x64] sm:$0xf]
  %v57 = vld [vmem:[%s1 + $0x68] sm:$0xf]
  %v58 = vld [vmem:[%s1 + $0x6c] sm:$0xf]
  %v59 = vld [vmem:[%s1 + $0x70] sm:$0xf]
  %v60 = vld [vmem:[%s1 + $0x74] sm:$0xf]
  %v61 = vld [vmem:[%s1 + $0x78] sm:$0xf]
  %v62 = vld [vmem:[%s1 + $0x7c] sm:$0xf]
  %v67 = vunpack.c.l.b16 %v27
  %v68 = vunpack.c.h.b16 %v27
  %v69 = vunpack.c.l.b16 %v28
  %v70 = vunpack.c.h.b16 %v28
  %v71 = vunpack.c.l.b16 %v29
  %v72 = vunpack.c.h.b16 %v29
  %v73 = vunpack.c.l.b16 %v30
  %v74 = vunpack.c.h.b16 %v30
  %v75 = vpack.c.b16 %v69, %v67
  %v76 = vpack.c.b16 %v70, %v68
  %v77 = vpack.c.b16 %v73, %v71
  %v78 = vpack.c.b16 %v74, %v72
  %v115 = vunpack.c.l.b16 %v31
  %v116 = vunpack.c.l.b16 %v32
  %v117 = vunpack.c.l.b16 %v33
  %v118 = vunpack.c.l.b16 %v34
  %v119 = vunpack.c.l.b16 %v35
  %v120 = vunpack.c.l.b16 %v36
  %v121 = vunpack.c.l.b16 %v37
  %v122 = vunpack.c.l.b16 %v38
  %v123 = vunpack.c.l.b16 %v39
  %v124 = vunpack.c.l.b16 %v40
  %v125 = vunpack.c.l.b16 %v41
  %v126 = vunpack.c.l.b16 %v42
  %v127 = vunpack.c.l.b16 %v43
  %v128 = vunpack.c.l.b16 %v44
  %v129 = vunpack.c.l.b16 %v45
  %v130 = vunpack.c.l.b16 %v46
  %v131 = vunpack.c.l.b16 %v47
  %v132 = vunpack.c.l.b16 %v48
  %v133 = vunpack.c.l.b16 %v49
  %v134 = vunpack.c.l.b16 %v50
  %v135 = vunpack.c.l.b16 %v51
  %v136 = vunpack.c.l.b16 %v52
  %v137 = vunpack.c.l.b16 %v53
  %v138 = vunpack.c.l.b16 %v54
  %v139 = vunpack.c.l.b16 %v55
  %v140 = vunpack.c.l.b16 %v56
  %v141 = vunpack.c.l.b16 %v57
  %v142 = vunpack.c.l.b16 %v58
  %v143 = vunpack.c.l.b16 %v59
  %v144 = vunpack.c.l.b16 %v60
  %v145 = vunpack.c.l.b16 %v61
  %v146 = vunpack.c.l.b16 %v62
  %v147 = vpack.c.b16 %v116, %v115
  %v148 = vpack.c.b16 %v118, %v117
  %v149 = vpack.c.b16 %v120, %v119
  %v150 = vpack.c.b16 %v122, %v121
  %v151 = vpack.c.b16 %v124, %v123
  %v152 = vpack.c.b16 %v126, %v125
  %v153 = vpack.c.b16 %v128, %v127
  %v154 = vpack.c.b16 %v130, %v129
  %v155 = vpack.c.b16 %v132, %v131
  %v156 = vpack.c.b16 %v134, %v133
  %v157 = vpack.c.b16 %v136, %v135
  %v158 = vpack.c.b16 %v138, %v137
  %v159 = vpack.c.b16 %v140, %v139
  %v160 = vpack.c.b16 %v142, %v141
  %v161 = vpack.c.b16 %v144, %v143
  %v162 = vpack.c.b16 %v146, %v145
  %179 = vmatprep.subr.bf16.mxu0 0
  %180 = vmatpush1.bf16.msra.mxu0 %v147
  %181 = vmatprep.subr.bf16.mxu0 0
  %182 = vmatpush1.bf16.msra.mxu0 %v148
  %183 = vmatprep.subr.bf16.mxu0 0
  %184 = vmatpush1.bf16.msra.mxu0 %v149
  %185 = vmatprep.subr.bf16.mxu0 0
  %186 = vmatpush1.bf16.msra.mxu0 %v150
  %187 = vmatprep.subr.bf16.mxu0 0
  %188 = vmatpush1.bf16.msra.mxu0 %v151
  %189 = vmatprep.subr.bf16.mxu0 0
  %190 = vmatpush1.bf16.msra.mxu0 %v152
  %191 = vmatprep.subr.bf16.mxu0 0
  %192 = vmatpush1.bf16.msra.mxu0 %v153
  %193 = vmatprep.subr.bf16.mxu0 0
  %194 = vmatpush1.bf16.msra.mxu0 %v154
  %195 = vmatprep.subr.bf16.mxu0 0
  %196 = vmatpush1.bf16.msra.mxu0 %v155
  %197 = vmatprep.subr.bf16.mxu0 0
  %198 = vmatpush1.bf16.msra.mxu0 %v156
  %199 = vmatprep.subr.bf16.mxu0 0
  %200 = vmatpush1.bf16.msra.mxu0 %v157
  %201 = vmatprep.subr.bf16.mxu0 0
  %202 = vmatpush1.bf16.msra.mxu0 %v158
  %203 = vmatprep.subr.bf16.mxu0 0
  %204 = vmatpush1.bf16.msra.mxu0 %v159
  %205 = vmatprep.subr.bf16.mxu0 0
  %206 = vmatpush1.bf16.msra.mxu0 %v160
  %207 = vmatprep.subr.bf16.mxu0 0
  %208 = vmatpush1.bf16.msra.mxu0 %v161
  %209 = vmatprep.subr.bf16.mxu0 0
  %210 = vmatpush1.bf16.msra.mxu0 %v162
  %211 = vmatprep.mubr.bf16.mxu0 %v76
  %212 = vmatmul.mubr.bf16.gmra.mrb[0].mxu0 %v75
  %v213 = vpop.f32.mrb[0].mxu0
  %v214 = vadd.f32 0.0, %v213
  %v215 = vpop.f32.mrb[0].mxu0
  %v216 = vpop.f32.mrb[0].mxu0
  %v217 = vadd.f32 0.0, %v216
  %v218 = vpop.f32.mrb[0].mxu0
  %219 = vmatprep.mubr.bf16.mxu0 %v78
  %220 = vmatmul.mubr.bf16.gmra.mrb[0].mxu0 %v77
  %v221 = vpop.f32.mrb[0].mxu0
  %v222 = vadd.f32 0.0, %v221
  %v223 = vpop.f32.mrb[0].mxu0
  %v224 = vpop.f32.mrb[0].mxu0
  %v225 = vadd.f32 0.0, %v224
  %v226 = vpop.f32.mrb[0].mxu0
  %227 = vdwg.mxu0
  %v228 = vadd.f32 %v23, %v214
  %v229 = vadd.f32 %v24, %v217
  %v230 = vadd.f32 %v25, %v222
  %v231 = vadd.f32 %v26, %v225
  %232 = vst [vmem:[#allocation2] sm:$0xff] %v228
  %233 = vst [vmem:[#allocation2 + $0x8] sm:$0xff] %v229
  %234 = vst [vmem:[#allocation2 + $0x10] sm:$0xff] %v230
  %235 = vst [vmem:[#allocation2 + $0x18] sm:$0xff] %v231
  // Predicated region
  $region18: #{discrete_vae_forward.11} parent=0 // pred_check
    %p236 = pneg %p15
  $region19: #{discrete_vae_forward.11} parent=0 // pred_check_branch
    %238 = sbr.rel (%p236) target = $region21
  $region20: #{discrete_vae_forward.11} parent=0 // pred_region
    %v239 = vld [vmem:[#allocation2] sm:$0xff]
    %v240 = vld [vmem:[#allocation2 + $0x8] sm:$0xff]
    %v241 = vld [vmem:[#allocation2 + $0x10] sm:$0xff]
    %v242 = vld [vmem:[#allocation2 + $0x18] sm:$0xff]
    %v243 = vld [vmem:[%s2] sm:$0x1]
    %v245 = vlaneseq
    %v246 = vshrl.u32 %v245, 7
    %v247 = vsub.s32 0, %v246
    %v248 = vrot.slane %v243, %v247
    %v250 = vadd.f32 %v239, %v248
    %v251 = vadd.f32 %v240, %v248
    %v252 = vadd.f32 %v241, %v248
    %v253 = vadd.f32 %v242, %v248
    %v254 = vmax.f32 %v250, 0.0
    %v255 = vmax.f32 %v251, 0.0
    %v256 = vmax.f32 %v252, 0.0
    %v257 = vmax.f32 %v253, 0.0
    %v258 = vpack.c.bf16 %v255, %v254
    %v259 = vpack.c.bf16 %v257, %v256
    %v262 = vunpack.c.l.b16 %v258
    %v263 = vunpack.c.h.b16 %v258
    %v264 = vunpack.c.l.b16 %v259
    %v265 = vunpack.c.h.b16 %v259
    %v266 = vpack.c.b16 %v262, %v262
    %v267 = vpack.c.b16 %v263, %v263
    %v268 = vpack.c.b16 %v264, %v264
    %v269 = vpack.c.b16 %v265, %v265
    %274 = vst [vmem:[%s3] sm:$0xf] %v266
    %275 = vst [vmem:[%s3 + $0x4] sm:$0xf] %v267
    %276 = vst [vmem:[%s3 + $0x8] sm:$0xf] %v268
    %277 = vst [vmem:[%s3 + $0xc] sm:$0xf] %v269
  $region21: #{discrete_vae_forward.11} parent=0 // pred_fallthru
    _
  // Predicated region
  $region22: #{discrete_vae_forward.11} parent=0 // pred_check
    _
  $region23: #{discrete_vae_forward.11} parent=0 // pred_check_branch
    %279 = sbr.rel (0) target = $region25
  $region24: #{discrete_vae_forward.11} parent=0 // pred_region
    _
  $region25: #{discrete_vae_forward.11} parent=0 // pred_fallthru
    _
  // Predicated region
  $region26: #{discrete_vae_forward.11} parent=0 // pred_check
    _
  $region27: #{discrete_vae_forward.11} parent=0 // pred_check_branch
    %281 = sbr.rel (0) target = $region29
  $region28: #{discrete_vae_forward.11} parent=0 // pred_region
    _
  $region29: #{discrete_vae_forward.11} parent=0 // pred_fallthru
    _

// kernel: discrete_vae_forward.13
$region0: #{discrete_vae_forward.13}
  #allocation0 [shape = 'u32[]', space=smem, size = 0x4, offset = 0x4, fixed_abs, tag = 'smem constant byte address 0x4 - core index']
  #allocation1 [shape = 'u32[144,128]{1,0:T(1,128)}', space=vmem, size = 0x12000, scoped, tag = 'internal scratch']
  #allocation2 [shape = 'f32[512,128]{1,0:T(8,128)}', space=vmem, size = 0x40000, scoped, tag = 'scratch operand']
  %s0 = inlined_call_operand.vmem [shape: bf16[512,128], index: 0, kind: input, shape index: {}]
  %s1 = inlined_call_operand.vmem [shape: bf16[128,128], index: 1, kind: input, shape index: {}]
  %s2 = inlined_call_operand.vmem [shape: f32[1,128], index: 2, kind: input, shape index: {}]
  %s3 = inlined_call_operand.vmem [shape: f32[512,128], index: 3, kind: output, shape index: {}]
  %s4 = sld [smem:[#allocation0]]
  $region30: #{discrete_vae_forward.13} parent=0
    _
  %s6 = ssub.s32 1, %s4
  %s7 = scalar_select 0, %s6, %s4
  // Predicated region
  $region2: #{discrete_vae_forward.13} parent=0 // pred_check
    _
  $region3: #{discrete_vae_forward.13} parent=0 // pred_check_branch
    %9 = sbr.rel (0) target = $region5
  $region4: #{discrete_vae_forward.13} parent=0 // pred_region
    _
  $region5: #{discrete_vae_forward.13} parent=0 // pred_fallthru
    _
  // Predicated region
  $region6: #{discrete_vae_forward.13} parent=0 // pred_check
    _
  $region7: #{discrete_vae_forward.13} parent=0 // pred_check_branch
    %11 = sbr.rel (0) target = $region9
  $region8: #{discrete_vae_forward.13} parent=0 // pred_region
    _
  $region9: #{discrete_vae_forward.13} parent=0 // pred_fallthru
    _
  // Predicated region
  $region10: #{discrete_vae_forward.13} parent=0 // pred_check
    _
  $region11: #{discrete_vae_forward.13} parent=0 // pred_check_branch
    %13 = sbr.rel (0) target = $region13
  $region12: #{discrete_vae_forward.13} parent=0 // pred_region
    _
  $region13: #{discrete_vae_forward.13} parent=0 // pred_fallthru
    _
  %p15 = scmp.eq.s32.totalorder 0, 0
  // Predicated region
  $region14: #{discrete_vae_forward.13} parent=0 // pred_check
    %p16 = pneg %p15
  $region15: #{discrete_vae_forward.13} parent=0 // pred_check_branch
    %18 = sbr.rel (%p16) target = $region17
  $region16: #{discrete_vae_forward.13} parent=0 // pred_region
    %19 = vst [vmem:[#allocation2] sm:$0xff] 0.0
    %20 = vst [vmem:[#allocation2 + $0x8] sm:$0xff] 0.0
    %21 = vst [vmem:[#allocation2 + $0x10] sm:$0xff] 0.0
    %22 = vst [vmem:[#allocation2 + $0x18] sm:$0xff] 0.0
    %23 = vst [vmem:[#allocation2 + $0x20] sm:$0xff] 0.0
    %24 = vst [vmem:[#allocation2 + $0x28] sm:$0xff] 0.0
    %25 = vst [vmem:[#allocation2 + $0x30] sm:$0xff] 0.0
    %26 = vst [vmem:[#allocation2 + $0x38] sm:$0xff] 0.0
    %27 = vst [vmem:[#allocation2 + $0x40] sm:$0xff] 0.0
    %28 = vst [vmem:[#allocation2 + $0x48] sm:$0xff] 0.0
    %29 = vst [vmem:[#allocation2 + $0x50] sm:$0xff] 0.0
    %30 = vst [vmem:[#allocation2 + $0x58] sm:$0xff] 0.0
    %31 = vst [vmem:[#allocation2 + $0x60] sm:$0xff] 0.0
    %32 = vst [vmem:[#allocation2 + $0x68] sm:$0xff] 0.0
    %33 = vst [vmem:[#allocation2 + $0x70] sm:$0xff] 0.0
    %34 = vst [vmem:[#allocation2 + $0x78] sm:$0xff] 0.0
    %35 = vst [vmem:[#allocation2 + $0x80] sm:$0xff] 0.0
    %36 = vst [vmem:[#allocation2 + $0x88] sm:$0xff] 0.0
    %37 = vst [vmem:[#allocation2 + $0x90] sm:$0xff] 0.0
    %38 = vst [vmem:[#allocation2 + $0x98] sm:$0xff] 0.0
    %39 = vst [vmem:[#allocation2 + $0xa0] sm:$0xff] 0.0
    %40 = vst [vmem:[#allocation2 + $0xa8] sm:$0xff] 0.0
    %41 = vst [vmem:[#allocation2 + $0xb0] sm:$0xff] 0.0
    %42 = vst [vmem:[#allocation2 + $0xb8] sm:$0xff] 0.0
    %43 = vst [vmem:[#allocation2 + $0xc0] sm:$0xff] 0.0
    %44 = vst [vmem:[#allocation2 + $0xc8] sm:$0xff] 0.0
    %45 = vst [vmem:[#allocation2 + $0xd0] sm:$0xff] 0.0
    %46 = vst [vmem:[#allocation2 + $0xd8] sm:$0xff] 0.0
    %47 = vst [vmem:[#allocation2 + $0xe0] sm:$0xff] 0.0
    %48 = vst [vmem:[#allocation2 + $0xe8] sm:$0xff] 0.0
    %49 = vst [vmem:[#allocation2 + $0xf0] sm:$0xff] 0.0
    %50 = vst [vmem:[#allocation2 + $0xf8] sm:$0xff] 0.0
    %51 = vst [vmem:[#allocation2 + $0x100] sm:$0xff] 0.0
    %52 = vst [vmem:[#allocation2 + $0x108] sm:$0xff] 0.0
    %53 = vst [vmem:[#allocation2 + $0x110] sm:$0xff] 0.0
    %54 = vst [vmem:[#allocation2 + $0x118] sm:$0xff] 0.0
    %55 = vst [vmem:[#allocation2 + $0x120] sm:$0xff] 0.0
    %56 = vst [vmem:[#allocation2 + $0x128] sm:$0xff] 0.0
    %57 = vst [vmem:[#allocation2 + $0x130] sm:$0xff] 0.0
    %58 = vst [vmem:[#allocation2 + $0x138] sm:$0xff] 0.0
    %59 = vst [vmem:[#allocation2 + $0x140] sm:$0xff] 0.0
    %60 = vst [vmem:[#allocation2 + $0x148] sm:$0xff] 0.0
    %61 = vst [vmem:[#allocation2 + $0x150] sm:$0xff] 0.0
    %62 = vst [vmem:[#allocation2 + $0x158] sm:$0xff] 0.0
    %63 = vst [vmem:[#allocation2 + $0x160] sm:$0xff] 0.0
    %64 = vst [vmem:[#allocation2 + $0x168] sm:$0xff] 0.0
    %65 = vst [vmem:[#allocation2 + $0x170] sm:$0xff] 0.0
    %66 = vst [vmem:[#allocation2 + $0x178] sm:$0xff] 0.0
    %67 = vst [vmem:[#allocation2 + $0x180] sm:$0xff] 0.0
    %68 = vst [vmem:[#allocation2 + $0x188] sm:$0xff] 0.0
    %69 = vst [vmem:[#allocation2 + $0x190] sm:$0xff] 0.0
    %70 = vst [vmem:[#allocation2 + $0x198] sm:$0xff] 0.0
    %71 = vst [vmem:[#allocation2 + $0x1a0] sm:$0xff] 0.0
    %72 = vst [vmem:[#allocation2 + $0x1a8] sm:$0xff] 0.0
    %73 = vst [vmem:[#allocation2 + $0x1b0] sm:$0xff] 0.0
    %74 = vst [vmem:[#allocation2 + $0x1b8] sm:$0xff] 0.0
    %75 = vst [vmem:[#allocation2 + $0x1c0] sm:$0xff] 0.0
    %76 = vst [vmem:[#allocation2 + $0x1c8] sm:$0xff] 0.0
    %77 = vst [vmem:[#allocation2 + $0x1d0] sm:$0xff] 0.0
    %78 = vst [vmem:[#allocation2 + $0x1d8] sm:$0xff] 0.0
    %79 = vst [vmem:[#allocation2 + $0x1e0] sm:$0xff] 0.0
    %80 = vst [vmem:[#allocation2 + $0x1e8] sm:$0xff] 0.0
    %81 = vst [vmem:[#allocation2 + $0x1f0] sm:$0xff] 0.0
    %82 = vst [vmem:[#allocation2 + $0x1f8] sm:$0xff] 0.0
  $region17: #{discrete_vae_forward.13} parent=0 // pred_fallthru
    _
  %v83 = vld [vmem:[#allocation2] sm:$0xff]
  %v84 = vld [vmem:[#allocation2 + $0x8] sm:$0xff]
  %v85 = vld [vmem:[#allocation2 + $0x10] sm:$0xff]
  %v86 = vld [vmem:[#allocation2 + $0x18] sm:$0xff]
  %v87 = vld [vmem:[#allocation2 + $0x20] sm:$0xff]
  %v88 = vld [vmem:[#allocation2 + $0x28] sm:$0xff]
  %v89 = vld [vmem:[#allocation2 + $0x30] sm:$0xff]
  %v90 = vld [vmem:[#allocation2 + $0x38] sm:$0xff]
  %v91 = vld [vmem:[#allocation2 + $0x40] sm:$0xff]
  %v92 = vld [vmem:[#allocation2 + $0x48] sm:$0xff]
  %v93 = vld [vmem:[#allocation2 + $0x50] sm:$0xff]
  %v94 = vld [vmem:[#allocation2 + $0x58] sm:$0xff]
  %v95 = vld [vmem:[#allocation2 + $0x60] sm:$0xff]
  %v96 = vld [vmem:[#allocation2 + $0x68] sm:$0xff]
  %v97 = vld [vmem:[#allocation2 + $0x70] sm:$0xff]
  %v98 = vld [vmem:[#allocation2 + $0x78] sm:$0xff]
  %v99 = vld [vmem:[#allocation2 + $0x80] sm:$0xff]
  %v100 = vld [vmem:[#allocation2 + $0x88] sm:$0xff]
  %v101 = vld [vmem:[#allocation2 + $0x90] sm:$0xff]
  %v102 = vld [vmem:[#allocation2 + $0x98] sm:$0xff]
  %v103 = vld [vmem:[#allocation2 + $0xa0] sm:$0xff]
  %v104 = vld [vmem:[#allocation2 + $0xa8] sm:$0xff]
  %v105 = vld [vmem:[#allocation2 + $0xb0] sm:$0xff]
  %v106 = vld [vmem:[#allocation2 + $0xb8] sm:$0xff]
  %v107 = vld [vmem:[#allocation2 + $0xc0] sm:$0xff]
  %v108 = vld [vmem:[#allocation2 + $0xc8] sm:$0xff]
  %v109 = vld [vmem:[#allocation2 + $0xd0] sm:$0xff]
  %v110 = vld [vmem:[#allocation2 + $0xd8] sm:$0xff]
  %v111 = vld [vmem:[#allocation2 + $0xe0] sm:$0xff]
  %v112 = vld [vmem:[#allocation2 + $0xe8] sm:$0xff]
  %v113 = vld [vmem:[#allocation2 + $0xf0] sm:$0xff]
  %v114 = vld [vmem:[#allocation2 + $0xf8] sm:$0xff]
  %v115 = vld [vmem:[#allocation2 + $0x100] sm:$0xff]
  %v116 = vld [vmem:[#allocation2 + $0x108] sm:$0xff]
  %v117 = vld [vmem:[#allocation2 + $0x110] sm:$0xff]
  %v118 = vld [vmem:[#allocation2 + $0x118] sm:$0xff]
  %v119 = vld [vmem:[#allocation2 + $0x120] sm:$0xff]
  %v120 = vld [vmem:[#allocation2 + $0x128] sm:$0xff]
  %v121 = vld [vmem:[#allocation2 + $0x130] sm:$0xff]
  %v122 = vld [vmem:[#allocation2 + $0x138] sm:$0xff]
  %v123 = vld [vmem:[#allocation2 + $0x140] sm:$0xff]
  %v124 = vld [vmem:[#allocation2 + $0x148] sm:$0xff]
  %v125 = vld [vmem:[#allocation2 + $0x150] sm:$0xff]
  %v126 = vld [vmem:[#allocation2 + $0x158] sm:$0xff]
  %v127 = vld [vmem:[#allocation2 + $0x160] sm:$0xff]
  %v128 = vld [vmem:[#allocation2 + $0x168] sm:$0xff]
  %v129 = vld [vmem:[#allocation2 + $0x170] sm:$0xff]
  %v130 = vld [vmem:[#allocation2 + $0x178] sm:$0xff]
  %v131 = vld [vmem:[#allocation2 + $0x180] sm:$0xff]
  %v132 = vld [vmem:[#allocation2 + $0x188] sm:$0xff]
  %v133 = vld [vmem:[#allocation2 + $0x190] sm:$0xff]
  %v134 = vld [vmem:[#allocation2 + $0x198] sm:$0xff]
  %v135 = vld [vmem:[#allocation2 + $0x1a0] sm:$0xff]
  %v136 = vld [vmem:[#allocation2 + $0x1a8] sm:$0xff]
  %v137 = vld [vmem:[#allocation2 + $0x1b0] sm:$0xff]
  %v138 = vld [vmem:[#allocation2 + $0x1b8] sm:$0xff]
  %v139 = vld [vmem:[#allocation2 + $0x1c0] sm:$0xff]
  %v140 = vld [vmem:[#allocation2 + $0x1c8] sm:$0xff]
  %v141 = vld [vmem:[#allocation2 + $0x1d0] sm:$0xff]
  %v142 = vld [vmem:[#allocation2 + $0x1d8] sm:$0xff]
  %v143 = vld [vmem:[#allocation2 + $0x1e0] sm:$0xff]
  %v144 = vld [vmem:[#allocation2 + $0x1e8] sm:$0xff]
  %v145 = vld [vmem:[#allocation2 + $0x1f0] sm:$0xff]
  %v146 = vld [vmem:[#allocation2 + $0x1f8] sm:$0xff]
  %v147 = vld [vmem:[%s0] sm:$0xf]
  %v148 = vld [vmem:[%s0 + $0x4] sm:$0xf]
  %v149 = vld [vmem:[%s0 + $0x8] sm:$0xf]
  %v150 = vld [vmem:[%s0 + $0xc] sm:$0xf]
  %v151 = vld [vmem:[%s0 + $0x10] sm:$0xf]
  %v152 = vld [vmem:[%s0 + $0x14] sm:$0xf]
  %v153 = vld [vmem:[%s0 + $0x18] sm:$0xf]
  %v154 = vld [vmem:[%s0 + $0x1c] sm:$0xf]
  %v155 = vld [vmem:[%s0 + $0x20] sm:$0xf]
  %v156 = vld [vmem:[%s0 + $0x24] sm:$0xf]
  %v157 = vld [vmem:[%s0 + $0x28] sm:$0xf]
  %v158 = vld [vmem:[%s0 + $0x2c] sm:$0xf]
  %v159 = vld [vmem:[%s0 + $0x30] sm:$0xf]
  %v160 = vld [vmem:[%s0 + $0x34] sm:$0xf]
  %v161 = vld [vmem:[%s0 + $0x38] sm:$0xf]
  %v162 = vld [vmem:[%s0 + $0x3c] sm:$0xf]
  %v163 = vld [vmem:[%s0 + $0x40] sm:$0xf]
  %v164 = vld [vmem:[%s0 + $0x44] sm:$0xf]
  %v165 = vld [vmem:[%s0 + $0x48] sm:$0xf]
  %v166 = vld [vmem:[%s0 + $0x4c] sm:$0xf]
  %v167 = vld [vmem:[%s0 + $0x50] sm:$0xf]
  %v168 = vld [vmem:[%s0 + $0x54] sm:$0xf]
  %v169 = vld [vmem:[%s0 + $0x58] sm:$0xf]
  %v170 = vld [vmem:[%s0 + $0x5c] sm:$0xf]
  %v171 = vld [vmem:[%s0 + $0x60] sm:$0xf]
  %v172 = vld [vmem:[%s0 + $0x64] sm:$0xf]
  %v173 = vld [vmem:[%s0 + $0x68] sm:$0xf]
  %v174 = vld [vmem:[%s0 + $0x6c] sm:$0xf]
  %v175 = vld [vmem:[%s0 + $0x70] sm:$0xf]
  %v176 = vld [vmem:[%s0 + $0x74] sm:$0xf]
  %v177 = vld [vmem:[%s0 + $0x78] sm:$0xf]
  %v178 = vld [vmem:[%s0 + $0x7c] sm:$0xf]
  %v179 = vld [vmem:[%s0 + $0x80] sm:$0xf]
  %v180 = vld [vmem:[%s0 + $0x84] sm:$0xf]
  %v181 = vld [vmem:[%s0 + $0x88] sm:$0xf]
  %v182 = vld [vmem:[%s0 + $0x8c] sm:$0xf]
  %v183 = vld [vmem:[%s0 + $0x90] sm:$0xf]
  %v184 = vld [vmem:[%s0 + $0x94] sm:$0xf]
  %v185 = vld [vmem:[%s0 + $0x98] sm:$0xf]
  %v186 = vld [vmem:[%s0 + $0x9c] sm:$0xf]
  %v187 = vld [vmem:[%s0 + $0xa0] sm:$0xf]
  %v188 = vld [vmem:[%s0 + $0xa4] sm:$0xf]
  %v189 = vld [vmem:[%s0 + $0xa8] sm:$0xf]
  %v190 = vld [vmem:[%s0 + $0xac] sm:$0xf]
  %v191 = vld [vmem:[%s0 + $0xb0] sm:$0xf]
  %v192 = vld [vmem:[%s0 + $0xb4] sm:$0xf]
  %v193 = vld [vmem:[%s0 + $0xb8] sm:$0xf]
  %v194 = vld [vmem:[%s0 + $0xbc] sm:$0xf]
  %v195 = vld [vmem:[%s0 + $0xc0] sm:$0xf]
  %v196 = vld [vmem:[%s0 + $0xc4] sm:$0xf]
  %v197 = vld [vmem:[%s0 + $0xc8] sm:$0xf]
  %v198 = vld [vmem:[%s0 + $0xcc] sm:$0xf]
  %v199 = vld [vmem:[%s0 + $0xd0] sm:$0xf]
  %v200 = vld [vmem:[%s0 + $0xd4] sm:$0xf]
  %v201 = vld [vmem:[%s0 + $0xd8] sm:$0xf]
  %v202 = vld [vmem:[%s0 + $0xdc] sm:$0xf]
  %v203 = vld [vmem:[%s0 + $0xe0] sm:$0xf]
  %v204 = vld [vmem:[%s0 + $0xe4] sm:$0xf]
  %v205 = vld [vmem:[%s0 + $0xe8] sm:$0xf]
  %v206 = vld [vmem:[%s0 + $0xec] sm:$0xf]
  %v207 = vld [vmem:[%s0 + $0xf0] sm:$0xf]
  %v208 = vld [vmem:[%s0 + $0xf4] sm:$0xf]
  %v209 = vld [vmem:[%s0 + $0xf8] sm:$0xf]
  %v210 = vld [vmem:[%s0 + $0xfc] sm:$0xf]
  %v211 = vld [vmem:[%s1] sm:$0xf]
  %v212 = vld [vmem:[%s1 + $0x4] sm:$0xf]
  %v213 = vld [vmem:[%s1 + $0x8] sm:$0xf]
  %v214 = vld [vmem:[%s1 + $0xc] sm:$0xf]
  %v215 = vld [vmem:[%s1 + $0x10] sm:$0xf]
  %v216 = vld [vmem:[%s1 + $0x14] sm:$0xf]
  %v217 = vld [vmem:[%s1 + $0x18] sm:$0xf]
  %v218 = vld [vmem:[%s1 + $0x1c] sm:$0xf]
  %v219 = vld [vmem:[%s1 + $0x20] sm:$0xf]
  %v220 = vld [vmem:[%s1 + $0x24] sm:$0xf]
  %v221 = vld [vmem:[%s1 + $0x28] sm:$0xf]
  %v222 = vld [vmem:[%s1 + $0x2c] sm:$0xf]
  %v223 = vld [vmem:[%s1 + $0x30] sm:$0xf]
  %v224 = vld [vmem:[%s1 + $0x34] sm:$0xf]
  %v225 = vld [vmem:[%s1 + $0x38] sm:$0xf]
  %v226 = vld [vmem:[%s1 + $0x3c] sm:$0xf]
  %v291 = vunpack.c.l.b16 %v147
  %v292 = vunpack.c.l.b16 %v148
  %v293 = vunpack.c.l.b16 %v149
  %v294 = vunpack.c.l.b16 %v150
  %v295 = vunpack.c.l.b16 %v151
  %v296 = vunpack.c.l.b16 %v152
  %v297 = vunpack.c.l.b16 %v153
  %v298 = vunpack.c.l.b16 %v154
  %v299 = vunpack.c.l.b16 %v155
  %v300 = vunpack.c.l.b16 %v156
  %v301 = vunpack.c.l.b16 %v157
  %v302 = vunpack.c.l.b16 %v158
  %v303 = vunpack.c.l.b16 %v159
  %v304 = vunpack.c.l.b16 %v160
  %v305 = vunpack.c.l.b16 %v161
  %v306 = vunpack.c.l.b16 %v162
  %v307 = vunpack.c.l.b16 %v163
  %v308 = vunpack.c.l.b16 %v164
  %v309 = vunpack.c.l.b16 %v165
  %v310 = vunpack.c.l.b16 %v166
  %v311 = vunpack.c.l.b16 %v167
  %v312 = vunpack.c.l.b16 %v168
  %v313 = vunpack.c.l.b16 %v169
  %v314 = vunpack.c.l.b16 %v170
  %v315 = vunpack.c.l.b16 %v171
  %v316 = vunpack.c.l.b16 %v172
  %v317 = vunpack.c.l.b16 %v173
  %v318 = vunpack.c.l.b16 %v174
  %v319 = vunpack.c.l.b16 %v175
  %v320 = vunpack.c.l.b16 %v176
  %v321 = vunpack.c.l.b16 %v177
  %v322 = vunpack.c.l.b16 %v178
  %v323 = vunpack.c.l.b16 %v179
  %v324 = vunpack.c.l.b16 %v180
  %v325 = vunpack.c.l.b16 %v181
  %v326 = vunpack.c.l.b16 %v182
  %v327 = vunpack.c.l.b16 %v183
  %v328 = vunpack.c.l.b16 %v184
  %v329 = vunpack.c.l.b16 %v185
  %v330 = vunpack.c.l.b16 %v186
  %v331 = vunpack.c.l.b16 %v187
  %v332 = vunpack.c.l.b16 %v188
  %v333 = vunpack.c.l.b16 %v189
  %v334 = vunpack.c.l.b16 %v190
  %v335 = vunpack.c.l.b16 %v191
  %v336 = vunpack.c.l.b16 %v192
  %v337 = vunpack.c.l.b16 %v193
  %v338 = vunpack.c.l.b16 %v194
  %v339 = vunpack.c.l.b16 %v195
  %v340 = vunpack.c.l.b16 %v196
  %v341 = vunpack.c.l.b16 %v197
  %v342 = vunpack.c.l.b16 %v198
  %v343 = vunpack.c.l.b16 %v199
  %v344 = vunpack.c.l.b16 %v200
  %v345 = vunpack.c.l.b16 %v201
  %v346 = vunpack.c.l.b16 %v202
  %v347 = vunpack.c.l.b16 %v203
  %v348 = vunpack.c.l.b16 %v204
  %v349 = vunpack.c.l.b16 %v205
  %v350 = vunpack.c.l.b16 %v206
  %v351 = vunpack.c.l.b16 %v207
  %v352 = vunpack.c.l.b16 %v208
  %v353 = vunpack.c.l.b16 %v209
  %v354 = vunpack.c.l.b16 %v210
  %v355 = vpack.c.b16 %v292, %v291
  %v356 = vpack.c.b16 %v294, %v293
  %v357 = vpack.c.b16 %v296, %v295
  %v358 = vpack.c.b16 %v298, %v297
  %v359 = vpack.c.b16 %v300, %v299
  %v360 = vpack.c.b16 %v302, %v301
  %v361 = vpack.c.b16 %v304, %v303
  %v362 = vpack.c.b16 %v306, %v305
  %v363 = vpack.c.b16 %v308, %v307
  %v364 = vpack.c.b16 %v310, %v309
  %v365 = vpack.c.b16 %v312, %v311
  %v366 = vpack.c.b16 %v314, %v313
  %v367 = vpack.c.b16 %v316, %v315
  %v368 = vpack.c.b16 %v318, %v317
  %v369 = vpack.c.b16 %v320, %v319
  %v370 = vpack.c.b16 %v322, %v321
  %v371 = vpack.c.b16 %v324, %v323
  %v372 = vpack.c.b16 %v326, %v325
  %v373 = vpack.c.b16 %v328, %v327
  %v374 = vpack.c.b16 %v330, %v329
  %v375 = vpack.c.b16 %v332, %v331
  %v376 = vpack.c.b16 %v334, %v333
  %v377 = vpack.c.b16 %v336, %v335
  %v378 = vpack.c.b16 %v338, %v337
  %v379 = vpack.c.b16 %v340, %v339
  %v380 = vpack.c.b16 %v342, %v341
  %v381 = vpack.c.b16 %v344, %v343
  %v382 = vpack.c.b16 %v346, %v345
  %v383 = vpack.c.b16 %v348, %v347
  %v384 = vpack.c.b16 %v350, %v349
  %v385 = vpack.c.b16 %v352, %v351
  %v386 = vpack.c.b16 %v354, %v353
  %v435 = vunpack.c.l.b16 %v211
  %v436 = vunpack.c.l.b16 %v212
  %v437 = vunpack.c.l.b16 %v213
  %v438 = vunpack.c.l.b16 %v214
  %v439 = vunpack.c.l.b16 %v215
  %v440 = vunpack.c.l.b16 %v216
  %v441 = vunpack.c.l.b16 %v217
  %v442 = vunpack.c.l.b16 %v218
  %v443 = vunpack.c.l.b16 %v219
  %v444 = vunpack.c.l.b16 %v220
  %v445 = vunpack.c.l.b16 %v221
  %v446 = vunpack.c.l.b16 %v222
  %v447 = vunpack.c.l.b16 %v223
  %v448 = vunpack.c.l.b16 %v224
  %v449 = vunpack.c.l.b16 %v225
  %v450 = vunpack.c.l.b16 %v226
  %v451 = vpack.c.b16 %v436, %v435
  %v452 = vpack.c.b16 %v438, %v437
  %v453 = vpack.c.b16 %v440, %v439
  %v454 = vpack.c.b16 %v442, %v441
  %v455 = vpack.c.b16 %v444, %v443
  %v456 = vpack.c.b16 %v446, %v445
  %v457 = vpack.c.b16 %v448, %v447
  %v458 = vpack.c.b16 %v450, %v449
  %467 = vmatprep.subr.bf16.mxu0 0
  %468 = vmatpush1.bf16.msra.mxu0 %v451
  %469 = vmatprep.subr.bf16.mxu0 0
  %470 = vmatpush1.bf16.msra.mxu0 %v452
  %471 = vmatprep.subr.bf16.mxu0 0
  %472 = vmatpush1.bf16.msra.mxu0 %v453
  %473 = vmatprep.subr.bf16.mxu0 0
  %474 = vmatpush1.bf16.msra.mxu0 %v454
  %475 = vmatprep.subr.bf16.mxu0 0
  %476 = vmatpush1.bf16.msra.mxu0 %v455
  %477 = vmatprep.subr.bf16.mxu0 0
  %478 = vmatpush1.bf16.msra.mxu0 %v456
  %479 = vmatprep.subr.bf16.mxu0 0
  %480 = vmatpush1.bf16.msra.mxu0 %v457
  %481 = vmatprep.subr.bf16.mxu0 0
  %482 = vmatpush1.bf16.msra.mxu0 %v458
  %483 = vmatprep.subr.bf16.mxu0 0
  %484 = vmatpush1.bf16.msra.mxu0 0
  %485 = vmatprep.subr.bf16.mxu0 0
  %486 = vmatpush1.bf16.msra.mxu0 0
  %487 = vmatprep.subr.bf16.mxu0 0
  %488 = vmatpush1.bf16.msra.mxu0 0
  %489 = vmatprep.subr.bf16.mxu0 0
  %490 = vmatpush1.bf16.msra.mxu0 0
  %491 = vmatprep.subr.bf16.mxu0 0
  %492 = vmatpush1.bf16.msra.mxu0 0
  %493 = vmatprep.subr.bf16.mxu0 0
  %494 = vmatpush1.bf16.msra.mxu0 0
  %495 = vmatprep.subr.bf16.mxu0 0
  %496 = vmatpush1.bf16.msra.mxu0 0
  %497 = vmatprep.subr.bf16.mxu0 0
  %498 = vmatpush1.bf16.msra.mxu0 0
  %499 = vmatprep.mubr.bf16.mxu0 0
  %500 = vmatmul.mubr.bf16.gmra.mrb[0].mxu0 %v355
  %v501 = vpop.f32.mrb[0].mxu0
  %v502 = vadd.f32 0.0, %v501
  %v503 = vpop.f32.mrb[0].mxu0
  %v504 = vpop.f32.mrb[0].mxu0
  %v505 = vadd.f32 0.0, %v504
  %v506 = vpop.f32.mrb[0].mxu0
  %507 = vmatprep.mubr.bf16.mxu0 0
  %508 = vmatmul.mubr.bf16.gmra.mrb[0].mxu0 %v356
  %v509 = vpop.f32.mrb[0].mxu0
  %v510 = vadd.f32 0.0, %v509
  %v511 = vpop.f32.mrb[0].mxu0
  %v512 = vpop.f32.mrb[0].mxu0
  %v513 = vadd.f32 0.0, %v512
  %v514 = vpop.f32.mrb[0].mxu0
  %515 = vmatprep.mubr.bf16.mxu0 0
  %516 = vmatmul.mubr.bf16.gmra.mrb[0].mxu0 %v357
  %v517 = vpop.f32.mrb[0].mxu0
  %v518 = vadd.f32 0.0, %v517
  %v519 = vpop.f32.mrb[0].mxu0
  %v520 = vpop.f32.mrb[0].mxu0
  %v521 = vadd.f32 0.0, %v520
  %v522 = vpop.f32.mrb[0].mxu0
  %523 = vmatprep.mubr.bf16.mxu0 0
  %524 = vmatmul.mubr.bf16.gmra.mrb[0].mxu0 %v358
  %v525 = vpop.f32.mrb[0].mxu0
  %v526 = vadd.f32 0.0, %v525
  %v527 = vpop.f32.mrb[0].mxu0
  %v528 = vpop.f32.mrb[0].mxu0
  %v529 = vadd.f32 0.0, %v528
  %v530 = vpop.f32.mrb[0].mxu0
  %531 = vmatprep.mubr.bf16.mxu0 0
  %532 = vmatmul.mubr.bf16.gmra.mrb[0].mxu0 %v359
  %v533 = vpop.f32.mrb[0].mxu0
  %v534 = vadd.f32 0.0, %v533
  %v535 = vpop.f32.mrb[0].mxu0
  %v536 = vpop.f32.mrb[0].mxu0
  %v537 = vadd.f32 0.0, %v536
  %v538 = vpop.f32.mrb[0].mxu0
  %539 = vmatprep.mubr.bf16.mxu0 0
  %540 = vmatmul.mubr.bf16.gmra.mrb[0].mxu0 %v360
  %v541 = vpop.f32.mrb[0].mxu0
  %v542 = vadd.f32 0.0, %v541
  %v543 = vpop.f32.mrb[0].mxu0
  %v544 = vpop.f32.mrb[0].mxu0
  %v545 = vadd.f32 0.0, %v544
  %v546 = vpop.f32.mrb[0].mxu0
  %547 = vmatprep.mubr.bf16.mxu0 0
  %548 = vmatmul.mubr.bf16.gmra.mrb[0].mxu0 %v361
  %v549 = vpop.f32.mrb[0].mxu0
  %v550 = vadd.f32 0.0, %v549
  %v551 = vpop.f32.mrb[0].mxu0
  %v552 = vpop.f32.mrb[0].mxu0
  %v553 = vadd.f32 0.0, %v552
  %v554 = vpop.f32.mrb[0].mxu0
  %555 = vmatprep.mubr.bf16.mxu0 0
  %556 = vmatmul.mubr.bf16.gmra.mrb[0].mxu0 %v362
  %v557 = vpop.f32.mrb[0].mxu0
  %v558 = vadd.f32 0.0, %v557
  %v559 = vpop.f32.mrb[0].mxu0
  %v560 = vpop.f32.mrb[0].mxu0
  %v561 = vadd.f32 0.0, %v560
  %v562 = vpop.f32.mrb[0].mxu0
  %563 = vmatprep.mubr.bf16.mxu0 0
  %564 = vmatmul.mubr.bf16.gmra.mrb[0].mxu0 %v363
  %v565 = vpop.f32.mrb[0].mxu0
  %v566 = vadd.f32 0.0, %v565
  %v567 = vpop.f32.mrb[0].mxu0
  %v568 = vpop.f32.mrb[0].mxu0
  %v569 = vadd.f32 0.0, %v568
  %v570 = vpop.f32.mrb[0].mxu0
  %571 = vmatprep.mubr.bf16.mxu0 0
  %572 = vmatmul.mubr.bf16.gmra.mrb[0].mxu0 %v364
  %v573 = vpop.f32.mrb[0].mxu0
  %v574 = vadd.f32 0.0, %v573
  %v575 = vpop.f32.mrb[0].mxu0
  %v576 = vpop.f32.mrb[0].mxu0
  %v577 = vadd.f32 0.0, %v576
  %v578 = vpop.f32.mrb[0].mxu0
  %579 = vmatprep.mubr.bf16.mxu0 0
  %580 = vmatmul.mubr.bf16.gmra.mrb[0].mxu0 %v365
  %v581 = vpop.f32.mrb[0].mxu0
  %v582 = vadd.f32 0.0, %v581
  %v583 = vpop.f32.mrb[0].mxu0
  %v584 = vpop.f32.mrb[0].mxu0
  %v585 = vadd.f32 0.0, %v584
  %v586 = vpop.f32.mrb[0].mxu0
  %587 = vmatprep.mubr.bf16.mxu0 0
  %588 = vmatmul.mubr.bf16.gmra.mrb[0].mxu0 %v366
  %v589 = vpop.f32.mrb[0].mxu0
  %v590 = vadd.f32 0.0, %v589
  %v591 = vpop.f32.mrb[0].mxu0
  %v592 = vpop.f32.mrb[0].mxu0
  %v593 = vadd.f32 0.0, %v592
  %v594 = vpop.f32.mrb[0].mxu0
  %595 = vmatprep.mubr.bf16.mxu0 0
  %596 = vmatmul.mubr.bf16.gmra.mrb[0].mxu0 %v367
  %v597 = vpop.f32.mrb[0].mxu0
  %v598 = vadd.f32 0.0, %v597
  %v599 = vpop.f32.mrb[0].mxu0
  %v600 = vpop.f32.mrb[0].mxu0
  %v601 = vadd.f32 0.0, %v600
  %v602 = vpop.f32.mrb[0].mxu0
  %603 = vmatprep.mubr.bf16.mxu0 0
  %604 = vmatmul.mubr.bf16.gmra.mrb[0].mxu0 %v368
  %v605 = vpop.f32.mrb[0].mxu0
  %v606 = vadd.f32 0.0, %v605
  %v607 = vpop.f32.mrb[0].mxu0
  %v608 = vpop.f32.mrb[0].mxu0
  %v609 = vadd.f32 0.0, %v608
  %v610 = vpop.f32.mrb[0].mxu0
  %611 = vmatprep.mubr.bf16.mxu0 0
  %612 = vmatmul.mubr.bf16.gmra.mrb[0].mxu0 %v369
  %v613 = vpop.f32.mrb[0].mxu0
  %v614 = vadd.f32 0.0, %v613
  %v615 = vpop.f32.mrb[0].mxu0
  %v616 = vpop.f32.mrb[0].mxu0
  %v617 = vadd.f32 0.0, %v616
  %v618 = vpop.f32.mrb[0].mxu0
  %619 = vmatprep.mubr.bf16.mxu0 0
  %620 = vmatmul.mubr.bf16.gmra.mrb[0].mxu0 %v370
  %v621 = vpop.f32.mrb[0].mxu0
  %v622 = vadd.f32 0.0, %v621
  %v623 = vpop.f32.mrb[0].mxu0
  %v624 = vpop.f32.mrb[0].mxu0
  %v625 = vadd.f32 0.0, %v624
  %v626 = vpop.f32.mrb[0].mxu0
  %627 = vmatprep.mubr.bf16.mxu0 0
  %628 = vmatmul.mubr.bf16.gmra.mrb[0].mxu0 %v371
  %v629 = vpop.f32.mrb[0].mxu0
  %v630 = vadd.f32 0.0, %v629
  %v631 = vpop.f32.mrb[0].mxu0
  %v632 = vpop.f32.mrb[0].mxu0
  %v633 = vadd.f32 0.0, %v632
  %v634 = vpop.f32.mrb[0].mxu0
  %635 = vmatprep.mubr.bf16.mxu0 0
  %636 = vmatmul.mubr.bf16.gmra.mrb[0].mxu0 %v372
  %v637 = vpop.f32.mrb[0].mxu0
  %v638 = vadd.f32 0.0, %v637
  %v639 = vpop.f32.mrb[0].mxu0
  %v640 = vpop.f32.mrb[0].mxu0
  %v641 = vadd.f32 0.0, %v640
  %v642 = vpop.f32.mrb[0].mxu0
  %643 = vmatprep.mubr.bf16.mxu0 0
  %644 = vmatmul.mubr.bf16.gmra.mrb[0].mxu0 %v373
  %v645 = vpop.f32.mrb[0].mxu0
  %v646 = vadd.f32 0.0, %v645
  %v647 = vpop.f32.mrb[0].mxu0
  %v648 = vpop.f32.mrb[0].mxu0
  %v649 = vadd.f32 0.0, %v648
  %v650 = vpop.f32.mrb[0].mxu0
  %651 = vmatprep.mubr.bf16.mxu0 0
  %652 = vmatmul.mubr.bf16.gmra.mrb[0].mxu0 %v374
  %v653 = vpop.f32.mrb[0].mxu0
  %v654 = vadd.f32 0.0, %v653
  %v655 = vpop.f32.mrb[0].mxu0
  %v656 = vpop.f32.mrb[0].mxu0
  %v657 = vadd.f32 0.0, %v656
  %v658 = vpop.f32.mrb[0].mxu0
  %659 = vmatprep.mubr.bf16.mxu0 0
  %660 = vmatmul.mubr.bf16.gmra.mrb[0].mxu0 %v375
  %v661 = vpop.f32.mrb[0].mxu0
  %v662 = vadd.f32 0.0, %v661
  %v663 = vpop.f32.mrb[0].mxu0
  %v664 = vpop.f32.mrb[0].mxu0
  %v665 = vadd.f32 0.0, %v664
  %v666 = vpop.f32.mrb[0].mxu0
  %667 = vmatprep.mubr.bf16.mxu0 0
  %668 = vmatmul.mubr.bf16.gmra.mrb[0].mxu0 %v376
  %v669 = vpop.f32.mrb[0].mxu0
  %v670 = vadd.f32 0.0, %v669
  %v671 = vpop.f32.mrb[0].mxu0
  %v672 = vpop.f32.mrb[0].mxu0
  %v673 = vadd.f32 0.0, %v672
  %v674 = vpop.f32.mrb[0].mxu0
  %675 = vmatprep.mubr.bf16.mxu0 0
  %676 = vmatmul.mubr.bf16.gmra.mrb[0].mxu0 %v377
  %v677 = vpop.f32.mrb[0].mxu0
  %v678 = vadd.f32 0.0, %v677
  %v679 = vpop.f32.mrb[0].mxu0
  %v680 = vpop.f32.mrb[0].mxu0
  %v681 = vadd.f32 0.0, %v680
  %v682 = vpop.f32.mrb[0].mxu0
  %683 = vmatprep.mubr.bf16.mxu0 0
  %684 = vmatmul.mubr.bf16.gmra.mrb[0].mxu0 %v378
  %v685 = vpop.f32.mrb[0].mxu0
  %v686 = vadd.f32 0.0, %v685
  %v687 = vpop.f32.mrb[0].mxu0
  %v688 = vpop.f32.mrb[0].mxu0
  %v689 = vadd.f32 0.0, %v688
  %v690 = vpop.f32.mrb[0].mxu0
  %691 = vmatprep.mubr.bf16.mxu0 0
  %692 = vmatmul.mubr.bf16.gmra.mrb[0].mxu0 %v379
  %v693 = vpop.f32.mrb[0].mxu0
  %v694 = vadd.f32 0.0, %v693
  %v695 = vpop.f32.mrb[0].mxu0
  %v696 = vpop.f32.mrb[0].mxu0
  %v697 = vadd.f32 0.0, %v696
  %v698 = vpop.f32.mrb[0].mxu0
  %699 = vmatprep.mubr.bf16.mxu0 0
  %700 = vmatmul.mubr.bf16.gmra.mrb[0].mxu0 %v380
  %v701 = vpop.f32.mrb[0].mxu0
  %v702 = vadd.f32 0.0, %v701
  %v703 = vpop.f32.mrb[0].mxu0
  %v704 = vpop.f32.mrb[0].mxu0
  %v705 = vadd.f32 0.0, %v704
  %v706 = vpop.f32.mrb[0].mxu0
  %707 = vmatprep.mubr.bf16.mxu0 0
  %708 = vmatmul.mubr.bf16.gmra.mrb[0].mxu0 %v381
  %v709 = vpop.f32.mrb[0].mxu0
  %v710 = vadd.f32 0.0, %v709
  %v711 = vpop.f32.mrb[0].mxu0
  %v712 = vpop.f32.mrb[0].mxu0
  %v713 = vadd.f32 0.0, %v712
  %v714 = vpop.f32.mrb[0].mxu0
  %715 = vmatprep.mubr.bf16.mxu0 0
  %716 = vmatmul.mubr.bf16.gmra.mrb[0].mxu0 %v382
  %v717 = vpop.f32.mrb[0].mxu0
  %v718 = vadd.f32 0.0, %v717
  %v719 = vpop.f32.mrb[0].mxu0
  %v720 = vpop.f32.mrb[0].mxu0
  %v721 = vadd.f32 0.0, %v720
  %v722 = vpop.f32.mrb[0].mxu0
  %723 = vmatprep.mubr.bf16.mxu0 0
  %724 = vmatmul.mubr.bf16.gmra.mrb[0].mxu0 %v383
  %v725 = vpop.f32.mrb[0].mxu0
  %v726 = vadd.f32 0.0, %v725
  %v727 = vpop.f32.mrb[0].mxu0
  %v728 = vpop.f32.mrb[0].mxu0
  %v729 = vadd.f32 0.0, %v728
  %v730 = vpop.f32.mrb[0].mxu0
  %731 = vmatprep.mubr.bf16.mxu0 0
  %732 = vmatmul.mubr.bf16.gmra.mrb[0].mxu0 %v384
  %v733 = vpop.f32.mrb[0].mxu0
  %v734 = vadd.f32 0.0, %v733
  %v735 = vpop.f32.mrb[0].mxu0
  %v736 = vpop.f32.mrb[0].mxu0
  %v737 = vadd.f32 0.0, %v736
  %v738 = vpop.f32.mrb[0].mxu0
  %739 = vmatprep.mubr.bf16.mxu0 0
  %740 = vmatmul.mubr.bf16.gmra.mrb[0].mxu0 %v385
  %v741 = vpop.f32.mrb[0].mxu0
  %v742 = vadd.f32 0.0, %v741
  %v743 = vpop.f32.mrb[0].mxu0
  %v744 = vpop.f32.mrb[0].mxu0
  %v745 = vadd.f32 0.0, %v744
  %v746 = vpop.f32.mrb[0].mxu0
  %747 = vmatprep.mubr.bf16.mxu0 0
  %748 = vmatmul.mubr.bf16.gmra.mrb[0].mxu0 %v386
  %v749 = vpop.f32.mrb[0].mxu0
  %v750 = vadd.f32 0.0, %v749
  %v751 = vpop.f32.mrb[0].mxu0
  %v752 = vpop.f32.mrb[0].mxu0
  %v753 = vadd.f32 0.0, %v752
  %v754 = vpop.f32.mrb[0].mxu0
  %755 = vdwg.mxu0
  %v756 = vadd.f32 %v83, %v502
  %v757 = vadd.f32 %v84, %v505
  %v758 = vadd.f32 %v85, %v510
  %v759 = vadd.f32 %v86, %v513
  %v760 = vadd.f32 %v87, %v518
  %v761 = vadd.f32 %v88, %v521
  %v762 = vadd.f32 %v89, %v526
  %v763 = vadd.f32 %v90, %v529
  %v764 = vadd.f32 %v91, %v534
  %v765 = vadd.f32 %v92, %v537
  %v766 = vadd.f32 %v93, %v542
  %v767 = vadd.f32 %v94, %v545
  %v768 = vadd.f32 %v95, %v550
  %v769 = vadd.f32 %v96, %v553
  %v770 = vadd.f32 %v97, %v558
  %v771 = vadd.f32 %v98, %v561
  %v772 = vadd.f32 %v99, %v566
  %v773 = vadd.f32 %v100, %v569
  %v774 = vadd.f32 %v101, %v574
  %v775 = vadd.f32 %v102, %v577
  %v776 = vadd.f32 %v103, %v582
  %v777 = vadd.f32 %v104, %v585
  %v778 = vadd.f32 %v105, %v590
  %v779 = vadd.f32 %v106, %v593
  %v780 = vadd.f32 %v107, %v598
  %v781 = vadd.f32 %v108, %v601
  %v782 = vadd.f32 %v109, %v606
  %v783 = vadd.f32 %v110, %v609
  %v784 = vadd.f32 %v111, %v614
  %v785 = vadd.f32 %v112, %v617
  %v786 = vadd.f32 %v113, %v622
  %v787 = vadd.f32 %v114, %v625
  %v788 = vadd.f32 %v115, %v630
  %v789 = vadd.f32 %v116, %v633
  %v790 = vadd.f32 %v117, %v638
  %v791 = vadd.f32 %v118, %v641
  %v792 = vadd.f32 %v119, %v646
  %v793 = vadd.f32 %v120, %v649
  %v794 = vadd.f32 %v121, %v654
  %v795 = vadd.f32 %v122, %v657
  %v796 = vadd.f32 %v123, %v662
  %v797 = vadd.f32 %v124, %v665
  %v798 = vadd.f32 %v125, %v670
  %v799 = vadd.f32 %v126, %v673
  %v800 = vadd.f32 %v127, %v678
  %v801 = vadd.f32 %v128, %v681
  %v802 = vadd.f32 %v129, %v686
  %v803 = vadd.f32 %v130, %v689
  %v804 = vadd.f32 %v131, %v694
  %v805 = vadd.f32 %v132, %v697
  %v806 = vadd.f32 %v133, %v702
  %v807 = vadd.f32 %v134, %v705
  %v808 = vadd.f32 %v135, %v710
  %v809 = vadd.f32 %v136, %v713
  %v810 = vadd.f32 %v137, %v718
  %v811 = vadd.f32 %v138, %v721
  %v812 = vadd.f32 %v139, %v726
  %v813 = vadd.f32 %v140, %v729
  %v814 = vadd.f32 %v141, %v734
  %v815 = vadd.f32 %v142, %v737
  %v816 = vadd.f32 %v143, %v742
  %v817 = vadd.f32 %v144, %v745
  %v818 = vadd.f32 %v145, %v750
  %v819 = vadd.f32 %v146, %v753
  %820 = vst [vmem:[#allocation2] sm:$0xff] %v756
  %821 = vst [vmem:[#allocation2 + $0x8] sm:$0xff] %v757
  %822 = vst [vmem:[#allocation2 + $0x10] sm:$0xff] %v758
  %823 = vst [vmem:[#allocation2 + $0x18] sm:$0xff] %v759
  %824 = vst [vmem:[#allocation2 + $0x20] sm:$0xff] %v760
  %825 = vst [vmem:[#allocation2 + $0x28] sm:$0xff] %v761
  %826 = vst [vmem:[#allocation2 + $0x30] sm:$0xff] %v762
  %827 = vst [vmem:[#allocation2 + $0x38] sm:$0xff] %v763
  %828 = vst [vmem:[#allocation2 + $0x40] sm:$0xff] %v764
  %829 = vst [vmem:[#allocation2 + $0x48] sm:$0xff] %v765
  %830 = vst [vmem:[#allocation2 + $0x50] sm:$0xff] %v766
  %831 = vst [vmem:[#allocation2 + $0x58] sm:$0xff] %v767
  %832 = vst [vmem:[#allocation2 + $0x60] sm:$0xff] %v768
  %833 = vst [vmem:[#allocation2 + $0x68] sm:$0xff] %v769
  %834 = vst [vmem:[#allocation2 + $0x70] sm:$0xff] %v770
  %835 = vst [vmem:[#allocation2 + $0x78] sm:$0xff] %v771
  %836 = vst [vmem:[#allocation2 + $0x80] sm:$0xff] %v772
  %837 = vst [vmem:[#allocation2 + $0x88] sm:$0xff] %v773
  %838 = vst [vmem:[#allocation2 + $0x90] sm:$0xff] %v774
  %839 = vst [vmem:[#allocation2 + $0x98] sm:$0xff] %v775
  %840 = vst [vmem:[#allocation2 + $0xa0] sm:$0xff] %v776
  %841 = vst [vmem:[#allocation2 + $0xa8] sm:$0xff] %v777
  %842 = vst [vmem:[#allocation2 + $0xb0] sm:$0xff] %v778
  %843 = vst [vmem:[#allocation2 + $0xb8] sm:$0xff] %v779
  %844 = vst [vmem:[#allocation2 + $0xc0] sm:$0xff] %v780
  %845 = vst [vmem:[#allocation2 + $0xc8] sm:$0xff] %v781
  %846 = vst [vmem:[#allocation2 + $0xd0] sm:$0xff] %v782
  %847 = vst [vmem:[#allocation2 + $0xd8] sm:$0xff] %v783
  %848 = vst [vmem:[#allocation2 + $0xe0] sm:$0xff] %v784
  %849 = vst [vmem:[#allocation2 + $0xe8] sm:$0xff] %v785
  %850 = vst [vmem:[#allocation2 + $0xf0] sm:$0xff] %v786
  %851 = vst [vmem:[#allocation2 + $0xf8] sm:$0xff] %v787
  %852 = vst [vmem:[#allocation2 + $0x100] sm:$0xff] %v788
  %853 = vst [vmem:[#allocation2 + $0x108] sm:$0xff] %v789
  %854 = vst [vmem:[#allocation2 + $0x110] sm:$0xff] %v790
  %855 = vst [vmem:[#allocation2 + $0x118] sm:$0xff] %v791
  %856 = vst [vmem:[#allocation2 + $0x120] sm:$0xff] %v792
  %857 = vst [vmem:[#allocation2 + $0x128] sm:$0xff] %v793
  %858 = vst [vmem:[#allocation2 + $0x130] sm:$0xff] %v794
  %859 = vst [vmem:[#allocation2 + $0x138] sm:$0xff] %v795
  %860 = vst [vmem:[#allocation2 + $0x140] sm:$0xff] %v796
  %861 = vst [vmem:[#allocation2 + $0x148] sm:$0xff] %v797
  %862 = vst [vmem:[#allocation2 + $0x150] sm:$0xff] %v798
  %863 = vst [vmem:[#allocation2 + $0x158] sm:$0xff] %v799
  %864 = vst [vmem:[#allocation2 + $0x160] sm:$0xff] %v800
  %865 = vst [vmem:[#allocation2 + $0x168] sm:$0xff] %v801
  %866 = vst [vmem:[#allocation2 + $0x170] sm:$0xff] %v802
  %867 = vst [vmem:[#allocation2 + $0x178] sm:$0xff] %v803
  %868 = vst [vmem:[#allocation2 + $0x180] sm:$0xff] %v804
  %869 = vst [vmem:[#allocation2 + $0x188] sm:$0xff] %v805
  %870 = vst [vmem:[#allocation2 + $0x190] sm:$0xff] %v806
  %871 = vst [vmem:[#allocation2 + $0x198] sm:$0xff] %v807
  %872 = vst [vmem:[#allocation2 + $0x1a0] sm:$0xff] %v808
  %873 = vst [vmem:[#allocation2 + $0x1a8] sm:$0xff] %v809
  %874 = vst [vmem:[#allocation2 + $0x1b0] sm:$0xff] %v810
  %875 = vst [vmem:[#allocation2 + $0x1b8] sm:$0xff] %v811
  %876 = vst [vmem:[#allocation2 + $0x1c0] sm:$0xff] %v812
  %877 = vst [vmem:[#allocation2 + $0x1c8] sm:$0xff] %v813
  %878 = vst [vmem:[#allocation2 + $0x1d0] sm:$0xff] %v814
  %879 = vst [vmem:[#allocation2 + $0x1d8] sm:$0xff] %v815
  %880 = vst [vmem:[#allocation2 + $0x1e0] sm:$0xff] %v816
  %881 = vst [vmem:[#allocation2 + $0x1e8] sm:$0xff] %v817
  %882 = vst [vmem:[#allocation2 + $0x1f0] sm:$0xff] %v818
  %883 = vst [vmem:[#allocation2 + $0x1f8] sm:$0xff] %v819
  // Predicated region
  $region18: #{discrete_vae_forward.13} parent=0 // pred_check
    %p884 = pneg %p15
  $region19: #{discrete_vae_forward.13} parent=0 // pred_check_branch
    %886 = sbr.rel (%p884) target = $region21
  $region20: #{discrete_vae_forward.13} parent=0 // pred_region
    %v887 = vld [vmem:[#allocation2] sm:$0xff]
    %v888 = vld [vmem:[#allocation2 + $0x8] sm:$0xff]
    %v889 = vld [vmem:[#allocation2 + $0x10] sm:$0xff]
    %v890 = vld [vmem:[#allocation2 + $0x18] sm:$0xff]
    %v891 = vld [vmem:[#allocation2 + $0x20] sm:$0xff]
    %v892 = vld [vmem:[#allocation2 + $0x28] sm:$0xff]
    %v893 = vld [vmem:[#allocation2 + $0x30] sm:$0xff]
    %v894 = vld [vmem:[#allocation2 + $0x38] sm:$0xff]
    %v895 = vld [vmem:[#allocation2 + $0x40] sm:$0xff]
    %v896 = vld [vmem:[#allocation2 + $0x48] sm:$0xff]
    %v897 = vld [vmem:[#allocation2 + $0x50] sm:$0xff]
    %v898 = vld [vmem:[#allocation2 + $0x58] sm:$0xff]
    %v899 = vld [vmem:[#allocation2 + $0x60] sm:$0xff]
    %v900 = vld [vmem:[#allocation2 + $0x68] sm:$0xff]
    %v901 = vld [vmem:[#allocation2 + $0x70] sm:$0xff]
    %v902 = vld [vmem:[#allocation2 + $0x78] sm:$0xff]
    %v903 = vld [vmem:[#allocation2 + $0x80] sm:$0xff]
    %v904 = vld [vmem:[#allocation2 + $0x88] sm:$0xff]
    %v905 = vld [vmem:[#allocation2 + $0x90] sm:$0xff]
    %v906 = vld [vmem:[#allocation2 + $0x98] sm:$0xff]
    %v907 = vld [vmem:[#allocation2 + $0xa0] sm:$0xff]
    %v908 = vld [vmem:[#allocation2 + $0xa8] sm:$0xff]
    %v909 = vld [vmem:[#allocation2 + $0xb0] sm:$0xff]
    %v910 = vld [vmem:[#allocation2 + $0xb8] sm:$0xff]
    %v911 = vld [vmem:[#allocation2 + $0xc0] sm:$0xff]
    %v912 = vld [vmem:[#allocation2 + $0xc8] sm:$0xff]
    %v913 = vld [vmem:[#allocation2 + $0xd0] sm:$0xff]
    %v914 = vld [vmem:[#allocation2 + $0xd8] sm:$0xff]
    %v915 = vld [vmem:[#allocation2 + $0xe0] sm:$0xff]
    %v916 = vld [vmem:[#allocation2 + $0xe8] sm:$0xff]
    %v917 = vld [vmem:[#allocation2 + $0xf0] sm:$0xff]
    %v918 = vld [vmem:[#allocation2 + $0xf8] sm:$0xff]
    %v919 = vld [vmem:[#allocation2 + $0x100] sm:$0xff]
    %v920 = vld [vmem:[#allocation2 + $0x108] sm:$0xff]
    %v921 = vld [vmem:[#allocation2 + $0x110] sm:$0xff]
    %v922 = vld [vmem:[#allocation2 + $0x118] sm:$0xff]
    %v923 = vld [vmem:[#allocation2 + $0x120] sm:$0xff]
    %v924 = vld [vmem:[#allocation2 + $0x128] sm:$0xff]
    %v925 = vld [vmem:[#allocation2 + $0x130] sm:$0xff]
    %v926 = vld [vmem:[#allocation2 + $0x138] sm:$0xff]
    %v927 = vld [vmem:[#allocation2 + $0x140] sm:$0xff]
    %v928 = vld [vmem:[#allocation2 + $0x148] sm:$0xff]
    %v929 = vld [vmem:[#allocation2 + $0x150] sm:$0xff]
    %v930 = vld [vmem:[#allocation2 + $0x158] sm:$0xff]
    %v931 = vld [vmem:[#allocation2 + $0x160] sm:$0xff]
    %v932 = vld [vmem:[#allocation2 + $0x168] sm:$0xff]
    %v933 = vld [vmem:[#allocation2 + $0x170] sm:$0xff]
    %v934 = vld [vmem:[#allocation2 + $0x178] sm:$0xff]
    %v935 = vld [vmem:[#allocation2 + $0x180] sm:$0xff]
    %v936 = vld [vmem:[#allocation2 + $0x188] sm:$0xff]
    %v937 = vld [vmem:[#allocation2 + $0x190] sm:$0xff]
    %v938 = vld [vmem:[#allocation2 + $0x198] sm:$0xff]
    %v939 = vld [vmem:[#allocation2 + $0x1a0] sm:$0xff]
    %v940 = vld [vmem:[#allocation2 + $0x1a8] sm:$0xff]
    %v941 = vld [vmem:[#allocation2 + $0x1b0] sm:$0xff]
    %v942 = vld [vmem:[#allocation2 + $0x1b8] sm:$0xff]
    %v943 = vld [vmem:[#allocation2 + $0x1c0] sm:$0xff]
    %v944 = vld [vmem:[#allocation2 + $0x1c8] sm:$0xff]
    %v945 = vld [vmem:[#allocation2 + $0x1d0] sm:$0xff]
    %v946 = vld [vmem:[#allocation2 + $0x1d8] sm:$0xff]
    %v947 = vld [vmem:[#allocation2 + $0x1e0] sm:$0xff]
    %v948 = vld [vmem:[#allocation2 + $0x1e8] sm:$0xff]
    %v949 = vld [vmem:[#allocation2 + $0x1f0] sm:$0xff]
    %v950 = vld [vmem:[#allocation2 + $0x1f8] sm:$0xff]
    %v951 = vld [vmem:[%s2] sm:$0x1]
    %v953 = vlaneseq
    %v954 = vshrl.u32 %v953, 7
    %v955 = vsub.s32 0, %v954
    %v956 = vrot.slane %v951, %v955
    %v958 = vadd.f32 %v887, %v956
    %v959 = vadd.f32 %v888, %v956
    %v960 = vadd.f32 %v889, %v956
    %v961 = vadd.f32 %v890, %v956
    %v962 = vadd.f32 %v891, %v956
    %v963 = vadd.f32 %v892, %v956
    %v964 = vadd.f32 %v893, %v956
    %v965 = vadd.f32 %v894, %v956
    %v966 = vadd.f32 %v895, %v956
    %v967 = vadd.f32 %v896, %v956
    %v968 = vadd.f32 %v897, %v956
    %v969 = vadd.f32 %v898, %v956
    %v970 = vadd.f32 %v899, %v956
    %v971 = vadd.f32 %v900, %v956
    %v972 = vadd.f32 %v901, %v956
    %v973 = vadd.f32 %v902, %v956
    %v974 = vadd.f32 %v903, %v956
    %v975 = vadd.f32 %v904, %v956
    %v976 = vadd.f32 %v905, %v956
    %v977 = vadd.f32 %v906, %v956
    %v978 = vadd.f32 %v907, %v956
    %v979 = vadd.f32 %v908, %v956
    %v980 = vadd.f32 %v909, %v956
    %v981 = vadd.f32 %v910, %v956
    %v982 = vadd.f32 %v911, %v956
    %v983 = vadd.f32 %v912, %v956
    %v984 = vadd.f32 %v913, %v956
    %v985 = vadd.f32 %v914, %v956
    %v986 = vadd.f32 %v915, %v956
    %v987 = vadd.f32 %v916, %v956
    %v988 = vadd.f32 %v917, %v956
    %v989 = vadd.f32 %v918, %v956
    %v990 = vadd.f32 %v919, %v956
    %v991 = vadd.f32 %v920, %v956
    %v992 = vadd.f32 %v921, %v956
    %v993 = vadd.f32 %v922, %v956
    %v994 = vadd.f32 %v923, %v956
    %v995 = vadd.f32 %v924, %v956
    %v996 = vadd.f32 %v925, %v956
    %v997 = vadd.f32 %v926, %v956
    %v998 = vadd.f32 %v927, %v956
    %v999 = vadd.f32 %v928, %v956
    %v1000 = vadd.f32 %v929, %v956
    %v1001 = vadd.f32 %v930, %v956
    %v1002 = vadd.f32 %v931, %v956
    %v1003 = vadd.f32 %v932, %v956
    %v1004 = vadd.f32 %v933, %v956
    %v1005 = vadd.f32 %v934, %v956
    %v1006 = vadd.f32 %v935, %v956
    %v1007 = vadd.f32 %v936, %v956
    %v1008 = vadd.f32 %v937, %v956
    %v1009 = vadd.f32 %v938, %v956
    %v1010 = vadd.f32 %v939, %v956
    %v1011 = vadd.f32 %v940, %v956
    %v1012 = vadd.f32 %v941, %v956
    %v1013 = vadd.f32 %v942, %v956
    %v1014 = vadd.f32 %v943, %v956
    %v1015 = vadd.f32 %v944, %v956
    %v1016 = vadd.f32 %v945, %v956
    %v1017 = vadd.f32 %v946, %v956
    %v1018 = vadd.f32 %v947, %v956
    %v1019 = vadd.f32 %v948, %v956
    %v1020 = vadd.f32 %v949, %v956
    %v1021 = vadd.f32 %v950, %v956
    %1022 = vst [vmem:[%s3] sm:$0xff] %v958
    %1023 = vst [vmem:[%s3 + $0x8] sm:$0xff] %v959
    %1024 = vst [vmem:[%s3 + $0x10] sm:$0xff] %v960
    %1025 = vst [vmem:[%s3 + $0x18] sm:$0xff] %v961
    %1026 = vst [vmem:[%s3 + $0x20] sm:$0xff] %v962
    %1027 = vst [vmem:[%s3 + $0x28] sm:$0xff] %v963
    %1028 = vst [vmem:[%s3 + $0x30] sm:$0xff] %v964
    %1029 = vst [vmem:[%s3 + $0x38] sm:$0xff] %v965
    %1030 = vst [vmem:[%s3 + $0x40] sm:$0xff] %v966
    %1031 = vst [vmem:[%s3 + $0x48] sm:$0xff] %v967
    %1032 = vst [vmem:[%s3 + $0x50] sm:$0xff] %v968
    %1033 = vst [vmem:[%s3 + $0x58] sm:$0xff] %v969
    %1034 = vst [vmem:[%s3 + $0x60] sm:$0xff] %v970
    %1035 = vst [vmem:[%s3 + $0x68] sm:$0xff] %v971
    %1036 = vst [vmem:[%s3 + $0x70] sm:$0xff] %v972
    %1037 = vst [vmem:[%s3 + $0x78] sm:$0xff] %v973
    %1038 = vst [vmem:[%s3 + $0x80] sm:$0xff] %v974
    %1039 = vst [vmem:[%s3 + $0x88] sm:$0xff] %v975
    %1040 = vst [vmem:[%s3 + $0x90] sm:$0xff] %v976
    %1041 = vst [vmem:[%s3 + $0x98] sm:$0xff] %v977
    %1042 = vst [vmem:[%s3 + $0xa0] sm:$0xff] %v978
    %1043 = vst [vmem:[%s3 + $0xa8] sm:$0xff] %v979
    %1044 = vst [vmem:[%s3 + $0xb0] sm:$0xff] %v980
    %1045 = vst [vmem:[%s3 + $0xb8] sm:$0xff] %v981
    %1046 = vst [vmem:[%s3 + $0xc0] sm:$0xff] %v982
    %1047 = vst [vmem:[%s3 + $0xc8] sm:$0xff] %v983
    %1048 = vst [vmem:[%s3 + $0xd0] sm:$0xff] %v984
    %1049 = vst [vmem:[%s3 + $0xd8] sm:$0xff] %v985
    %1050 = vst [vmem:[%s3 + $0xe0] sm:$0xff] %v986
    %1051 = vst [vmem:[%s3 + $0xe8] sm:$0xff] %v987
    %1052 = vst [vmem:[%s3 + $0xf0] sm:$0xff] %v988
    %1053 = vst [vmem:[%s3 + $0xf8] sm:$0xff] %v989
    %1054 = vst [vmem:[%s3 + $0x100] sm:$0xff] %v990
    %1055 = vst [vmem:[%s3 + $0x108] sm:$0xff] %v991
    %1056 = vst [vmem:[%s3 + $0x110] sm:$0xff] %v992
    %1057 = vst [vmem:[%s3 + $0x118] sm:$0xff] %v993
    %1058 = vst [vmem:[%s3 + $0x120] sm:$0xff] %v994
    %1059 = vst [vmem:[%s3 + $0x128] sm:$0xff] %v995
    %1060 = vst [vmem:[%s3 + $0x130] sm:$0xff] %v996
    %1061 = vst [vmem:[%s3 + $0x138] sm:$0xff] %v997
    %1062 = vst [vmem:[%s3 + $0x140] sm:$0xff] %v998
    %1063 = vst [vmem:[%s3 + $0x148] sm:$0xff] %v999
    %1064 = vst [vmem:[%s3 + $0x150] sm:$0xff] %v1000
    %1065 = vst [vmem:[%s3 + $0x158] sm:$0xff] %v1001
    %1066 = vst [vmem:[%s3 + $0x160] sm:$0xff] %v1002
    %1067 = vst [vmem:[%s3 + $0x168] sm:$0xff] %v1003
    %1068 = vst [vmem:[%s3 + $0x170] sm:$0xff] %v1004
    %1069 = vst [vmem:[%s3 + $0x178] sm:$0xff] %v1005
    %1070 = vst [vmem:[%s3 + $0x180] sm:$0xff] %v1006
    %1071 = vst [vmem:[%s3 + $0x188] sm:$0xff] %v1007
    %1072 = vst [vmem:[%s3 + $0x190] sm:$0xff] %v1008
    %1073 = vst [vmem:[%s3 + $0x198] sm:$0xff] %v1009
    %1074 = vst [vmem:[%s3 + $0x1a0] sm:$0xff] %v1010
    %1075 = vst [vmem:[%s3 + $0x1a8] sm:$0xff] %v1011
    %1076 = vst [vmem:[%s3 + $0x1b0] sm:$0xff] %v1012
    %1077 = vst [vmem:[%s3 + $0x1b8] sm:$0xff] %v1013
    %1078 = vst [vmem:[%s3 + $0x1c0] sm:$0xff] %v1014
    %1079 = vst [vmem:[%s3 + $0x1c8] sm:$0xff] %v1015
    %1080 = vst [vmem:[%s3 + $0x1d0] sm:$0xff] %v1016
    %1081 = vst [vmem:[%s3 + $0x1d8] sm:$0xff] %v1017
    %1082 = vst [vmem:[%s3 + $0x1e0] sm:$0xff] %v1018
    %1083 = vst [vmem:[%s3 + $0x1e8] sm:$0xff] %v1019
    %1084 = vst [vmem:[%s3 + $0x1f0] sm:$0xff] %v1020
    %1085 = vst [vmem:[%s3 + $0x1f8] sm:$0xff] %v1021
  $region21: #{discrete_vae_forward.13} parent=0 // pred_fallthru
    _
  // Predicated region
  $region22: #{discrete_vae_forward.13} parent=0 // pred_check
    _
  $region23: #{discrete_vae_forward.13} parent=0 // pred_check_branch
    %1087 = sbr.rel (0) target = $region25
  $region24: #{discrete_vae_forward.13} parent=0 // pred_region
    _
  $region25: #{discrete_vae_forward.13} parent=0 // pred_fallthru
    _
  // Predicated region
  $region26: #{discrete_vae_forward.13} parent=0 // pred_check
    _
  $region27: #{discrete_vae_forward.13} parent=0 // pred_check_branch
    %1089 = sbr.rel (0) target = $region29
  $region28: #{discrete_vae_forward.13} parent=0 // pred_region
    _
  $region29: #{discrete_vae_forward.13} parent=0 // pred_fallthru
    _

</llo_original>
